<compile_context>
chip_gen: v5e
topology: v5e:2x2
jax: 0.10.0
libtpu: 0.0.40
codegen_flags: <defaults>
</compile_context>

<pallas_src>
import math
from functools import reduce
from operator import mul

import jax
import jax.numpy as jnp
from jax.experimental import pallas as pl
from jax.experimental.pallas import tpu as pltpu  # noqa: F401  (kept for scaled path)

# ----------------------- synthetic config (mirrors __init__) -----------------------
BATCH = 2
SEQ_IN = 8                       # input sequence length (position 0 = CLS token)
HIDDEN = 32                      # transformer_model.config.hidden_size
PROMPT_DIM = HIDDEN // 2         # prompt_dim = hidden_size / 2
PROMPT_LEN = 4                   # cfg.TRAINER.COOP.N_PLN
NUM_LAYERS = 3                   # config.num_hidden_layers
NUM_HEADS = 4
HEAD_DIM = HIDDEN // NUM_HEADS
INTER = 4 * HIDDEN               # CLIP MLP intermediate size
PMT_DEEP = True                  # cfg.TRAINER.COOP.PMT_DEEP
LN_EPS = 1e-5
SEQ = SEQ_IN + PROMPT_LEN        # sequence length after incorporate_prompt
ROWS = BATCH * SEQ               # flattened (batch*seq) rows fed to the kernel

VEC_LANES = 128                  # lane width of the packed per-layer vector slab
assert 3 * HIDDEN <= VEC_LANES and INTER <= VEC_LANES

# TODO(synk): promptt_dropout (p=N_PDT) and gradient checkpointing are training-time
# behaviours; here the module runs in eval mode so dropout is the identity.


# ----------------------------- fused Pallas kernel -----------------------------------
def _layer_norm(x, w, b):
    mu = jnp.mean(x, axis=-1, keepdims=True)
    var = jnp.mean((x - mu) ** 2, axis=-1, keepdims=True)
    return (x - mu) * jax.lax.rsqrt(var + LN_EPS) * w + b


def _fused_encoder_kernel(x0_ref, dp_ref, pm_ref, bias_ref, vec_ref,
                          qkv_wT_ref, o_wT_ref, fc1_wT_ref, fc2_wT_ref, out_ref):
    """Single invocation: all NUM_LAYERS CLIP encoder layers statically unrolled."""
    x = x0_ref[...]                                   # (ROWS, H) activation carry
    pm = pm_ref[...]                                  # (ROWS, 1) 1.0 on prompt rows
    bias = bias_ref[...]                              # (ROWS, ROWS) block-diag 0/-1e9
    scale = HEAD_DIM ** -0.5

    for lid in range(NUM_LAYERS):                     # static unroll
        # Deep VPT: replace prompt rows with this layer's pre-projected prompt
        # (register-level blend; dp_ref is pre-scattered to row positions).
        if PMT_DEEP and NUM_LAYERS > 1 and lid >= 1:
            x = jnp.where(pm != 0.0, dp_ref[lid - 1], x)

        vec = vec_ref[lid]                            # (8, 128) packed vectors
        ln1_w, ln1_b = vec[0:1, :HIDDEN], vec[1:2, :HIDDEN]
        qkv_b = vec[2:3, :3 * HIDDEN]
        o_b = vec[3:4, :HIDDEN]
        ln2_w, ln2_b = vec[4:5, :HIDDEN], vec[5:6, :HIDDEN]
        fc1_b = vec[6:7, :INTER]
        fc2_b = vec[7:8, :HIDDEN]

        # ---------------- self-attention block ----------------
        h = _layer_norm(x, ln1_w, ln1_b)
        qkv = jnp.dot(h, qkv_wT_ref[lid],
                      preferred_element_type=jnp.float32) + qkv_b   # (ROWS, 3H)
        q = qkv[:, :HIDDEN] * scale
        k = qkv[:, HIDDEN:2 * HIDDEN]
        v = qkv[:, 2 * HIDDEN:]

        ctx_heads = []
        for hh in range(NUM_HEADS):                   # static unroll (4 heads)
            sl = slice(hh * HEAD_DIM, (hh + 1) * HEAD_DIM)
            s = jnp.dot(q[:, sl], k[:, sl].T,
                        preferred_element_type=jnp.float32) + bias
            s = s - jnp.max(s, axis=-1, keepdims=True)
            p = jnp.exp(s)
            p = p * pl.reciprocal(jnp.sum(p, axis=-1, keepdims=True), approx=True)
            ctx_heads.append(jnp.dot(p, v[:, sl],
                                     preferred_element_type=jnp.float32))
        ctx = jnp.concatenate(ctx_heads, axis=-1)     # (ROWS, H) lane concat
        x = x + jnp.dot(ctx, o_wT_ref[lid],
                        preferred_element_type=jnp.float32) + o_b

        # ---------------- MLP block (CLIP quick_gelu) ----------------
        h2 = _layer_norm(x, ln2_w, ln2_b)
        m = jnp.dot(h2, fc1_wT_ref[lid],
                    preferred_element_type=jnp.float32) + fc1_b
        m = m * pl.reciprocal(1.0 + jnp.exp(-1.702 * m), approx=True)  # quick_gelu
        m = jnp.dot(m, fc2_wT_ref[lid],
                    preferred_element_type=jnp.float32) + fc2_b
        x = x + m

    out_ref[...] = x                                  # single HBM writeback


def _pack_layers(layers):
    """Pack per-layer params: one (L,8,128) vector slab + 4 stacked weight matrices."""
    def pad_lanes(v):                                  # (1, d) -> (1, VEC_LANES)
        return jnp.pad(v, ((0, 0), (0, VEC_LANES - v.shape[1])))

    vec_rows, qkv_l, o_l, f1_l, f2_l = [], [], [], [], []
    for p in layers:
        qkv_b = jnp.concatenate([p["q_b"], p["k_b"], p["v_b"]], axis=1)   # (1, 3H)
        rows = [p["ln1_w"], p["ln1_b"], qkv_b, p["o_b"],
                p["ln2_w"], p["ln2_b"], p["fc1_b"], p["fc2_b"]]
        vec_rows.append(jnp.concatenate([pad_lanes(r) for r in rows], axis=0))
        qkv_l.append(jnp.concatenate([p["q_wT"], p["k_wT"], p["v_wT"]], axis=1))
        o_l.append(p["o_wT"])
        f1_l.append(p["fc1_wT"])
        f2_l.append(p["fc2_wT"])
    return (jnp.stack(vec_rows, axis=0),              # (L, 8, 128)
            jnp.stack(qkv_l, axis=0),                 # (L, H, 3H)
            jnp.stack(o_l, axis=0),                   # (L, H, H)
            jnp.stack(f1_l, axis=0),                  # (L, H, INTER)
            jnp.stack(f2_l, axis=0))                  # (L, INTER, H)


# ----------------------------- PromptEncoder forward --------------------------------
def prompt_encoder_forward(inputs_embeds, params):
    B = inputs_embeds.shape[0]
    wT, b = params["proj_wT"], params["proj_b"]                    # (PD, H), (1, H)

    # incorporate_prompt (glue, plain JAX): cat(x[:, :1], proj(prompt).expand(B), x[:, 1:])
    shallow = params["promptt_embeddings"][0] @ wT + b[0]          # (PL, H)
    h0 = jnp.concatenate(
        [inputs_embeds[:, :1, :],
         jnp.broadcast_to(shallow[None], (B, PROMPT_LEN, HIDDEN)),
         inputs_embeds[:, 1:, :]], axis=1)                         # (B, S, H)
    x0 = h0.reshape(ROWS, HIDDEN)                                  # whole batch, one slab

    # precomputed masks (hoisted out of the kernel per perf review)
    seq_pos = jnp.arange(ROWS) % SEQ
    prompt_mask = ((seq_pos >= 1) & (seq_pos < 1 + PROMPT_LEN)
                   ).astype(jnp.float32)[:, None]                  # (ROWS, 1)
    batch_id = jnp.arange(ROWS) // SEQ
    attn_bias = jnp.where(batch_id[:, None] == batch_id[None, :],
                          0.0, -1e9).astype(jnp.float32)           # (ROWS, ROWS)

    # all deep-prompt projections in one GEMM, pre-scattered to row positions
    if PMT_DEEP and NUM_LAYERS > 1:
        deep = params["deep_promptt_embeddings"]                   # (L-1, PL, PD)
        dp_proj = (deep.reshape(-1, PROMPT_DIM) @ wT + b[0]).reshape(
            NUM_LAYERS - 1, PROMPT_LEN, HIDDEN)
        j_map = jnp.clip(seq_pos - 1, 0, PROMPT_LEN - 1)
        dp_rows = jnp.take(dp_proj, j_map, axis=1)                 # (L-1, ROWS, H)
    else:
        dp_rows = jnp.zeros((max(NUM_LAYERS - 1, 1), ROWS, HIDDEN), jnp.float32)

    vec_slab, qkv_wT, o_wT, fc1_wT, fc2_wT = _pack_layers(params["layers"])

    # Single pallas_call, no grid: every operand is a full VMEM-resident block,
    # all layers unrolled in the kernel body, one HBM writeback at the end.
    out2d = pl.pallas_call(
        _fused_encoder_kernel,
        out_shape=jax.ShapeDtypeStruct((ROWS, HIDDEN), jnp.float32),
    )(x0, dp_rows, prompt_mask, attn_bias, vec_slab,
      qkv_wT, o_wT, fc1_wT, fc2_wT)

    return out2d.reshape(B, SEQ, HIDDEN)                           # last_hidden_state


# ----------------------------- pure-JAX reference -----------------------------------
def _ref_layer(x, p):
    B, S, H = x.shape
    h = _layer_norm(x, p["ln1_w"][0], p["ln1_b"][0])
    scale = HEAD_DIM ** -0.5
    q = (h @ p["q_wT"] + p["q_b"][0]) * scale
    k = h @ p["k_wT"] + p["k_b"][0]
    v = h @ p["v_wT"] + p["v_b"][0]

    def split(t):
        return t.reshape(B, S, NUM_HEADS, HEAD_DIM).transpose(0, 2, 1, 3)

    qh, kh, vh = split(q), split(k), split(v)
    attn = jax.nn.softmax(qh @ kh.transpose(0, 1, 3, 2), axis=-1)
    ctx = (attn @ vh).transpose(0, 2, 1, 3).reshape(B, S, H)
    x = x + (ctx @ p["o_wT"] + p["o_b"][0])
    h2 = _layer_norm(x, p["ln2_w"][0], p["ln2_b"][0])
    m = h2 @ p["fc1_wT"] + p["fc1_b"][0]
    m = m * jax.nn.sigmoid(1.702 * m)
    m = m @ p["fc2_wT"] + p["fc2_b"][0]
    return x + m


def reference_forward(inputs_embeds, params):
    B = inputs_embeds.shape[0]
    proj = params["promptt_embeddings"][0] @ params["proj_wT"] + params["proj_b"][0]
    proj_b = jnp.broadcast_to(proj[None], (B, PROMPT_LEN, HIDDEN))
    h = jnp.concatenate([inputs_embeds[:, :1, :], proj_b, inputs_embeds[:, 1:, :]], axis=1)
    for idx in range(NUM_LAYERS):
        if PMT_DEEP and idx >= 1 and idx <= params["deep_promptt_embeddings"].shape[0]:
            dp = (params["deep_promptt_embeddings"][idx - 1] @ params["proj_wT"]
                  + params["proj_b"][0])
            dp_b = jnp.broadcast_to(dp[None], (B, PROMPT_LEN, HIDDEN))
            h = jnp.concatenate([h[:, :1, :], dp_b, h[:, 1 + PROMPT_LEN:, :]], axis=1)
        h = _ref_layer(h, params["layers"][idx])
    return h


# ----------------------------- parameter construction -------------------------------
def make_params(key):
    keys = iter(jax.random.split(key, 256))

    def lin(in_dim, out_dim):
        # stored pre-transposed (in, out) so kernels do x @ wT + b (== torch x @ W.T + b)
        wT = 0.02 * jax.random.normal(next(keys), (in_dim, out_dim), jnp.float32)
        b = 0.01 * jax.random.normal(next(keys), (1, out_dim), jnp.float32)
        return wT, b

    params = {}
    # promptt_proj: Linear(prompt_dim, hidden)
    params["proj_wT"], params["proj_b"] = lin(PROMPT_DIM, HIDDEN)

    # prompt embeddings: uniform(-val, val), val = sqrt(6 / (3*16*16 + prompt_dim))
    patch_size = (16, 16)
    val = math.sqrt(6.0 / float(3 * reduce(mul, patch_size, 1) + PROMPT_DIM))
    params["promptt_embeddings"] = jax.random.uniform(
        next(keys), (1, PROMPT_LEN, PROMPT_DIM), jnp.float32, -val, val)
    total_d_layer = NUM_LAYERS - 1
    params["deep_promptt_embeddings"] = jax.random.uniform(
        next(keys), (total_d_layer, PROMPT_LEN, PROMPT_DIM), jnp.float32, -val, val)

    # CLIP encoder layers
    layers = []
    for _ in range(NUM_LAYERS):
        p = {}
        p["ln1_w"] = jnp.ones((1, HIDDEN), jnp.float32)
        p["ln1_b"] = jnp.zeros((1, HIDDEN), jnp.float32)
        p["q_wT"], p["q_b"] = lin(HIDDEN, HIDDEN)
        p["k_wT"], p["k_b"] = lin(HIDDEN, HIDDEN)
        p["v_wT"], p["v_b"] = lin(HIDDEN, HIDDEN)
        p["o_wT"], p["o_b"] = lin(HIDDEN, HIDDEN)
        p["ln2_w"] = jnp.ones((1, HIDDEN), jnp.float32)
        p["ln2_b"] = jnp.zeros((1, HIDDEN), jnp.float32)
        p["fc1_wT"], p["fc1_b"] = lin(HIDDEN, INTER)
        p["fc2_wT"], p["fc2_b"] = lin(INTER, HIDDEN)
        layers.append(p)
    params["layers"] = layers
    return params


if __name__ == "__main__":
    key = jax.random.PRNGKey(0)
    k_in, k_par = jax.random.split(key)
    inputs_embeds = jax.random.normal(k_in, (BATCH, SEQ_IN, HIDDEN), jnp.float32)
    params = make_params(k_par)

    fwd = jax.jit(prompt_encoder_forward)
    out = jax.block_until_ready(fwd(inputs_embeds, params))
    assert out.shape == (BATCH, SEQ, HIDDEN), out.shape

    ref = jax.block_until_ready(reference_forward(inputs_embeds, params))
    # tolerance accounts for the EUP approximate reciprocal used in softmax / quick_gelu
    assert jnp.allclose(out, ref, atol=2e-3, rtol=2e-3), float(jnp.max(jnp.abs(out - ref)))

    print("KERNEL_OK")
</pallas_src>

<mosaic_0001>
module attributes {stable_mosaic.version = 11 : i64} {
  func.func @_fused_encoder_kernel(%arg0: memref<24x32xf32, #tpu.memory_space<vmem>>, %arg1: memref<2x24x32xf32, #tpu.memory_space<vmem>>, %arg2: memref<24x1xf32, #tpu.memory_space<vmem>>, %arg3: memref<24x24xf32, #tpu.memory_space<vmem>>, %arg4: memref<3x8x128xf32, #tpu.memory_space<vmem>>, %arg5: memref<3x32x96xf32, #tpu.memory_space<vmem>>, %arg6: memref<3x32x32xf32, #tpu.memory_space<vmem>>, %arg7: memref<3x32x128xf32, #tpu.memory_space<vmem>>, %arg8: memref<3x128x32xf32, #tpu.memory_space<vmem>>, %arg9: memref<24x32xf32, #tpu.memory_space<vmem>>) attributes {dimension_semantics = [], scalar_prefetch = 0 : i64, scratch_operands = 0 : i64, tpu.core_type = #tpu.core_type<tc>} {
    %c0 = arith.constant 0 : index
    %c0_0 = arith.constant 0 : index
    %0 = vector.load %arg0[%c0, %c0_0] : memref<24x32xf32, #tpu.memory_space<vmem>>, vector<24x32xf32>
    %c0_1 = arith.constant 0 : index
    %c0_2 = arith.constant 0 : index
    %1 = vector.load %arg2[%c0_1, %c0_2] : memref<24x1xf32, #tpu.memory_space<vmem>>, vector<24x1xf32>
    %c0_3 = arith.constant 0 : index
    %c0_4 = arith.constant 0 : index
    %2 = vector.load %arg3[%c0_3, %c0_4] : memref<24x24xf32, #tpu.memory_space<vmem>>, vector<24x24xf32>
    %c0_5 = arith.constant 0 : index
    %c0_6 = arith.constant 0 : index
    %c0_7 = arith.constant 0 : index
    %3 = vector.load %arg4[%c0_5, %c0_6, %c0_7] : memref<3x8x128xf32, #tpu.memory_space<vmem>>, vector<1x8x128xf32>
    %4 = vector.shape_cast %3 : vector<1x8x128xf32> to vector<8x128xf32>
    %5 = vector.extract_strided_slice %4 {offsets = [0, 0], sizes = [1, 32], strides = [1, 1]} : vector<8x128xf32> to vector<1x32xf32>
    %6 = vector.extract_strided_slice %4 {offsets = [1, 0], sizes = [1, 32], strides = [1, 1]} : vector<8x128xf32> to vector<1x32xf32>
    %7 = vector.extract_strided_slice %4 {offsets = [2, 0], sizes = [1, 96], strides = [1, 1]} : vector<8x128xf32> to vector<1x96xf32>
    %8 = vector.extract_strided_slice %4 {offsets = [3, 0], sizes = [1, 32], strides = [1, 1]} : vector<8x128xf32> to vector<1x32xf32>
    %9 = vector.extract_strided_slice %4 {offsets = [4, 0], sizes = [1, 32], strides = [1, 1]} : vector<8x128xf32> to vector<1x32xf32>
    %10 = vector.extract_strided_slice %4 {offsets = [5, 0], sizes = [1, 32], strides = [1, 1]} : vector<8x128xf32> to vector<1x32xf32>
    %11 = vector.extract_strided_slice %4 {offsets = [6, 0], sizes = [1, 128], strides = [1, 1]} : vector<8x128xf32> to vector<1x128xf32>
    %12 = vector.extract_strided_slice %4 {offsets = [7, 0], sizes = [1, 32], strides = [1, 1]} : vector<8x128xf32> to vector<1x32xf32>
    %cst = arith.constant dense<0.000000e+00> : vector<24xf32>
    %13 = vector.multi_reduction <add>, %0, %cst [1] : vector<24x32xf32> to vector<24xf32>
    %14 = vector.shape_cast %13 : vector<24xf32> to vector<24x1xf32>
    %cst_8 = arith.constant 3.200000e+01 : f32
    %15 = vector.broadcast %cst_8 : f32 to vector<24x1xf32>
    %16 = arith.divf %14, %15 : vector<24x1xf32>
    %17 = vector.broadcast %16 : vector<24x1xf32> to vector<24x32xf32>
    %18 = arith.subf %0, %17 : vector<24x32xf32>
    %19 = arith.mulf %18, %18 : vector<24x32xf32>
    %cst_9 = arith.constant dense<0.000000e+00> : vector<24xf32>
    %20 = vector.multi_reduction <add>, %19, %cst_9 [1] : vector<24x32xf32> to vector<24xf32>
    %21 = vector.shape_cast %20 : vector<24xf32> to vector<24x1xf32>
    %cst_10 = arith.constant 3.200000e+01 : f32
    %22 = vector.broadcast %cst_10 : f32 to vector<24x1xf32>
    %23 = arith.divf %21, %22 : vector<24x1xf32>
    %24 = vector.broadcast %16 : vector<24x1xf32> to vector<24x32xf32>
    %25 = arith.subf %0, %24 : vector<24x32xf32>
    %cst_11 = arith.constant 9.99999974E-6 : f32
    %26 = vector.broadcast %cst_11 : f32 to vector<24x1xf32>
    %27 = arith.addf %23, %26 : vector<24x1xf32>
    %28 = math.rsqrt %27 : vector<24x1xf32>
    %29 = vector.broadcast %28 : vector<24x1xf32> to vector<24x32xf32>
    %30 = arith.mulf %25, %29 : vector<24x32xf32>
    %31 = vector.broadcast %5 : vector<1x32xf32> to vector<24x32xf32>
    %32 = arith.mulf %30, %31 : vector<24x32xf32>
    %33 = vector.broadcast %6 : vector<1x32xf32> to vector<24x32xf32>
    %34 = arith.addf %32, %33 : vector<24x32xf32>
    %c0_12 = arith.constant 0 : index
    %c0_13 = arith.constant 0 : index
    %c0_14 = arith.constant 0 : index
    %35 = vector.load %arg5[%c0_12, %c0_13, %c0_14] : memref<3x32x96xf32, #tpu.memory_space<vmem>>, vector<1x32x96xf32>
    %36 = vector.shape_cast %35 : vector<1x32x96xf32> to vector<32x96xf32>
    %cst_15 = arith.constant dense<0.000000e+00> : vector<24x96xf32>
    %37 = tpu.matmul %34, %36, %cst_15 {dimension_numbers = #tpu.dot_dimension_numbers<[1], [0], [0], [1], [0, 0, 1, 1], [], []>} : vector<24x32xf32>, vector<32x96xf32>, vector<24x96xf32> -> vector<24x96xf32>
    %38 = vector.broadcast %7 : vector<1x96xf32> to vector<24x96xf32>
    %39 = arith.addf %37, %38 : vector<24x96xf32>
    %40 = vector.extract_strided_slice %39 {offsets = [0, 0], sizes = [24, 32], strides = [1, 1]} : vector<24x96xf32> to vector<24x32xf32>
    %cst_16 = arith.constant 0.353553385 : f32
    %41 = vector.broadcast %cst_16 : f32 to vector<24x32xf32>
    %42 = arith.mulf %40, %41 : vector<24x32xf32>
    %43 = vector.extract_strided_slice %39 {offsets = [0, 32], sizes = [24, 32], strides = [1, 1]} : vector<24x96xf32> to vector<24x32xf32>
    %44 = vector.extract_strided_slice %39 {offsets = [0, 64], sizes = [24, 32], strides = [1, 1]} : vector<24x96xf32> to vector<24x32xf32>
    %45 = vector.extract_strided_slice %42 {offsets = [0, 0], sizes = [24, 8], strides = [1, 1]} : vector<24x32xf32> to vector<24x8xf32>
    %46 = vector.extract_strided_slice %43 {offsets = [0, 0], sizes = [24, 8], strides = [1, 1]} : vector<24x32xf32> to vector<24x8xf32>
    %47 = tpu.transpose %46, [1, 0] : vector<24x8xf32> -> vector<8x24xf32>
    %cst_17 = arith.constant dense<0.000000e+00> : vector<24x24xf32>
    %48 = tpu.matmul %45, %47, %cst_17 {dimension_numbers = #tpu.dot_dimension_numbers<[1], [0], [0], [1], [0, 0, 1, 1], [], []>} : vector<24x8xf32>, vector<8x24xf32>, vector<24x24xf32> -> vector<24x24xf32>
    %49 = arith.addf %48, %2 : vector<24x24xf32>
    %cst_18 = arith.constant dense<0xFF800000> : vector<24xf32>
    %50 = vector.multi_reduction <maximumf>, %49, %cst_18 [1] : vector<24x24xf32> to vector<24xf32>
    %51 = vector.shape_cast %50 : vector<24xf32> to vector<24x1xf32>
    %52 = vector.broadcast %51 : vector<24x1xf32> to vector<24x24xf32>
    %53 = arith.subf %49, %52 : vector<24x24xf32>
    %54 = math.exp %53 : vector<24x24xf32>
    %cst_19 = arith.constant dense<0.000000e+00> : vector<24xf32>
    %55 = vector.multi_reduction <add>, %54, %cst_19 [1] : vector<24x24xf32> to vector<24xf32>
    %56 = vector.shape_cast %55 : vector<24xf32> to vector<24x1xf32>
    %57 = tpu.reciprocal %56 {approx = true} : vector<24x1xf32> -> vector<24x1xf32>
    %58 = vector.broadcast %57 : vector<24x1xf32> to vector<24x24xf32>
    %59 = arith.mulf %54, %58 : vector<24x24xf32>
    %60 = vector.extract_strided_slice %44 {offsets = [0, 0], sizes = [24, 8], strides = [1, 1]} : vector<24x32xf32> to vector<24x8xf32>
    %cst_20 = arith.constant dense<0.000000e+00> : vector<24x8xf32>
    %61 = tpu.matmul %59, %60, %cst_20 {dimension_numbers = #tpu.dot_dimension_numbers<[1], [0], [0], [1], [0, 0, 1, 1], [], []>} : vector<24x24xf32>, vector<24x8xf32>, vector<24x8xf32> -> vector<24x8xf32>
    %62 = vector.extract_strided_slice %42 {offsets = [0, 8], sizes = [24, 8], strides = [1, 1]} : vector<24x32xf32> to vector<24x8xf32>
    %63 = vector.extract_strided_slice %43 {offsets = [0, 8], sizes = [24, 8], strides = [1, 1]} : vector<24x32xf32> to vector<24x8xf32>
    %64 = tpu.transpose %63, [1, 0] : vector<24x8xf32> -> vector<8x24xf32>
    %cst_21 = arith.constant dense<0.000000e+00> : vector<24x24xf32>
    %65 = tpu.matmul %62, %64, %cst_21 {dimension_numbers = #tpu.dot_dimension_numbers<[1], [0], [0], [1], [0, 0, 1, 1], [], []>} : vector<24x8xf32>, vector<8x24xf32>, vector<24x24xf32> -> vector<24x24xf32>
    %66 = arith.addf %65, %2 : vector<24x24xf32>
    %cst_22 = arith.constant dense<0xFF800000> : vector<24xf32>
    %67 = vector.multi_reduction <maximumf>, %66, %cst_22 [1] : vector<24x24xf32> to vector<24xf32>
    %68 = vector.shape_cast %67 : vector<24xf32> to vector<24x1xf32>
    %69 = vector.broadcast %68 : vector<24x1xf32> to vector<24x24xf32>
    %70 = arith.subf %66, %69 : vector<24x24xf32>
    %71 = math.exp %70 : vector<24x24xf32>
    %cst_23 = arith.constant dense<0.000000e+00> : vector<24xf32>
    %72 = vector.multi_reduction <add>, %71, %cst_23 [1] : vector<24x24xf32> to vector<24xf32>
    %73 = vector.shape_cast %72 : vector<24xf32> to vector<24x1xf32>
    %74 = tpu.reciprocal %73 {approx = true} : vector<24x1xf32> -> vector<24x1xf32>
    %75 = vector.broadcast %74 : vector<24x1xf32> to vector<24x24xf32>
    %76 = arith.mulf %71, %75 : vector<24x24xf32>
    %77 = vector.extract_strided_slice %44 {offsets = [0, 8], sizes = [24, 8], strides = [1, 1]} : vector<24x32xf32> to vector<24x8xf32>
    %cst_24 = arith.constant dense<0.000000e+00> : vector<24x8xf32>
    %78 = tpu.matmul %76, %77, %cst_24 {dimension_numbers = #tpu.dot_dimension_numbers<[1], [0], [0], [1], [0, 0, 1, 1], [], []>} : vector<24x24xf32>, vector<24x8xf32>, vector<24x8xf32> -> vector<24x8xf32>
    %79 = vector.extract_strided_slice %42 {offsets = [0, 16], sizes = [24, 8], strides = [1, 1]} : vector<24x32xf32> to vector<24x8xf32>
    %80 = vector.extract_strided_slice %43 {offsets = [0, 16], sizes = [24, 8], strides = [1, 1]} : vector<24x32xf32> to vector<24x8xf32>
    %81 = tpu.transpose %80, [1, 0] : vector<24x8xf32> -> vector<8x24xf32>
    %cst_25 = arith.constant dense<0.000000e+00> : vector<24x24xf32>
    %82 = tpu.matmul %79, %81, %cst_25 {dimension_numbers = #tpu.dot_dimension_numbers<[1], [0], [0], [1], [0, 0, 1, 1], [], []>} : vector<24x8xf32>, vector<8x24xf32>, vector<24x24xf32> -> vector<24x24xf32>
    %83 = arith.addf %82, %2 : vector<24x24xf32>
    %cst_26 = arith.constant dense<0xFF800000> : vector<24xf32>
    %84 = vector.multi_reduction <maximumf>, %83, %cst_26 [1] : vector<24x24xf32> to vector<24xf32>
    %85 = vector.shape_cast %84 : vector<24xf32> to vector<24x1xf32>
    %86 = vector.broadcast %85 : vector<24x1xf32> to vector<24x24xf32>
    %87 = arith.subf %83, %86 : vector<24x24xf32>
    %88 = math.exp %87 : vector<24x24xf32>
    %cst_27 = arith.constant dense<0.000000e+00> : vector<24xf32>
    %89 = vector.multi_reduction <add>, %88, %cst_27 [1] : vector<24x24xf32> to vector<24xf32>
    %90 = vector.shape_cast %89 : vector<24xf32> to vector<24x1xf32>
    %91 = tpu.reciprocal %90 {approx = true} : vector<24x1xf32> -> vector<24x1xf32>
    %92 = vector.broadcast %91 : vector<24x1xf32> to vector<24x24xf32>
    %93 = arith.mulf %88, %92 : vector<24x24xf32>
    %94 = vector.extract_strided_slice %44 {offsets = [0, 16], sizes = [24, 8], strides = [1, 1]} : vector<24x32xf32> to vector<24x8xf32>
    %cst_28 = arith.constant dense<0.000000e+00> : vector<24x8xf32>
    %95 = tpu.matmul %93, %94, %cst_28 {dimension_numbers = #tpu.dot_dimension_numbers<[1], [0], [0], [1], [0, 0, 1, 1], [], []>} : vector<24x24xf32>, vector<24x8xf32>, vector<24x8xf32> -> vector<24x8xf32>
    %96 = vector.extract_strided_slice %42 {offsets = [0, 24], sizes = [24, 8], strides = [1, 1]} : vector<24x32xf32> to vector<24x8xf32>
    %97 = vector.extract_strided_slice %43 {offsets = [0, 24], sizes = [24, 8], strides = [1, 1]} : vector<24x32xf32> to vector<24x8xf32>
    %98 = tpu.transpose %97, [1, 0] : vector<24x8xf32> -> vector<8x24xf32>
    %cst_29 = arith.constant dense<0.000000e+00> : vector<24x24xf32>
    %99 = tpu.matmul %96, %98, %cst_29 {dimension_numbers = #tpu.dot_dimension_numbers<[1], [0], [0], [1], [0, 0, 1, 1], [], []>} : vector<24x8xf32>, vector<8x24xf32>, vector<24x24xf32> -> vector<24x24xf32>
    %100 = arith.addf %99, %2 : vector<24x24xf32>
    %cst_30 = arith.constant dense<0xFF800000> : vector<24xf32>
    %101 = vector.multi_reduction <maximumf>, %100, %cst_30 [1] : vector<24x24xf32> to vector<24xf32>
    %102 = vector.shape_cast %101 : vector<24xf32> to vector<24x1xf32>
    %103 = vector.broadcast %102 : vector<24x1xf32> to vector<24x24xf32>
    %104 = arith.subf %100, %103 : vector<24x24xf32>
    %105 = math.exp %104 : vector<24x24xf32>
    %cst_31 = arith.constant dense<0.000000e+00> : vector<24xf32>
    %106 = vector.multi_reduction <add>, %105, %cst_31 [1] : vector<24x24xf32> to vector<24xf32>
    %107 = vector.shape_cast %106 : vector<24xf32> to vector<24x1xf32>
    %108 = tpu.reciprocal %107 {approx = true} : vector<24x1xf32> -> vector<24x1xf32>
    %109 = vector.broadcast %108 : vector<24x1xf32> to vector<24x24xf32>
    %110 = arith.mulf %105, %109 : vector<24x24xf32>
    %111 = vector.extract_strided_slice %44 {offsets = [0, 24], sizes = [24, 8], strides = [1, 1]} : vector<24x32xf32> to vector<24x8xf32>
    %cst_32 = arith.constant dense<0.000000e+00> : vector<24x8xf32>
    %112 = tpu.matmul %110, %111, %cst_32 {dimension_numbers = #tpu.dot_dimension_numbers<[1], [0], [0], [1], [0, 0, 1, 1], [], []>} : vector<24x24xf32>, vector<24x8xf32>, vector<24x8xf32> -> vector<24x8xf32>
    %113 = tpu.concatenate %61, %78, %95, %112 in 1 : vector<24x8xf32>, vector<24x8xf32>, vector<24x8xf32>, vector<24x8xf32> -> vector<24x32xf32>
    %c0_33 = arith.constant 0 : index
    %c0_34 = arith.constant 0 : index
    %c0_35 = arith.constant 0 : index
    %114 = vector.load %arg6[%c0_33, %c0_34, %c0_35] : memref<3x32x32xf32, #tpu.memory_space<vmem>>, vector<1x32x32xf32>
    %115 = vector.shape_cast %114 : vector<1x32x32xf32> to vector<32x32xf32>
    %cst_36 = arith.constant dense<0.000000e+00> : vector<24x32xf32>
    %116 = tpu.matmul %113, %115, %cst_36 {dimension_numbers = #tpu.dot_dimension_numbers<[1], [0], [0], [1], [0, 0, 1, 1], [], []>} : vector<24x32xf32>, vector<32x32xf32>, vector<24x32xf32> -> vector<24x32xf32>
    %117 = arith.addf %0, %116 : vector<24x32xf32>
    %118 = vector.broadcast %8 : vector<1x32xf32> to vector<24x32xf32>
    %119 = arith.addf %117, %118 : vector<24x32xf32>
    %cst_37 = arith.constant dense<0.000000e+00> : vector<24xf32>
    %120 = vector.multi_reduction <add>, %119, %cst_37 [1] : vector<24x32xf32> to vector<24xf32>
    %121 = vector.shape_cast %120 : vector<24xf32> to vector<24x1xf32>
    %cst_38 = arith.constant 3.200000e+01 : f32
    %122 = vector.broadcast %cst_38 : f32 to vector<24x1xf32>
    %123 = arith.divf %121, %122 : vector<24x1xf32>
    %124 = vector.broadcast %123 : vector<24x1xf32> to vector<24x32xf32>
    %125 = arith.subf %119, %124 : vector<24x32xf32>
    %126 = arith.mulf %125, %125 : vector<24x32xf32>
    %cst_39 = arith.constant dense<0.000000e+00> : vector<24xf32>
    %127 = vector.multi_reduction <add>, %126, %cst_39 [1] : vector<24x32xf32> to vector<24xf32>
    %128 = vector.shape_cast %127 : vector<24xf32> to vector<24x1xf32>
    %cst_40 = arith.constant 3.200000e+01 : f32
    %129 = vector.broadcast %cst_40 : f32 to vector<24x1xf32>
    %130 = arith.divf %128, %129 : vector<24x1xf32>
    %131 = vector.broadcast %123 : vector<24x1xf32> to vector<24x32xf32>
    %132 = arith.subf %119, %131 : vector<24x32xf32>
    %cst_41 = arith.constant 9.99999974E-6 : f32
    %133 = vector.broadcast %cst_41 : f32 to vector<24x1xf32>
    %134 = arith.addf %130, %133 : vector<24x1xf32>
    %135 = math.rsqrt %134 : vector<24x1xf32>
    %136 = vector.broadcast %135 : vector<24x1xf32> to vector<24x32xf32>
    %137 = arith.mulf %132, %136 : vector<24x32xf32>
    %138 = vector.broadcast %9 : vector<1x32xf32> to vector<24x32xf32>
    %139 = arith.mulf %137, %138 : vector<24x32xf32>
    %140 = vector.broadcast %10 : vector<1x32xf32> to vector<24x32xf32>
    %141 = arith.addf %139, %140 : vector<24x32xf32>
    %c0_42 = arith.constant 0 : index
    %c0_43 = arith.constant 0 : index
    %c0_44 = arith.constant 0 : index
    %142 = vector.load %arg7[%c0_42, %c0_43, %c0_44] : memref<3x32x128xf32, #tpu.memory_space<vmem>>, vector<1x32x128xf32>
    %143 = vector.shape_cast %142 : vector<1x32x128xf32> to vector<32x128xf32>
    %cst_45 = arith.constant dense<0.000000e+00> : vector<24x128xf32>
    %144 = tpu.matmul %141, %143, %cst_45 {dimension_numbers = #tpu.dot_dimension_numbers<[1], [0], [0], [1], [0, 0, 1, 1], [], []>} : vector<24x32xf32>, vector<32x128xf32>, vector<24x128xf32> -> vector<24x128xf32>
    %145 = vector.broadcast %11 : vector<1x128xf32> to vector<24x128xf32>
    %146 = arith.addf %144, %145 : vector<24x128xf32>
    %cst_46 = arith.constant -1.702000e+00 : f32
    %147 = vector.broadcast %cst_46 : f32 to vector<24x128xf32>
    %148 = arith.mulf %147, %146 : vector<24x128xf32>
    %149 = math.exp %148 : vector<24x128xf32>
    %cst_47 = arith.constant 1.000000e+00 : f32
    %150 = vector.broadcast %cst_47 : f32 to vector<24x128xf32>
    %151 = arith.addf %150, %149 : vector<24x128xf32>
    %152 = tpu.reciprocal %151 {approx = true} : vector<24x128xf32> -> vector<24x128xf32>
    %153 = arith.mulf %146, %152 : vector<24x128xf32>
    %c0_48 = arith.constant 0 : index
    %c0_49 = arith.constant 0 : index
    %c0_50 = arith.constant 0 : index
    %154 = vector.load %arg8[%c0_48, %c0_49, %c0_50] : memref<3x128x32xf32, #tpu.memory_space<vmem>>, vector<1x128x32xf32>
    %155 = vector.shape_cast %154 : vector<1x128x32xf32> to vector<128x32xf32>
    %cst_51 = arith.constant dense<0.000000e+00> : vector<24x32xf32>
    %156 = tpu.matmul %153, %155, %cst_51 {dimension_numbers = #tpu.dot_dimension_numbers<[1], [0], [0], [1], [0, 0, 1, 1], [], []>} : vector<24x128xf32>, vector<128x32xf32>, vector<24x32xf32> -> vector<24x32xf32>
    %157 = vector.broadcast %12 : vector<1x32xf32> to vector<24x32xf32>
    %158 = arith.addf %156, %157 : vector<24x32xf32>
    %159 = arith.addf %119, %158 : vector<24x32xf32>
    %cst_52 = arith.constant 0.000000e+00 : f32
    %160 = vector.broadcast %cst_52 : f32 to vector<24x1xf32>
    %161 = arith.cmpf one, %1, %160 : vector<24x1xf32>
    %c0_53 = arith.constant 0 : index
    %c0_54 = arith.constant 0 : index
    %c0_55 = arith.constant 0 : index
    %162 = vector.load %arg1[%c0_53, %c0_54, %c0_55] : memref<2x24x32xf32, #tpu.memory_space<vmem>>, vector<1x24x32xf32>
    %163 = vector.shape_cast %162 : vector<1x24x32xf32> to vector<24x32xf32>
    %164 = vector.shape_cast %161 : vector<24x1xi1> to vector<24x1xi1>
    %165 = vector.broadcast %164 : vector<24x1xi1> to vector<24x32xi1>
    %166 = arith.select %165, %163, %159 : vector<24x32xi1>, vector<24x32xf32>
    %c1 = arith.constant 1 : index
    %c0_56 = arith.constant 0 : index
    %c0_57 = arith.constant 0 : index
    %167 = vector.load %arg4[%c1, %c0_56, %c0_57] : memref<3x8x128xf32, #tpu.memory_space<vmem>>, vector<1x8x128xf32>
    %168 = vector.shape_cast %167 : vector<1x8x128xf32> to vector<8x128xf32>
    %169 = vector.extract_strided_slice %168 {offsets = [0, 0], sizes = [1, 32], strides = [1, 1]} : vector<8x128xf32> to vector<1x32xf32>
    %170 = vector.extract_strided_slice %168 {offsets = [1, 0], sizes = [1, 32], strides = [1, 1]} : vector<8x128xf32> to vector<1x32xf32>
    %171 = vector.extract_strided_slice %168 {offsets = [2, 0], sizes = [1, 96], strides = [1, 1]} : vector<8x128xf32> to vector<1x96xf32>
    %172 = vector.extract_strided_slice %168 {offsets = [3, 0], sizes = [1, 32], strides = [1, 1]} : vector<8x128xf32> to vector<1x32xf32>
    %173 = vector.extract_strided_slice %168 {offsets = [4, 0], sizes = [1, 32], strides = [1, 1]} : vector<8x128xf32> to vector<1x32xf32>
    %174 = vector.extract_strided_slice %168 {offsets = [5, 0], sizes = [1, 32], strides = [1, 1]} : vector<8x128xf32> to vector<1x32xf32>
    %175 = vector.extract_strided_slice %168 {offsets = [6, 0], sizes = [1, 128], strides = [1, 1]} : vector<8x128xf32> to vector<1x128xf32>
    %176 = vector.extract_strided_slice %168 {offsets = [7, 0], sizes = [1, 32], strides = [1, 1]} : vector<8x128xf32> to vector<1x32xf32>
    %cst_58 = arith.constant dense<0.000000e+00> : vector<24xf32>
    %177 = vector.multi_reduction <add>, %166, %cst_58 [1] : vector<24x32xf32> to vector<24xf32>
    %178 = vector.shape_cast %177 : vector<24xf32> to vector<24x1xf32>
    %cst_59 = arith.constant 3.200000e+01 : f32
    %179 = vector.broadcast %cst_59 : f32 to vector<24x1xf32>
    %180 = arith.divf %178, %179 : vector<24x1xf32>
    %181 = vector.broadcast %180 : vector<24x1xf32> to vector<24x32xf32>
    %182 = arith.subf %166, %181 : vector<24x32xf32>
    %183 = arith.mulf %182, %182 : vector<24x32xf32>
    %cst_60 = arith.constant dense<0.000000e+00> : vector<24xf32>
    %184 = vector.multi_reduction <add>, %183, %cst_60 [1] : vector<24x32xf32> to vector<24xf32>
    %185 = vector.shape_cast %184 : vector<24xf32> to vector<24x1xf32>
    %cst_61 = arith.constant 3.200000e+01 : f32
    %186 = vector.broadcast %cst_61 : f32 to vector<24x1xf32>
    %187 = arith.divf %185, %186 : vector<24x1xf32>
    %188 = vector.broadcast %180 : vector<24x1xf32> to vector<24x32xf32>
    %189 = arith.subf %166, %188 : vector<24x32xf32>
    %cst_62 = arith.constant 9.99999974E-6 : f32
    %190 = vector.broadcast %cst_62 : f32 to vector<24x1xf32>
    %191 = arith.addf %187, %190 : vector<24x1xf32>
    %192 = math.rsqrt %191 : vector<24x1xf32>
    %193 = vector.broadcast %192 : vector<24x1xf32> to vector<24x32xf32>
    %194 = arith.mulf %189, %193 : vector<24x32xf32>
    %195 = vector.broadcast %169 : vector<1x32xf32> to vector<24x32xf32>
    %196 = arith.mulf %194, %195 : vector<24x32xf32>
    %197 = vector.broadcast %170 : vector<1x32xf32> to vector<24x32xf32>
    %198 = arith.addf %196, %197 : vector<24x32xf32>
    %c1_63 = arith.constant 1 : index
    %c0_64 = arith.constant 0 : index
    %c0_65 = arith.constant 0 : index
    %199 = vector.load %arg5[%c1_63, %c0_64, %c0_65] : memref<3x32x96xf32, #tpu.memory_space<vmem>>, vector<1x32x96xf32>
    %200 = vector.shape_cast %199 : vector<1x32x96xf32> to vector<32x96xf32>
    %cst_66 = arith.constant dense<0.000000e+00> : vector<24x96xf32>
    %201 = tpu.matmul %198, %200, %cst_66 {dimension_numbers = #tpu.dot_dimension_numbers<[1], [0], [0], [1], [0, 0, 1, 1], [], []>} : vector<24x32xf32>, vector<32x96xf32>, vector<24x96xf32> -> vector<24x96xf32>
    %202 = vector.broadcast %171 : vector<1x96xf32> to vector<24x96xf32>
    %203 = arith.addf %201, %202 : vector<24x96xf32>
    %204 = vector.extract_strided_slice %203 {offsets = [0, 0], sizes = [24, 32], strides = [1, 1]} : vector<24x96xf32> to vector<24x32xf32>
    %cst_67 = arith.constant 0.353553385 : f32
    %205 = vector.broadcast %cst_67 : f32 to vector<24x32xf32>
    %206 = arith.mulf %204, %205 : vector<24x32xf32>
    %207 = vector.extract_strided_slice %203 {offsets = [0, 32], sizes = [24, 32], strides = [1, 1]} : vector<24x96xf32> to vector<24x32xf32>
    %208 = vector.extract_strided_slice %203 {offsets = [0, 64], sizes = [24, 32], strides = [1, 1]} : vector<24x96xf32> to vector<24x32xf32>
    %209 = vector.extract_strided_slice %206 {offsets = [0, 0], sizes = [24, 8], strides = [1, 1]} : vector<24x32xf32> to vector<24x8xf32>
    %210 = vector.extract_strided_slice %207 {offsets = [0, 0], sizes = [24, 8], strides = [1, 1]} : vector<24x32xf32> to vector<24x8xf32>
    %211 = tpu.transpose %210, [1, 0] : vector<24x8xf32> -> vector<8x24xf32>
    %cst_68 = arith.constant dense<0.000000e+00> : vector<24x24xf32>
    %212 = tpu.matmul %209, %211, %cst_68 {dimension_numbers = #tpu.dot_dimension_numbers<[1], [0], [0], [1], [0, 0, 1, 1], [], []>} : vector<24x8xf32>, vector<8x24xf32>, vector<24x24xf32> -> vector<24x24xf32>
    %213 = arith.addf %212, %2 : vector<24x24xf32>
    %cst_69 = arith.constant dense<0xFF800000> : vector<24xf32>
    %214 = vector.multi_reduction <maximumf>, %213, %cst_69 [1] : vector<24x24xf32> to vector<24xf32>
    %215 = vector.shape_cast %214 : vector<24xf32> to vector<24x1xf32>
    %216 = vector.broadcast %215 : vector<24x1xf32> to vector<24x24xf32>
    %217 = arith.subf %213, %216 : vector<24x24xf32>
    %218 = math.exp %217 : vector<24x24xf32>
    %cst_70 = arith.constant dense<0.000000e+00> : vector<24xf32>
    %219 = vector.multi_reduction <add>, %218, %cst_70 [1] : vector<24x24xf32> to vector<24xf32>
    %220 = vector.shape_cast %219 : vector<24xf32> to vector<24x1xf32>
    %221 = tpu.reciprocal %220 {approx = true} : vector<24x1xf32> -> vector<24x1xf32>
    %222 = vector.broadcast %221 : vector<24x1xf32> to vector<24x24xf32>
    %223 = arith.mulf %218, %222 : vector<24x24xf32>
    %224 = vector.extract_strided_slice %208 {offsets = [0, 0], sizes = [24, 8], strides = [1, 1]} : vector<24x32xf32> to vector<24x8xf32>
    %cst_71 = arith.constant dense<0.000000e+00> : vector<24x8xf32>
    %225 = tpu.matmul %223, %224, %cst_71 {dimension_numbers = #tpu.dot_dimension_numbers<[1], [0], [0], [1], [0, 0, 1, 1], [], []>} : vector<24x24xf32>, vector<24x8xf32>, vector<24x8xf32> -> vector<24x8xf32>
    %226 = vector.extract_strided_slice %206 {offsets = [0, 8], sizes = [24, 8], strides = [1, 1]} : vector<24x32xf32> to vector<24x8xf32>
    %227 = vector.extract_strided_slice %207 {offsets = [0, 8], sizes = [24, 8], strides = [1, 1]} : vector<24x32xf32> to vector<24x8xf32>
    %228 = tpu.transpose %227, [1, 0] : vector<24x8xf32> -> vector<8x24xf32>
    %cst_72 = arith.constant dense<0.000000e+00> : vector<24x24xf32>
    %229 = tpu.matmul %226, %228, %cst_72 {dimension_numbers = #tpu.dot_dimension_numbers<[1], [0], [0], [1], [0, 0, 1, 1], [], []>} : vector<24x8xf32>, vector<8x24xf32>, vector<24x24xf32> -> vector<24x24xf32>
    %230 = arith.addf %229, %2 : vector<24x24xf32>
    %cst_73 = arith.constant dense<0xFF800000> : vector<24xf32>
    %231 = vector.multi_reduction <maximumf>, %230, %cst_73 [1] : vector<24x24xf32> to vector<24xf32>
    %232 = vector.shape_cast %231 : vector<24xf32> to vector<24x1xf32>
    %233 = vector.broadcast %232 : vector<24x1xf32> to vector<24x24xf32>
    %234 = arith.subf %230, %233 : vector<24x24xf32>
    %235 = math.exp %234 : vector<24x24xf32>
    %cst_74 = arith.constant dense<0.000000e+00> : vector<24xf32>
    %236 = vector.multi_reduction <add>, %235, %cst_74 [1] : vector<24x24xf32> to vector<24xf32>
    %237 = vector.shape_cast %236 : vector<24xf32> to vector<24x1xf32>
    %238 = tpu.reciprocal %237 {approx = true} : vector<24x1xf32> -> vector<24x1xf32>
    %239 = vector.broadcast %238 : vector<24x1xf32> to vector<24x24xf32>
    %240 = arith.mulf %235, %239 : vector<24x24xf32>
    %241 = vector.extract_strided_slice %208 {offsets = [0, 8], sizes = [24, 8], strides = [1, 1]} : vector<24x32xf32> to vector<24x8xf32>
    %cst_75 = arith.constant dense<0.000000e+00> : vector<24x8xf32>
    %242 = tpu.matmul %240, %241, %cst_75 {dimension_numbers = #tpu.dot_dimension_numbers<[1], [0], [0], [1], [0, 0, 1, 1], [], []>} : vector<24x24xf32>, vector<24x8xf32>, vector<24x8xf32> -> vector<24x8xf32>
    %243 = vector.extract_strided_slice %206 {offsets = [0, 16], sizes = [24, 8], strides = [1, 1]} : vector<24x32xf32> to vector<24x8xf32>
    %244 = vector.extract_strided_slice %207 {offsets = [0, 16], sizes = [24, 8], strides = [1, 1]} : vector<24x32xf32> to vector<24x8xf32>
    %245 = tpu.transpose %244, [1, 0] : vector<24x8xf32> -> vector<8x24xf32>
    %cst_76 = arith.constant dense<0.000000e+00> : vector<24x24xf32>
    %246 = tpu.matmul %243, %245, %cst_76 {dimension_numbers = #tpu.dot_dimension_numbers<[1], [0], [0], [1], [0, 0, 1, 1], [], []>} : vector<24x8xf32>, vector<8x24xf32>, vector<24x24xf32> -> vector<24x24xf32>
    %247 = arith.addf %246, %2 : vector<24x24xf32>
    %cst_77 = arith.constant dense<0xFF800000> : vector<24xf32>
    %248 = vector.multi_reduction <maximumf>, %247, %cst_77 [1] : vector<24x24xf32> to vector<24xf32>
    %249 = vector.shape_cast %248 : vector<24xf32> to vector<24x1xf32>
    %250 = vector.broadcast %249 : vector<24x1xf32> to vector<24x24xf32>
    %251 = arith.subf %247, %250 : vector<24x24xf32>
    %252 = math.exp %251 : vector<24x24xf32>
    %cst_78 = arith.constant dense<0.000000e+00> : vector<24xf32>
    %253 = vector.multi_reduction <add>, %252, %cst_78 [1] : vector<24x24xf32> to vector<24xf32>
    %254 = vector.shape_cast %253 : vector<24xf32> to vector<24x1xf32>
    %255 = tpu.reciprocal %254 {approx = true} : vector<24x1xf32> -> vector<24x1xf32>
    %256 = vector.broadcast %255 : vector<24x1xf32> to vector<24x24xf32>
    %257 = arith.mulf %252, %256 : vector<24x24xf32>
    %258 = vector.extract_strided_slice %208 {offsets = [0, 16], sizes = [24, 8], strides = [1, 1]} : vector<24x32xf32> to vector<24x8xf32>
    %cst_79 = arith.constant dense<0.000000e+00> : vector<24x8xf32>
    %259 = tpu.matmul %257, %258, %cst_79 {dimension_numbers = #tpu.dot_dimension_numbers<[1], [0], [0], [1], [0, 0, 1, 1], [], []>} : vector<24x24xf32>, vector<24x8xf32>, vector<24x8xf32> -> vector<24x8xf32>
    %260 = vector.extract_strided_slice %206 {offsets = [0, 24], sizes = [24, 8], strides = [1, 1]} : vector<24x32xf32> to vector<24x8xf32>
    %261 = vector.extract_strided_slice %207 {offsets = [0, 24], sizes = [24, 8], strides = [1, 1]} : vector<24x32xf32> to vector<24x8xf32>
    %262 = tpu.transpose %261, [1, 0] : vector<24x8xf32> -> vector<8x24xf32>
    %cst_80 = arith.constant dense<0.000000e+00> : vector<24x24xf32>
    %263 = tpu.matmul %260, %262, %cst_80 {dimension_numbers = #tpu.dot_dimension_numbers<[1], [0], [0], [1], [0, 0, 1, 1], [], []>} : vector<24x8xf32>, vector<8x24xf32>, vector<24x24xf32> -> vector<24x24xf32>
    %264 = arith.addf %263, %2 : vector<24x24xf32>
    %cst_81 = arith.constant dense<0xFF800000> : vector<24xf32>
    %265 = vector.multi_reduction <maximumf>, %264, %cst_81 [1] : vector<24x24xf32> to vector<24xf32>
    %266 = vector.shape_cast %265 : vector<24xf32> to vector<24x1xf32>
    %267 = vector.broadcast %266 : vector<24x1xf32> to vector<24x24xf32>
    %268 = arith.subf %264, %267 : vector<24x24xf32>
    %269 = math.exp %268 : vector<24x24xf32>
    %cst_82 = arith.constant dense<0.000000e+00> : vector<24xf32>
    %270 = vector.multi_reduction <add>, %269, %cst_82 [1] : vector<24x24xf32> to vector<24xf32>
    %271 = vector.shape_cast %270 : vector<24xf32> to vector<24x1xf32>
    %272 = tpu.reciprocal %271 {approx = true} : vector<24x1xf32> -> vector<24x1xf32>
    %273 = vector.broadcast %272 : vector<24x1xf32> to vector<24x24xf32>
    %274 = arith.mulf %269, %273 : vector<24x24xf32>
    %275 = vector.extract_strided_slice %208 {offsets = [0, 24], sizes = [24, 8], strides = [1, 1]} : vector<24x32xf32> to vector<24x8xf32>
    %cst_83 = arith.constant dense<0.000000e+00> : vector<24x8xf32>
    %276 = tpu.matmul %274, %275, %cst_83 {dimension_numbers = #tpu.dot_dimension_numbers<[1], [0], [0], [1], [0, 0, 1, 1], [], []>} : vector<24x24xf32>, vector<24x8xf32>, vector<24x8xf32> -> vector<24x8xf32>
    %277 = tpu.concatenate %225, %242, %259, %276 in 1 : vector<24x8xf32>, vector<24x8xf32>, vector<24x8xf32>, vector<24x8xf32> -> vector<24x32xf32>
    %c1_84 = arith.constant 1 : index
    %c0_85 = arith.constant 0 : index
    %c0_86 = arith.constant 0 : index
    %278 = vector.load %arg6[%c1_84, %c0_85, %c0_86] : memref<3x32x32xf32, #tpu.memory_space<vmem>>, vector<1x32x32xf32>
    %279 = vector.shape_cast %278 : vector<1x32x32xf32> to vector<32x32xf32>
    %cst_87 = arith.constant dense<0.000000e+00> : vector<24x32xf32>
    %280 = tpu.matmul %277, %279, %cst_87 {dimension_numbers = #tpu.dot_dimension_numbers<[1], [0], [0], [1], [0, 0, 1, 1], [], []>} : vector<24x32xf32>, vector<32x32xf32>, vector<24x32xf32> -> vector<24x32xf32>
    %281 = arith.addf %166, %280 : vector<24x32xf32>
    %282 = vector.broadcast %172 : vector<1x32xf32> to vector<24x32xf32>
    %283 = arith.addf %281, %282 : vector<24x32xf32>
    %cst_88 = arith.constant dense<0.000000e+00> : vector<24xf32>
    %284 = vector.multi_reduction <add>, %283, %cst_88 [1] : vector<24x32xf32> to vector<24xf32>
    %285 = vector.shape_cast %284 : vector<24xf32> to vector<24x1xf32>
    %cst_89 = arith.constant 3.200000e+01 : f32
    %286 = vector.broadcast %cst_89 : f32 to vector<24x1xf32>
    %287 = arith.divf %285, %286 : vector<24x1xf32>
    %288 = vector.broadcast %287 : vector<24x1xf32> to vector<24x32xf32>
    %289 = arith.subf %283, %288 : vector<24x32xf32>
    %290 = arith.mulf %289, %289 : vector<24x32xf32>
    %cst_90 = arith.constant dense<0.000000e+00> : vector<24xf32>
    %291 = vector.multi_reduction <add>, %290, %cst_90 [1] : vector<24x32xf32> to vector<24xf32>
    %292 = vector.shape_cast %291 : vector<24xf32> to vector<24x1xf32>
    %cst_91 = arith.constant 3.200000e+01 : f32
    %293 = vector.broadcast %cst_91 : f32 to vector<24x1xf32>
    %294 = arith.divf %292, %293 : vector<24x1xf32>
    %295 = vector.broadcast %287 : vector<24x1xf32> to vector<24x32xf32>
    %296 = arith.subf %283, %295 : vector<24x32xf32>
    %cst_92 = arith.constant 9.99999974E-6 : f32
    %297 = vector.broadcast %cst_92 : f32 to vector<24x1xf32>
    %298 = arith.addf %294, %297 : vector<24x1xf32>
    %299 = math.rsqrt %298 : vector<24x1xf32>
    %300 = vector.broadcast %299 : vector<24x1xf32> to vector<24x32xf32>
    %301 = arith.mulf %296, %300 : vector<24x32xf32>
    %302 = vector.broadcast %173 : vector<1x32xf32> to vector<24x32xf32>
    %303 = arith.mulf %301, %302 : vector<24x32xf32>
    %304 = vector.broadcast %174 : vector<1x32xf32> to vector<24x32xf32>
    %305 = arith.addf %303, %304 : vector<24x32xf32>
    %c1_93 = arith.constant 1 : index
    %c0_94 = arith.constant 0 : index
    %c0_95 = arith.constant 0 : index
    %306 = vector.load %arg7[%c1_93, %c0_94, %c0_95] : memref<3x32x128xf32, #tpu.memory_space<vmem>>, vector<1x32x128xf32>
    %307 = vector.shape_cast %306 : vector<1x32x128xf32> to vector<32x128xf32>
    %cst_96 = arith.constant dense<0.000000e+00> : vector<24x128xf32>
    %308 = tpu.matmul %305, %307, %cst_96 {dimension_numbers = #tpu.dot_dimension_numbers<[1], [0], [0], [1], [0, 0, 1, 1], [], []>} : vector<24x32xf32>, vector<32x128xf32>, vector<24x128xf32> -> vector<24x128xf32>
    %309 = vector.broadcast %175 : vector<1x128xf32> to vector<24x128xf32>
    %310 = arith.addf %308, %309 : vector<24x128xf32>
    %cst_97 = arith.constant -1.702000e+00 : f32
    %311 = vector.broadcast %cst_97 : f32 to vector<24x128xf32>
    %312 = arith.mulf %311, %310 : vector<24x128xf32>
    %313 = math.exp %312 : vector<24x128xf32>
    %cst_98 = arith.constant 1.000000e+00 : f32
    %314 = vector.broadcast %cst_98 : f32 to vector<24x128xf32>
    %315 = arith.addf %314, %313 : vector<24x128xf32>
    %316 = tpu.reciprocal %315 {approx = true} : vector<24x128xf32> -> vector<24x128xf32>
    %317 = arith.mulf %310, %316 : vector<24x128xf32>
    %c1_99 = arith.constant 1 : index
    %c0_100 = arith.constant 0 : index
    %c0_101 = arith.constant 0 : index
    %318 = vector.load %arg8[%c1_99, %c0_100, %c0_101] : memref<3x128x32xf32, #tpu.memory_space<vmem>>, vector<1x128x32xf32>
    %319 = vector.shape_cast %318 : vector<1x128x32xf32> to vector<128x32xf32>
    %cst_102 = arith.constant dense<0.000000e+00> : vector<24x32xf32>
    %320 = tpu.matmul %317, %319, %cst_102 {dimension_numbers = #tpu.dot_dimension_numbers<[1], [0], [0], [1], [0, 0, 1, 1], [], []>} : vector<24x128xf32>, vector<128x32xf32>, vector<24x32xf32> -> vector<24x32xf32>
    %321 = vector.broadcast %176 : vector<1x32xf32> to vector<24x32xf32>
    %322 = arith.addf %320, %321 : vector<24x32xf32>
    %323 = arith.addf %283, %322 : vector<24x32xf32>
    %cst_103 = arith.constant 0.000000e+00 : f32
    %324 = vector.broadcast %cst_103 : f32 to vector<24x1xf32>
    %325 = arith.cmpf one, %1, %324 : vector<24x1xf32>
    %c1_104 = arith.constant 1 : index
    %c0_105 = arith.constant 0 : index
    %c0_106 = arith.constant 0 : index
    %326 = vector.load %arg1[%c1_104, %c0_105, %c0_106] : memref<2x24x32xf32, #tpu.memory_space<vmem>>, vector<1x24x32xf32>
    %327 = vector.shape_cast %326 : vector<1x24x32xf32> to vector<24x32xf32>
    %328 = vector.shape_cast %325 : vector<24x1xi1> to vector<24x1xi1>
    %329 = vector.broadcast %328 : vector<24x1xi1> to vector<24x32xi1>
    %330 = arith.select %329, %327, %323 : vector<24x32xi1>, vector<24x32xf32>
    %c2 = arith.constant 2 : index
    %c0_107 = arith.constant 0 : index
    %c0_108 = arith.constant 0 : index
    %331 = vector.load %arg4[%c2, %c0_107, %c0_108] : memref<3x8x128xf32, #tpu.memory_space<vmem>>, vector<1x8x128xf32>
    %332 = vector.shape_cast %331 : vector<1x8x128xf32> to vector<8x128xf32>
    %333 = vector.extract_strided_slice %332 {offsets = [0, 0], sizes = [1, 32], strides = [1, 1]} : vector<8x128xf32> to vector<1x32xf32>
    %334 = vector.extract_strided_slice %332 {offsets = [1, 0], sizes = [1, 32], strides = [1, 1]} : vector<8x128xf32> to vector<1x32xf32>
    %335 = vector.extract_strided_slice %332 {offsets = [2, 0], sizes = [1, 96], strides = [1, 1]} : vector<8x128xf32> to vector<1x96xf32>
    %336 = vector.extract_strided_slice %332 {offsets = [3, 0], sizes = [1, 32], strides = [1, 1]} : vector<8x128xf32> to vector<1x32xf32>
    %337 = vector.extract_strided_slice %332 {offsets = [4, 0], sizes = [1, 32], strides = [1, 1]} : vector<8x128xf32> to vector<1x32xf32>
    %338 = vector.extract_strided_slice %332 {offsets = [5, 0], sizes = [1, 32], strides = [1, 1]} : vector<8x128xf32> to vector<1x32xf32>
    %339 = vector.extract_strided_slice %332 {offsets = [6, 0], sizes = [1, 128], strides = [1, 1]} : vector<8x128xf32> to vector<1x128xf32>
    %340 = vector.extract_strided_slice %332 {offsets = [7, 0], sizes = [1, 32], strides = [1, 1]} : vector<8x128xf32> to vector<1x32xf32>
    %cst_109 = arith.constant dense<0.000000e+00> : vector<24xf32>
    %341 = vector.multi_reduction <add>, %330, %cst_109 [1] : vector<24x32xf32> to vector<24xf32>
    %342 = vector.shape_cast %341 : vector<24xf32> to vector<24x1xf32>
    %cst_110 = arith.constant 3.200000e+01 : f32
    %343 = vector.broadcast %cst_110 : f32 to vector<24x1xf32>
    %344 = arith.divf %342, %343 : vector<24x1xf32>
    %345 = vector.broadcast %344 : vector<24x1xf32> to vector<24x32xf32>
    %346 = arith.subf %330, %345 : vector<24x32xf32>
    %347 = arith.mulf %346, %346 : vector<24x32xf32>
    %cst_111 = arith.constant dense<0.000000e+00> : vector<24xf32>
    %348 = vector.multi_reduction <add>, %347, %cst_111 [1] : vector<24x32xf32> to vector<24xf32>
    %349 = vector.shape_cast %348 : vector<24xf32> to vector<24x1xf32>
    %cst_112 = arith.constant 3.200000e+01 : f32
    %350 = vector.broadcast %cst_112 : f32 to vector<24x1xf32>
    %351 = arith.divf %349, %350 : vector<24x1xf32>
    %352 = vector.broadcast %344 : vector<24x1xf32> to vector<24x32xf32>
    %353 = arith.subf %330, %352 : vector<24x32xf32>
    %cst_113 = arith.constant 9.99999974E-6 : f32
    %354 = vector.broadcast %cst_113 : f32 to vector<24x1xf32>
    %355 = arith.addf %351, %354 : vector<24x1xf32>
    %356 = math.rsqrt %355 : vector<24x1xf32>
    %357 = vector.broadcast %356 : vector<24x1xf32> to vector<24x32xf32>
    %358 = arith.mulf %353, %357 : vector<24x32xf32>
    %359 = vector.broadcast %333 : vector<1x32xf32> to vector<24x32xf32>
    %360 = arith.mulf %358, %359 : vector<24x32xf32>
    %361 = vector.broadcast %334 : vector<1x32xf32> to vector<24x32xf32>
    %362 = arith.addf %360, %361 : vector<24x32xf32>
    %c2_114 = arith.constant 2 : index
    %c0_115 = arith.constant 0 : index
    %c0_116 = arith.constant 0 : index
    %363 = vector.load %arg5[%c2_114, %c0_115, %c0_116] : memref<3x32x96xf32, #tpu.memory_space<vmem>>, vector<1x32x96xf32>
    %364 = vector.shape_cast %363 : vector<1x32x96xf32> to vector<32x96xf32>
    %cst_117 = arith.constant dense<0.000000e+00> : vector<24x96xf32>
    %365 = tpu.matmul %362, %364, %cst_117 {dimension_numbers = #tpu.dot_dimension_numbers<[1], [0], [0], [1], [0, 0, 1, 1], [], []>} : vector<24x32xf32>, vector<32x96xf32>, vector<24x96xf32> -> vector<24x96xf32>
    %366 = vector.broadcast %335 : vector<1x96xf32> to vector<24x96xf32>
    %367 = arith.addf %365, %366 : vector<24x96xf32>
    %368 = vector.extract_strided_slice %367 {offsets = [0, 0], sizes = [24, 32], strides = [1, 1]} : vector<24x96xf32> to vector<24x32xf32>
    %cst_118 = arith.constant 0.353553385 : f32
    %369 = vector.broadcast %cst_118 : f32 to vector<24x32xf32>
    %370 = arith.mulf %368, %369 : vector<24x32xf32>
    %371 = vector.extract_strided_slice %367 {offsets = [0, 32], sizes = [24, 32], strides = [1, 1]} : vector<24x96xf32> to vector<24x32xf32>
    %372 = vector.extract_strided_slice %367 {offsets = [0, 64], sizes = [24, 32], strides = [1, 1]} : vector<24x96xf32> to vector<24x32xf32>
    %373 = vector.extract_strided_slice %370 {offsets = [0, 0], sizes = [24, 8], strides = [1, 1]} : vector<24x32xf32> to vector<24x8xf32>
    %374 = vector.extract_strided_slice %371 {offsets = [0, 0], sizes = [24, 8], strides = [1, 1]} : vector<24x32xf32> to vector<24x8xf32>
    %375 = tpu.transpose %374, [1, 0] : vector<24x8xf32> -> vector<8x24xf32>
    %cst_119 = arith.constant dense<0.000000e+00> : vector<24x24xf32>
    %376 = tpu.matmul %373, %375, %cst_119 {dimension_numbers = #tpu.dot_dimension_numbers<[1], [0], [0], [1], [0, 0, 1, 1], [], []>} : vector<24x8xf32>, vector<8x24xf32>, vector<24x24xf32> -> vector<24x24xf32>
    %377 = arith.addf %376, %2 : vector<24x24xf32>
    %cst_120 = arith.constant dense<0xFF800000> : vector<24xf32>
    %378 = vector.multi_reduction <maximumf>, %377, %cst_120 [1] : vector<24x24xf32> to vector<24xf32>
    %379 = vector.shape_cast %378 : vector<24xf32> to vector<24x1xf32>
    %380 = vector.broadcast %379 : vector<24x1xf32> to vector<24x24xf32>
    %381 = arith.subf %377, %380 : vector<24x24xf32>
    %382 = math.exp %381 : vector<24x24xf32>
    %cst_121 = arith.constant dense<0.000000e+00> : vector<24xf32>
    %383 = vector.multi_reduction <add>, %382, %cst_121 [1] : vector<24x24xf32> to vector<24xf32>
    %384 = vector.shape_cast %383 : vector<24xf32> to vector<24x1xf32>
    %385 = tpu.reciprocal %384 {approx = true} : vector<24x1xf32> -> vector<24x1xf32>
    %386 = vector.broadcast %385 : vector<24x1xf32> to vector<24x24xf32>
    %387 = arith.mulf %382, %386 : vector<24x24xf32>
    %388 = vector.extract_strided_slice %372 {offsets = [0, 0], sizes = [24, 8], strides = [1, 1]} : vector<24x32xf32> to vector<24x8xf32>
    %cst_122 = arith.constant dense<0.000000e+00> : vector<24x8xf32>
    %389 = tpu.matmul %387, %388, %cst_122 {dimension_numbers = #tpu.dot_dimension_numbers<[1], [0], [0], [1], [0, 0, 1, 1], [], []>} : vector<24x24xf32>, vector<24x8xf32>, vector<24x8xf32> -> vector<24x8xf32>
    %390 = vector.extract_strided_slice %370 {offsets = [0, 8], sizes = [24, 8], strides = [1, 1]} : vector<24x32xf32> to vector<24x8xf32>
    %391 = vector.extract_strided_slice %371 {offsets = [0, 8], sizes = [24, 8], strides = [1, 1]} : vector<24x32xf32> to vector<24x8xf32>
    %392 = tpu.transpose %391, [1, 0] : vector<24x8xf32> -> vector<8x24xf32>
    %cst_123 = arith.constant dense<0.000000e+00> : vector<24x24xf32>
    %393 = tpu.matmul %390, %392, %cst_123 {dimension_numbers = #tpu.dot_dimension_numbers<[1], [0], [0], [1], [0, 0, 1, 1], [], []>} : vector<24x8xf32>, vector<8x24xf32>, vector<24x24xf32> -> vector<24x24xf32>
    %394 = arith.addf %393, %2 : vector<24x24xf32>
    %cst_124 = arith.constant dense<0xFF800000> : vector<24xf32>
    %395 = vector.multi_reduction <maximumf>, %394, %cst_124 [1] : vector<24x24xf32> to vector<24xf32>
    %396 = vector.shape_cast %395 : vector<24xf32> to vector<24x1xf32>
    %397 = vector.broadcast %396 : vector<24x1xf32> to vector<24x24xf32>
    %398 = arith.subf %394, %397 : vector<24x24xf32>
    %399 = math.exp %398 : vector<24x24xf32>
    %cst_125 = arith.constant dense<0.000000e+00> : vector<24xf32>
    %400 = vector.multi_reduction <add>, %399, %cst_125 [1] : vector<24x24xf32> to vector<24xf32>
    %401 = vector.shape_cast %400 : vector<24xf32> to vector<24x1xf32>
    %402 = tpu.reciprocal %401 {approx = true} : vector<24x1xf32> -> vector<24x1xf32>
    %403 = vector.broadcast %402 : vector<24x1xf32> to vector<24x24xf32>
    %404 = arith.mulf %399, %403 : vector<24x24xf32>
    %405 = vector.extract_strided_slice %372 {offsets = [0, 8], sizes = [24, 8], strides = [1, 1]} : vector<24x32xf32> to vector<24x8xf32>
    %cst_126 = arith.constant dense<0.000000e+00> : vector<24x8xf32>
    %406 = tpu.matmul %404, %405, %cst_126 {dimension_numbers = #tpu.dot_dimension_numbers<[1], [0], [0], [1], [0, 0, 1, 1], [], []>} : vector<24x24xf32>, vector<24x8xf32>, vector<24x8xf32> -> vector<24x8xf32>
    %407 = vector.extract_strided_slice %370 {offsets = [0, 16], sizes = [24, 8], strides = [1, 1]} : vector<24x32xf32> to vector<24x8xf32>
    %408 = vector.extract_strided_slice %371 {offsets = [0, 16], sizes = [24, 8], strides = [1, 1]} : vector<24x32xf32> to vector<24x8xf32>
    %409 = tpu.transpose %408, [1, 0] : vector<24x8xf32> -> vector<8x24xf32>
    %cst_127 = arith.constant dense<0.000000e+00> : vector<24x24xf32>
    %410 = tpu.matmul %407, %409, %cst_127 {dimension_numbers = #tpu.dot_dimension_numbers<[1], [0], [0], [1], [0, 0, 1, 1], [], []>} : vector<24x8xf32>, vector<8x24xf32>, vector<24x24xf32> -> vector<24x24xf32>
    %411 = arith.addf %410, %2 : vector<24x24xf32>
    %cst_128 = arith.constant dense<0xFF800000> : vector<24xf32>
    %412 = vector.multi_reduction <maximumf>, %411, %cst_128 [1] : vector<24x24xf32> to vector<24xf32>
    %413 = vector.shape_cast %412 : vector<24xf32> to vector<24x1xf32>
    %414 = vector.broadcast %413 : vector<24x1xf32> to vector<24x24xf32>
    %415 = arith.subf %411, %414 : vector<24x24xf32>
    %416 = math.exp %415 : vector<24x24xf32>
    %cst_129 = arith.constant dense<0.000000e+00> : vector<24xf32>
    %417 = vector.multi_reduction <add>, %416, %cst_129 [1] : vector<24x24xf32> to vector<24xf32>
    %418 = vector.shape_cast %417 : vector<24xf32> to vector<24x1xf32>
    %419 = tpu.reciprocal %418 {approx = true} : vector<24x1xf32> -> vector<24x1xf32>
    %420 = vector.broadcast %419 : vector<24x1xf32> to vector<24x24xf32>
    %421 = arith.mulf %416, %420 : vector<24x24xf32>
    %422 = vector.extract_strided_slice %372 {offsets = [0, 16], sizes = [24, 8], strides = [1, 1]} : vector<24x32xf32> to vector<24x8xf32>
    %cst_130 = arith.constant dense<0.000000e+00> : vector<24x8xf32>
    %423 = tpu.matmul %421, %422, %cst_130 {dimension_numbers = #tpu.dot_dimension_numbers<[1], [0], [0], [1], [0, 0, 1, 1], [], []>} : vector<24x24xf32>, vector<24x8xf32>, vector<24x8xf32> -> vector<24x8xf32>
    %424 = vector.extract_strided_slice %370 {offsets = [0, 24], sizes = [24, 8], strides = [1, 1]} : vector<24x32xf32> to vector<24x8xf32>
    %425 = vector.extract_strided_slice %371 {offsets = [0, 24], sizes = [24, 8], strides = [1, 1]} : vector<24x32xf32> to vector<24x8xf32>
    %426 = tpu.transpose %425, [1, 0] : vector<24x8xf32> -> vector<8x24xf32>
    %cst_131 = arith.constant dense<0.000000e+00> : vector<24x24xf32>
    %427 = tpu.matmul %424, %426, %cst_131 {dimension_numbers = #tpu.dot_dimension_numbers<[1], [0], [0], [1], [0, 0, 1, 1], [], []>} : vector<24x8xf32>, vector<8x24xf32>, vector<24x24xf32> -> vector<24x24xf32>
    %428 = arith.addf %427, %2 : vector<24x24xf32>
    %cst_132 = arith.constant dense<0xFF800000> : vector<24xf32>
    %429 = vector.multi_reduction <maximumf>, %428, %cst_132 [1] : vector<24x24xf32> to vector<24xf32>
    %430 = vector.shape_cast %429 : vector<24xf32> to vector<24x1xf32>
    %431 = vector.broadcast %430 : vector<24x1xf32> to vector<24x24xf32>
    %432 = arith.subf %428, %431 : vector<24x24xf32>
    %433 = math.exp %432 : vector<24x24xf32>
    %cst_133 = arith.constant dense<0.000000e+00> : vector<24xf32>
    %434 = vector.multi_reduction <add>, %433, %cst_133 [1] : vector<24x24xf32> to vector<24xf32>
    %435 = vector.shape_cast %434 : vector<24xf32> to vector<24x1xf32>
    %436 = tpu.reciprocal %435 {approx = true} : vector<24x1xf32> -> vector<24x1xf32>
    %437 = vector.broadcast %436 : vector<24x1xf32> to vector<24x24xf32>
    %438 = arith.mulf %433, %437 : vector<24x24xf32>
    %439 = vector.extract_strided_slice %372 {offsets = [0, 24], sizes = [24, 8], strides = [1, 1]} : vector<24x32xf32> to vector<24x8xf32>
    %cst_134 = arith.constant dense<0.000000e+00> : vector<24x8xf32>
    %440 = tpu.matmul %438, %439, %cst_134 {dimension_numbers = #tpu.dot_dimension_numbers<[1], [0], [0], [1], [0, 0, 1, 1], [], []>} : vector<24x24xf32>, vector<24x8xf32>, vector<24x8xf32> -> vector<24x8xf32>
    %441 = tpu.concatenate %389, %406, %423, %440 in 1 : vector<24x8xf32>, vector<24x8xf32>, vector<24x8xf32>, vector<24x8xf32> -> vector<24x32xf32>
    %c2_135 = arith.constant 2 : index
    %c0_136 = arith.constant 0 : index
    %c0_137 = arith.constant 0 : index
    %442 = vector.load %arg6[%c2_135, %c0_136, %c0_137] : memref<3x32x32xf32, #tpu.memory_space<vmem>>, vector<1x32x32xf32>
    %443 = vector.shape_cast %442 : vector<1x32x32xf32> to vector<32x32xf32>
    %cst_138 = arith.constant dense<0.000000e+00> : vector<24x32xf32>
    %444 = tpu.matmul %441, %443, %cst_138 {dimension_numbers = #tpu.dot_dimension_numbers<[1], [0], [0], [1], [0, 0, 1, 1], [], []>} : vector<24x32xf32>, vector<32x32xf32>, vector<24x32xf32> -> vector<24x32xf32>
    %445 = arith.addf %330, %444 : vector<24x32xf32>
    %446 = vector.broadcast %336 : vector<1x32xf32> to vector<24x32xf32>
    %447 = arith.addf %445, %446 : vector<24x32xf32>
    %cst_139 = arith.constant dense<0.000000e+00> : vector<24xf32>
    %448 = vector.multi_reduction <add>, %447, %cst_139 [1] : vector<24x32xf32> to vector<24xf32>
    %449 = vector.shape_cast %448 : vector<24xf32> to vector<24x1xf32>
    %cst_140 = arith.constant 3.200000e+01 : f32
    %450 = vector.broadcast %cst_140 : f32 to vector<24x1xf32>
    %451 = arith.divf %449, %450 : vector<24x1xf32>
    %452 = vector.broadcast %451 : vector<24x1xf32> to vector<24x32xf32>
    %453 = arith.subf %447, %452 : vector<24x32xf32>
    %454 = arith.mulf %453, %453 : vector<24x32xf32>
    %cst_141 = arith.constant dense<0.000000e+00> : vector<24xf32>
    %455 = vector.multi_reduction <add>, %454, %cst_141 [1] : vector<24x32xf32> to vector<24xf32>
    %456 = vector.shape_cast %455 : vector<24xf32> to vector<24x1xf32>
    %cst_142 = arith.constant 3.200000e+01 : f32
    %457 = vector.broadcast %cst_142 : f32 to vector<24x1xf32>
    %458 = arith.divf %456, %457 : vector<24x1xf32>
    %459 = vector.broadcast %451 : vector<24x1xf32> to vector<24x32xf32>
    %460 = arith.subf %447, %459 : vector<24x32xf32>
    %cst_143 = arith.constant 9.99999974E-6 : f32
    %461 = vector.broadcast %cst_143 : f32 to vector<24x1xf32>
    %462 = arith.addf %458, %461 : vector<24x1xf32>
    %463 = math.rsqrt %462 : vector<24x1xf32>
    %464 = vector.broadcast %463 : vector<24x1xf32> to vector<24x32xf32>
    %465 = arith.mulf %460, %464 : vector<24x32xf32>
    %466 = vector.broadcast %337 : vector<1x32xf32> to vector<24x32xf32>
    %467 = arith.mulf %465, %466 : vector<24x32xf32>
    %468 = vector.broadcast %338 : vector<1x32xf32> to vector<24x32xf32>
    %469 = arith.addf %467, %468 : vector<24x32xf32>
    %c2_144 = arith.constant 2 : index
    %c0_145 = arith.constant 0 : index
    %c0_146 = arith.constant 0 : index
    %470 = vector.load %arg7[%c2_144, %c0_145, %c0_146] : memref<3x32x128xf32, #tpu.memory_space<vmem>>, vector<1x32x128xf32>
    %471 = vector.shape_cast %470 : vector<1x32x128xf32> to vector<32x128xf32>
    %cst_147 = arith.constant dense<0.000000e+00> : vector<24x128xf32>
    %472 = tpu.matmul %469, %471, %cst_147 {dimension_numbers = #tpu.dot_dimension_numbers<[1], [0], [0], [1], [0, 0, 1, 1], [], []>} : vector<24x32xf32>, vector<32x128xf32>, vector<24x128xf32> -> vector<24x128xf32>
    %473 = vector.broadcast %339 : vector<1x128xf32> to vector<24x128xf32>
    %474 = arith.addf %472, %473 : vector<24x128xf32>
    %cst_148 = arith.constant -1.702000e+00 : f32
    %475 = vector.broadcast %cst_148 : f32 to vector<24x128xf32>
    %476 = arith.mulf %475, %474 : vector<24x128xf32>
    %477 = math.exp %476 : vector<24x128xf32>
    %cst_149 = arith.constant 1.000000e+00 : f32
    %478 = vector.broadcast %cst_149 : f32 to vector<24x128xf32>
    %479 = arith.addf %478, %477 : vector<24x128xf32>
    %480 = tpu.reciprocal %479 {approx = true} : vector<24x128xf32> -> vector<24x128xf32>
    %481 = arith.mulf %474, %480 : vector<24x128xf32>
    %c2_150 = arith.constant 2 : index
    %c0_151 = arith.constant 0 : index
    %c0_152 = arith.constant 0 : index
    %482 = vector.load %arg8[%c2_150, %c0_151, %c0_152] : memref<3x128x32xf32, #tpu.memory_space<vmem>>, vector<1x128x32xf32>
    %483 = vector.shape_cast %482 : vector<1x128x32xf32> to vector<128x32xf32>
    %cst_153 = arith.constant dense<0.000000e+00> : vector<24x32xf32>
    %484 = tpu.matmul %481, %483, %cst_153 {dimension_numbers = #tpu.dot_dimension_numbers<[1], [0], [0], [1], [0, 0, 1, 1], [], []>} : vector<24x128xf32>, vector<128x32xf32>, vector<24x32xf32> -> vector<24x32xf32>
    %485 = vector.broadcast %340 : vector<1x32xf32> to vector<24x32xf32>
    %486 = arith.addf %484, %485 : vector<24x32xf32>
    %487 = arith.addf %447, %486 : vector<24x32xf32>
    %c0_154 = arith.constant 0 : index
    %c0_155 = arith.constant 0 : index
    %488 = vector.load %arg9[%c0_154, %c0_155] : memref<24x32xf32, #tpu.memory_space<vmem>>, vector<24x32xf32>
    tpu.vector_store %arg9[%c0_154, %c0_155], %487 {strides = array<i32>} : memref<24x32xf32, #tpu.memory_space<vmem>>, vector<24x32xf32>,
    return
  }
}

</mosaic_0001>

<llo_original>
// kernel: prompt_encoder_forward.1
$region0: #{prompt_encoder_forward.1}
  #allocation0 [shape = 'u32[]', space=smem, size = 0x4, offset = 0x4, fixed_abs, tag = 'smem constant byte address 0x4 - core index']
  #allocation1 [shape = 'u32[72,128]{1,0:T(1,128)}', space=vmem, size = 0x9000, scoped, tag = 'internal scratch']
  %s0 = inlined_call_operand.vmem [shape: f32[24,32], index: 0, kind: input, shape index: {}]
  %s1 = inlined_call_operand.vmem [shape: f32[2,24,32], index: 1, kind: input, shape index: {}]
  %s2 = inlined_call_operand.vmem [shape: f32[24,1], index: 2, kind: input, shape index: {}]
  %s3 = inlined_call_operand.vmem [shape: f32[24,24], index: 3, kind: input, shape index: {}]
  %s4 = inlined_call_operand.vmem [shape: f32[3,8,128], index: 4, kind: input, shape index: {}]
  %s5 = inlined_call_operand.vmem [shape: f32[3,32,96], index: 5, kind: input, shape index: {}]
  %s6 = inlined_call_operand.vmem [shape: f32[3,32,32], index: 6, kind: input, shape index: {}]
  %s7 = inlined_call_operand.vmem [shape: f32[3,32,128], index: 7, kind: input, shape index: {}]
  %s8 = inlined_call_operand.vmem [shape: f32[3,128,32], index: 8, kind: input, shape index: {}]
  %s9 = inlined_call_operand.vmem [shape: f32[24,32], index: 9, kind: output, shape index: {}]
  %s10 = sld [smem:[#allocation0]]
  $region46: #{prompt_encoder_forward.1} parent=0
    _
  %s12 = ssub.s32 1, %s10
  %s13 = scalar_select 0, %s12, %s10
  // Predicated region
  $region2: #{prompt_encoder_forward.1} parent=0 // pred_check
    _
  $region3: #{prompt_encoder_forward.1} parent=0 // pred_check_branch
    %15 = sbr.rel (0) target = $region5
  $region4: #{prompt_encoder_forward.1} parent=0 // pred_region
    _
  $region5: #{prompt_encoder_forward.1} parent=0 // pred_fallthru
    _
  // Predicated region
  $region6: #{prompt_encoder_forward.1} parent=0 // pred_check
    _
  $region7: #{prompt_encoder_forward.1} parent=0 // pred_check_branch
    %17 = sbr.rel (0) target = $region9
  $region8: #{prompt_encoder_forward.1} parent=0 // pred_region
    _
  $region9: #{prompt_encoder_forward.1} parent=0 // pred_fallthru
    _
  // Predicated region
  $region10: #{prompt_encoder_forward.1} parent=0 // pred_check
    _
  $region11: #{prompt_encoder_forward.1} parent=0 // pred_check_branch
    %19 = sbr.rel (0) target = $region13
  $region12: #{prompt_encoder_forward.1} parent=0 // pred_region
    _
  $region13: #{prompt_encoder_forward.1} parent=0 // pred_fallthru
    _
  // Predicated region
  $region14: #{prompt_encoder_forward.1} parent=0 // pred_check
    _
  $region15: #{prompt_encoder_forward.1} parent=0 // pred_check_branch
    %21 = sbr.rel (0) target = $region17
  $region16: #{prompt_encoder_forward.1} parent=0 // pred_region
    _
  $region17: #{prompt_encoder_forward.1} parent=0 // pred_fallthru
    _
  // Predicated region
  $region18: #{prompt_encoder_forward.1} parent=0 // pred_check
    _
  $region19: #{prompt_encoder_forward.1} parent=0 // pred_check_branch
    %23 = sbr.rel (0) target = $region21
  $region20: #{prompt_encoder_forward.1} parent=0 // pred_region
    _
  $region21: #{prompt_encoder_forward.1} parent=0 // pred_fallthru
    _
  // Predicated region
  $region22: #{prompt_encoder_forward.1} parent=0 // pred_check
    _
  $region23: #{prompt_encoder_forward.1} parent=0 // pred_check_branch
    %25 = sbr.rel (0) target = $region25
  $region24: #{prompt_encoder_forward.1} parent=0 // pred_region
    _
  $region25: #{prompt_encoder_forward.1} parent=0 // pred_fallthru
    _
  // Predicated region
  $region26: #{prompt_encoder_forward.1} parent=0 // pred_check
    _
  $region27: #{prompt_encoder_forward.1} parent=0 // pred_check_branch
    %27 = sbr.rel (0) target = $region29
  $region28: #{prompt_encoder_forward.1} parent=0 // pred_region
    _
  $region29: #{prompt_encoder_forward.1} parent=0 // pred_fallthru
    _
  // Predicated region
  $region30: #{prompt_encoder_forward.1} parent=0 // pred_check
    _
  $region31: #{prompt_encoder_forward.1} parent=0 // pred_check_branch
    %29 = sbr.rel (0) target = $region33
  $region32: #{prompt_encoder_forward.1} parent=0 // pred_region
    _
  $region33: #{prompt_encoder_forward.1} parent=0 // pred_fallthru
    _
  // Predicated region
  $region34: #{prompt_encoder_forward.1} parent=0 // pred_check
    _
  $region35: #{prompt_encoder_forward.1} parent=0 // pred_check_branch
    %31 = sbr.rel (0) target = $region37
  $region36: #{prompt_encoder_forward.1} parent=0 // pred_region
    _
  $region37: #{prompt_encoder_forward.1} parent=0 // pred_fallthru
    _
  %v32 = vld [vmem:[%s0] sm:$0xff]
  %v33 = vld [vmem:[%s0 + $0x8] sm:$0xff]
  %v34 = vld [vmem:[%s0 + $0x10] sm:$0xff]
  %v35 = vld [vmem:[%s2] sm:$0xff]
  %v36 = vld [vmem:[%s2 + $0x8] sm:$0xff]
  %v37 = vld [vmem:[%s2 + $0x10] sm:$0xff]
  %v38 = vld [vmem:[%s3] sm:$0xff]
  %v39 = vld [vmem:[%s3 + $0x8] sm:$0xff]
  %v40 = vld [vmem:[%s3 + $0x10] sm:$0xff]
  %v41 = vld [vmem:[%s4] sm:$0xff]
  %vm42 = vcmask 261120
  %v43 = vsel %vm42, %v32, 0.0
  %44 = vadd.xlane.f32.xlu0 %v43
  %v45 = vpop.xlane.xlu0 %44
  %v46 = vsel %vm42, %v33, 0.0
  %47 = vadd.xlane.f32.xlu0 %v46
  %v48 = vpop.xlane.xlu0 %47
  %v49 = vsel %vm42, %v34, 0.0
  %50 = vadd.xlane.f32.xlu0 %v49
  %v51 = vpop.xlane.xlu0 %50
  %v52 = vrcp.pop 32.0
  %v53 = vmul.f32 32.0, %v52
  %v54 = vsub.f32 1.0, %v53
  %v55 = vmul.f32 %v52, %v54
  %v56 = vadd.f32 %v52, %v55
  %vm57 = vweird.f32 %v52
  %v58 = vsel %vm57, %v52, %v56
  %v59 = vmul.f32 %v45, %v58
  %v60 = vmul.f32 %v48, %v58
  %v61 = vmul.f32 %v51, %v58
  %v62 = vsub.f32 %v32, %v59
  %v63 = vsub.f32 %v33, %v60
  %v64 = vsub.f32 %v34, %v61
  %v65 = vmul.f32 %v62, %v62
  %v66 = vmul.f32 %v63, %v63
  %v67 = vmul.f32 %v64, %v64
  %v68 = vsel %vm42, %v65, 0.0
  %69 = vadd.xlane.f32.xlu0 %v68
  %v70 = vpop.xlane.xlu0 %69
  %v71 = vsel %vm42, %v66, 0.0
  %72 = vadd.xlane.f32.xlu0 %v71
  %v73 = vpop.xlane.xlu0 %72
  %v74 = vsel %vm42, %v67, 0.0
  %75 = vadd.xlane.f32.xlu0 %v74
  %v76 = vpop.xlane.xlu0 %75
  %v77 = vmul.f32 %v70, %v58
  %v78 = vmul.f32 %v73, %v58
  %v79 = vmul.f32 %v76, %v58
  %v80 = vadd.f32 %v77, 1e-05
  %v81 = vadd.f32 %v78, 1e-05
  %v82 = vadd.f32 %v79, 1e-05
  %v83 = vrsqrt.pop %v80
  %v84 = vmul.f32 %v83, %v80
  %v85 = vmul.f32 %v84, %v83
  %v86 = vmul.f32 0.5, %v85
  %v87 = vsub.f32 1.5, %v86
  %v88 = vmul.f32 %v83, %v87
  %vm89 = vweird.f32 %v80
  %vm90 = vweird.f32 %v83
  %vm91 = vmor %vm89, %vm90
  %v92 = vsel %vm91, %v83, %v88
  %v93 = vrsqrt.pop %v81
  %v94 = vmul.f32 %v93, %v81
  %v95 = vmul.f32 %v94, %v93
  %v96 = vmul.f32 0.5, %v95
  %v97 = vsub.f32 1.5, %v96
  %v98 = vmul.f32 %v93, %v97
  %vm99 = vweird.f32 %v81
  %vm100 = vweird.f32 %v93
  %vm101 = vmor %vm99, %vm100
  %v102 = vsel %vm101, %v93, %v98
  %v103 = vrsqrt.pop %v82
  %v104 = vmul.f32 %v103, %v82
  %v105 = vmul.f32 %v104, %v103
  %v106 = vmul.f32 0.5, %v105
  %v107 = vsub.f32 1.5, %v106
  %v108 = vmul.f32 %v103, %v107
  %vm109 = vweird.f32 %v82
  %vm110 = vweird.f32 %v103
  %vm111 = vmor %vm109, %vm110
  %v112 = vsel %vm111, %v103, %v108
  %v113 = vmul.f32 %v62, %v92
  %v114 = vmul.f32 %v63, %v102
  %v115 = vmul.f32 %v64, %v112
  %v116 = vperm.slane %v41, 0
  %v117 = vmul.f32 %v113, %v116
  %v118 = vmul.f32 %v114, %v116
  %v119 = vmul.f32 %v115, %v116
  %v120 = vperm.slane %v41, 1
  %v121 = vadd.f32 %v117, %v120
  %v122 = vadd.f32 %v118, %v120
  %v123 = vadd.f32 %v119, %v120
  %v124 = vld [vmem:[%s5] sm:$0xff]
  %v125 = vld [vmem:[%s5 + $0x8] sm:$0xff]
  %v126 = vld [vmem:[%s5 + $0x10] sm:$0xff]
  %v127 = vld [vmem:[%s5 + $0x18] sm:$0xff]
  %v128 = vperm.slane %v41, 2
  %v130 = vsel %vm42, %v121, 0
  %v133 = vsel %vm42, %v122, 0
  %v136 = vsel %vm42, %v123, 0
  %138 = vmatpush.msra.mxu0 0.0
  %139 = vmatpush.msra.mxu0 0.0
  %140 = vmatpush.msra.mxu0 0.0
  %141 = vmatpush.msra.mxu0 0.0
  %142 = vmatpush.msra.mxu0 0.0
  %143 = vmatpush.msra.mxu0 0.0
  %144 = vmatpush.msra.mxu0 0.0
  %145 = vmatpush.msra.mxu0 0.0
  %146 = vmatpush.msra.mxu0 0.0
  %147 = vmatpush.msra.mxu0 0.0
  %148 = vmatpush.msra.mxu0 0.0
  %149 = vmatpush.msra.mxu0 0.0
  %150 = vmatpush.msra.mxu0 %v127
  %151 = vmatpush.msra.mxu0 %v126
  %152 = vmatpush.msra.mxu0 %v125
  %153 = vmatpush.msra.mxu0 %v124
  %154 = vmatmul.f32.gmra.mxu0 %v130
  %v155 = vpop.f32.mrf.mxu0
  %v156 = vadd.f32 %v128, %v155
  %157 = vmatmul.f32.gmra.mxu0 %v133
  %v158 = vpop.f32.mrf.mxu0
  %v159 = vadd.f32 %v128, %v158
  %160 = vmatmul.f32.gmra.mxu0 %v136
  %v161 = vpop.f32.mrf.mxu0
  %v162 = vadd.f32 %v128, %v161
  %163 = vdwg.mxu0
  %v164 = vmul.f32 %v156, 0.35355338
  %v165 = vmul.f32 %v159, 0.35355338
  %v166 = vmul.f32 %v162, 0.35355338
  %170 = vrot.lane.b32.xlu0 %v156, 96
  %v171 = vpop.permute.xlu0 %170
  %172 = vrot.lane.b32.xlu0 %v159, 96
  %v173 = vpop.permute.xlu0 %172
  %174 = vrot.lane.b32.xlu0 %v162, 96
  %v175 = vpop.permute.xlu0 %174
  %vm176 = vcmask 64512
  %v178 = vsel %vm176, %v164, 0
  %v181 = vsel %vm176, %v165, 0
  %v184 = vsel %vm176, %v166, 0
  %v186 = vsel %vm176, %v171, 0
  %v188 = vsel %vm176, %v173, 0
  %v190 = vsel %vm176, %v175, 0
  %192 = vmatpush.xpose.msra.mxu0 0.0
  %193 = vmatpush.xpose.msra.mxu0 0.0
  %194 = vmatpush.xpose.msra.mxu0 0.0
  %195 = vmatpush.xpose.msra.mxu0 0.0
  %196 = vmatpush.xpose.msra.mxu0 0.0
  %197 = vmatpush.xpose.msra.mxu0 0.0
  %198 = vmatpush.xpose.msra.mxu0 0.0
  %199 = vmatpush.xpose.msra.mxu0 0.0
  %200 = vmatpush.xpose.msra.mxu0 0.0
  %201 = vmatpush.xpose.msra.mxu0 0.0
  %202 = vmatpush.xpose.msra.mxu0 0.0
  %203 = vmatpush.xpose.msra.mxu0 0.0
  %204 = vmatpush.xpose.msra.mxu0 0.0
  %205 = vmatpush.xpose.msra.mxu0 %v190
  %206 = vmatpush.xpose.msra.mxu0 %v188
  %207 = vmatpush.xpose.msra.mxu0 %v186
  %208 = vmatmul.f32.gmra.mxu0 %v178
  %v209 = vpop.f32.mrf.mxu0
  %v210 = vadd.f32 %v38, %v209
  %211 = vmatmul.f32.gmra.mxu0 %v181
  %v212 = vpop.f32.mrf.mxu0
  %v213 = vadd.f32 %v39, %v212
  %214 = vmatmul.f32.gmra.mxu0 %v184
  %v215 = vpop.f32.mrf.mxu0
  %v216 = vadd.f32 %v40, %v215
  %217 = vdwg.mxu0
  %vm218 = vcmask 195584
  %v219 = vsel %vm218, %v210, -inf
  %220 = vmax.xlane.f32.xlu0 %v219
  %v221 = vpop.xlane.xlu0 %220
  %v222 = vsel %vm218, %v213, -inf
  %223 = vmax.xlane.f32.xlu0 %v222
  %v224 = vpop.xlane.xlu0 %223
  %v225 = vsel %vm218, %v216, -inf
  %226 = vmax.xlane.f32.xlu0 %v225
  %v227 = vpop.xlane.xlu0 %226
  %v228 = vsub.f32 %v210, %v221
  %v229 = vsub.f32 %v213, %v224
  %v230 = vsub.f32 %v216, %v227
  %v231 = vmul.f32 %v228, 1.442695
  %v232 = vpow.pop %v231
  %v233 = vmul.f32 %v229, 1.442695
  %v234 = vpow.pop %v233
  %v235 = vmul.f32 %v230, 1.442695
  %v236 = vpow.pop %v235
  %v237 = vsel %vm218, %v232, 0.0
  %238 = vadd.xlane.f32.xlu0 %v237
  %v239 = vpop.xlane.xlu0 %238
  %v240 = vsel %vm218, %v234, 0.0
  %241 = vadd.xlane.f32.xlu0 %v240
  %v242 = vpop.xlane.xlu0 %241
  %v243 = vsel %vm218, %v236, 0.0
  %244 = vadd.xlane.f32.xlu0 %v243
  %v245 = vpop.xlane.xlu0 %244
  %v246 = vrcp.pop %v239
  %v247 = vrcp.pop %v242
  %v248 = vrcp.pop %v245
  %v249 = vmul.f32 %v232, %v246
  %v250 = vmul.f32 %v234, %v247
  %v251 = vmul.f32 %v236, %v248
  %252 = vrot.lane.b32.xlu0 %v156, 64
  %v253 = vpop.permute.xlu0 %252
  %254 = vrot.lane.b32.xlu0 %v159, 64
  %v255 = vpop.permute.xlu0 %254
  %256 = vrot.lane.b32.xlu0 %v162, 64
  %v257 = vpop.permute.xlu0 %256
  %v262 = vsel %vm218, %v249, 0
  %v265 = vsel %vm218, %v250, 0
  %v268 = vsel %vm218, %v251, 0
  %270 = vmatpush.msra.mxu0 0.0
  %271 = vmatpush.msra.mxu0 0.0
  %272 = vmatpush.msra.mxu0 0.0
  %273 = vmatpush.msra.mxu0 0.0
  %274 = vmatpush.msra.mxu0 0.0
  %275 = vmatpush.msra.mxu0 0.0
  %276 = vmatpush.msra.mxu0 0.0
  %277 = vmatpush.msra.mxu0 0.0
  %278 = vmatpush.msra.mxu0 0.0
  %279 = vmatpush.msra.mxu0 0.0
  %280 = vmatpush.msra.mxu0 0.0
  %281 = vmatpush.msra.mxu0 0.0
  %282 = vmatpush.msra.mxu0 0.0
  %283 = vmatpush.msra.mxu0 %v257
  %284 = vmatpush.msra.mxu0 %v255
  %285 = vmatpush.msra.mxu0 %v253
  %286 = vmatmul.f32.gmra.mxu0 %v262
  %v287 = vpop.f32.mrf.mxu0
  %v288 = vadd.f32 0.0, %v287
  %289 = vmatmul.f32.gmra.mxu0 %v265
  %v290 = vpop.f32.mrf.mxu0
  %v291 = vadd.f32 0.0, %v290
  %292 = vmatmul.f32.gmra.mxu0 %v268
  %v293 = vpop.f32.mrf.mxu0
  %v294 = vadd.f32 0.0, %v293
  %295 = vdwg.mxu0
  %296 = vrot.lane.b32.xlu0 %v164, 120
  %v297 = vpop.permute.xlu0 %296
  %298 = vrot.lane.b32.xlu0 %v165, 120
  %v299 = vpop.permute.xlu0 %298
  %300 = vrot.lane.b32.xlu0 %v166, 120
  %v301 = vpop.permute.xlu0 %300
  %302 = vrot.lane.b32.xlu0 %v156, 88
  %v303 = vpop.permute.xlu0 %302
  %304 = vrot.lane.b32.xlu0 %v159, 88
  %v305 = vpop.permute.xlu0 %304
  %306 = vrot.lane.b32.xlu0 %v162, 88
  %v307 = vpop.permute.xlu0 %306
  %v308 = vsel %vm176, %v297, 0
  %v310 = vsel %vm176, %v299, 0
  %v312 = vsel %vm176, %v301, 0
  %v314 = vsel %vm176, %v303, 0
  %v316 = vsel %vm176, %v305, 0
  %v318 = vsel %vm176, %v307, 0
  %320 = vmatpush.xpose.msra.mxu0 0.0
  %321 = vmatpush.xpose.msra.mxu0 0.0
  %322 = vmatpush.xpose.msra.mxu0 0.0
  %323 = vmatpush.xpose.msra.mxu0 0.0
  %324 = vmatpush.xpose.msra.mxu0 0.0
  %325 = vmatpush.xpose.msra.mxu0 0.0
  %326 = vmatpush.xpose.msra.mxu0 0.0
  %327 = vmatpush.xpose.msra.mxu0 0.0
  %328 = vmatpush.xpose.msra.mxu0 0.0
  %329 = vmatpush.xpose.msra.mxu0 0.0
  %330 = vmatpush.xpose.msra.mxu0 0.0
  %331 = vmatpush.xpose.msra.mxu0 0.0
  %332 = vmatpush.xpose.msra.mxu0 0.0
  %333 = vmatpush.xpose.msra.mxu0 %v318
  %334 = vmatpush.xpose.msra.mxu0 %v316
  %335 = vmatpush.xpose.msra.mxu0 %v314
  %336 = vmatmul.f32.gmra.mxu0 %v308
  %v337 = vpop.f32.mrf.mxu0
  %v338 = vadd.f32 %v38, %v337
  %339 = vmatmul.f32.gmra.mxu0 %v310
  %v340 = vpop.f32.mrf.mxu0
  %v341 = vadd.f32 %v39, %v340
  %342 = vmatmul.f32.gmra.mxu0 %v312
  %v343 = vpop.f32.mrf.mxu0
  %v344 = vadd.f32 %v40, %v343
  %345 = vdwg.mxu0
  %v346 = vsel %vm218, %v338, -inf
  %347 = vmax.xlane.f32.xlu0 %v346
  %v348 = vpop.xlane.xlu0 %347
  %v349 = vsel %vm218, %v341, -inf
  %350 = vmax.xlane.f32.xlu0 %v349
  %v351 = vpop.xlane.xlu0 %350
  %v352 = vsel %vm218, %v344, -inf
  %353 = vmax.xlane.f32.xlu0 %v352
  %v354 = vpop.xlane.xlu0 %353
  %v355 = vsub.f32 %v338, %v348
  %v356 = vsub.f32 %v341, %v351
  %v357 = vsub.f32 %v344, %v354
  %v358 = vmul.f32 %v355, 1.442695
  %v359 = vpow.pop %v358
  %v360 = vmul.f32 %v356, 1.442695
  %v361 = vpow.pop %v360
  %v362 = vmul.f32 %v357, 1.442695
  %v363 = vpow.pop %v362
  %v364 = vsel %vm218, %v359, 0.0
  %365 = vadd.xlane.f32.xlu0 %v364
  %v366 = vpop.xlane.xlu0 %365
  %v367 = vsel %vm218, %v361, 0.0
  %368 = vadd.xlane.f32.xlu0 %v367
  %v369 = vpop.xlane.xlu0 %368
  %v370 = vsel %vm218, %v363, 0.0
  %371 = vadd.xlane.f32.xlu0 %v370
  %v372 = vpop.xlane.xlu0 %371
  %v373 = vrcp.pop %v366
  %v374 = vrcp.pop %v369
  %v375 = vrcp.pop %v372
  %v376 = vmul.f32 %v359, %v373
  %v377 = vmul.f32 %v361, %v374
  %v378 = vmul.f32 %v363, %v375
  %379 = vrot.lane.b32.xlu0 %v156, 56
  %v380 = vpop.permute.xlu0 %379
  %381 = vrot.lane.b32.xlu0 %v159, 56
  %v382 = vpop.permute.xlu0 %381
  %383 = vrot.lane.b32.xlu0 %v162, 56
  %v384 = vpop.permute.xlu0 %383
  %v389 = vsel %vm218, %v376, 0
  %v392 = vsel %vm218, %v377, 0
  %v395 = vsel %vm218, %v378, 0
  %397 = vmatpush.msra.mxu0 0.0
  %398 = vmatpush.msra.mxu0 0.0
  %399 = vmatpush.msra.mxu0 0.0
  %400 = vmatpush.msra.mxu0 0.0
  %401 = vmatpush.msra.mxu0 0.0
  %402 = vmatpush.msra.mxu0 0.0
  %403 = vmatpush.msra.mxu0 0.0
  %404 = vmatpush.msra.mxu0 0.0
  %405 = vmatpush.msra.mxu0 0.0
  %406 = vmatpush.msra.mxu0 0.0
  %407 = vmatpush.msra.mxu0 0.0
  %408 = vmatpush.msra.mxu0 0.0
  %409 = vmatpush.msra.mxu0 0.0
  %410 = vmatpush.msra.mxu0 %v384
  %411 = vmatpush.msra.mxu0 %v382
  %412 = vmatpush.msra.mxu0 %v380
  %413 = vmatmul.f32.gmra.mxu0 %v389
  %v414 = vpop.f32.mrf.mxu0
  %v415 = vadd.f32 0.0, %v414
  %416 = vmatmul.f32.gmra.mxu0 %v392
  %v417 = vpop.f32.mrf.mxu0
  %v418 = vadd.f32 0.0, %v417
  %419 = vmatmul.f32.gmra.mxu0 %v395
  %v420 = vpop.f32.mrf.mxu0
  %v421 = vadd.f32 0.0, %v420
  %422 = vdwg.mxu0
  %423 = vrot.lane.b32.xlu0 %v164, 112
  %v424 = vpop.permute.xlu0 %423
  %425 = vrot.lane.b32.xlu0 %v165, 112
  %v426 = vpop.permute.xlu0 %425
  %427 = vrot.lane.b32.xlu0 %v166, 112
  %v428 = vpop.permute.xlu0 %427
  %429 = vrot.lane.b32.xlu0 %v156, 80
  %v430 = vpop.permute.xlu0 %429
  %431 = vrot.lane.b32.xlu0 %v159, 80
  %v432 = vpop.permute.xlu0 %431
  %433 = vrot.lane.b32.xlu0 %v162, 80
  %v434 = vpop.permute.xlu0 %433
  %v435 = vsel %vm176, %v424, 0
  %v437 = vsel %vm176, %v426, 0
  %v439 = vsel %vm176, %v428, 0
  %v441 = vsel %vm176, %v430, 0
  %v443 = vsel %vm176, %v432, 0
  %v445 = vsel %vm176, %v434, 0
  %447 = vmatpush.xpose.msra.mxu0 0.0
  %448 = vmatpush.xpose.msra.mxu0 0.0
  %449 = vmatpush.xpose.msra.mxu0 0.0
  %450 = vmatpush.xpose.msra.mxu0 0.0
  %451 = vmatpush.xpose.msra.mxu0 0.0
  %452 = vmatpush.xpose.msra.mxu0 0.0
  %453 = vmatpush.xpose.msra.mxu0 0.0
  %454 = vmatpush.xpose.msra.mxu0 0.0
  %455 = vmatpush.xpose.msra.mxu0 0.0
  %456 = vmatpush.xpose.msra.mxu0 0.0
  %457 = vmatpush.xpose.msra.mxu0 0.0
  %458 = vmatpush.xpose.msra.mxu0 0.0
  %459 = vmatpush.xpose.msra.mxu0 0.0
  %460 = vmatpush.xpose.msra.mxu0 %v445
  %461 = vmatpush.xpose.msra.mxu0 %v443
  %462 = vmatpush.xpose.msra.mxu0 %v441
  %463 = vmatmul.f32.gmra.mxu0 %v435
  %v464 = vpop.f32.mrf.mxu0
  %v465 = vadd.f32 %v38, %v464
  %466 = vmatmul.f32.gmra.mxu0 %v437
  %v467 = vpop.f32.mrf.mxu0
  %v468 = vadd.f32 %v39, %v467
  %469 = vmatmul.f32.gmra.mxu0 %v439
  %v470 = vpop.f32.mrf.mxu0
  %v471 = vadd.f32 %v40, %v470
  %472 = vdwg.mxu0
  %v473 = vsel %vm218, %v465, -inf
  %474 = vmax.xlane.f32.xlu0 %v473
  %v475 = vpop.xlane.xlu0 %474
  %v476 = vsel %vm218, %v468, -inf
  %477 = vmax.xlane.f32.xlu0 %v476
  %v478 = vpop.xlane.xlu0 %477
  %v479 = vsel %vm218, %v471, -inf
  %480 = vmax.xlane.f32.xlu0 %v479
  %v481 = vpop.xlane.xlu0 %480
  %v482 = vsub.f32 %v465, %v475
  %v483 = vsub.f32 %v468, %v478
  %v484 = vsub.f32 %v471, %v481
  %v485 = vmul.f32 %v482, 1.442695
  %v486 = vpow.pop %v485
  %v487 = vmul.f32 %v483, 1.442695
  %v488 = vpow.pop %v487
  %v489 = vmul.f32 %v484, 1.442695
  %v490 = vpow.pop %v489
  %v491 = vsel %vm218, %v486, 0.0
  %492 = vadd.xlane.f32.xlu0 %v491
  %v493 = vpop.xlane.xlu0 %492
  %v494 = vsel %vm218, %v488, 0.0
  %495 = vadd.xlane.f32.xlu0 %v494
  %v496 = vpop.xlane.xlu0 %495
  %v497 = vsel %vm218, %v490, 0.0
  %498 = vadd.xlane.f32.xlu0 %v497
  %v499 = vpop.xlane.xlu0 %498
  %v500 = vrcp.pop %v493
  %v501 = vrcp.pop %v496
  %v502 = vrcp.pop %v499
  %v503 = vmul.f32 %v486, %v500
  %v504 = vmul.f32 %v488, %v501
  %v505 = vmul.f32 %v490, %v502
  %506 = vrot.lane.b32.xlu0 %v156, 48
  %v507 = vpop.permute.xlu0 %506
  %508 = vrot.lane.b32.xlu0 %v159, 48
  %v509 = vpop.permute.xlu0 %508
  %510 = vrot.lane.b32.xlu0 %v162, 48
  %v511 = vpop.permute.xlu0 %510
  %v516 = vsel %vm218, %v503, 0
  %v519 = vsel %vm218, %v504, 0
  %v522 = vsel %vm218, %v505, 0
  %524 = vmatpush.msra.mxu0 0.0
  %525 = vmatpush.msra.mxu0 0.0
  %526 = vmatpush.msra.mxu0 0.0
  %527 = vmatpush.msra.mxu0 0.0
  %528 = vmatpush.msra.mxu0 0.0
  %529 = vmatpush.msra.mxu0 0.0
  %530 = vmatpush.msra.mxu0 0.0
  %531 = vmatpush.msra.mxu0 0.0
  %532 = vmatpush.msra.mxu0 0.0
  %533 = vmatpush.msra.mxu0 0.0
  %534 = vmatpush.msra.mxu0 0.0
  %535 = vmatpush.msra.mxu0 0.0
  %536 = vmatpush.msra.mxu0 0.0
  %537 = vmatpush.msra.mxu0 %v511
  %538 = vmatpush.msra.mxu0 %v509
  %539 = vmatpush.msra.mxu0 %v507
  %540 = vmatmul.f32.gmra.mxu0 %v516
  %v541 = vpop.f32.mrf.mxu0
  %v542 = vadd.f32 0.0, %v541
  %543 = vmatmul.f32.gmra.mxu0 %v519
  %v544 = vpop.f32.mrf.mxu0
  %v545 = vadd.f32 0.0, %v544
  %546 = vmatmul.f32.gmra.mxu0 %v522
  %v547 = vpop.f32.mrf.mxu0
  %v548 = vadd.f32 0.0, %v547
  %549 = vdwg.mxu0
  %550 = vrot.lane.b32.xlu0 %v164, 104
  %v551 = vpop.permute.xlu0 %550
  %552 = vrot.lane.b32.xlu0 %v165, 104
  %v553 = vpop.permute.xlu0 %552
  %554 = vrot.lane.b32.xlu0 %v166, 104
  %v555 = vpop.permute.xlu0 %554
  %556 = vrot.lane.b32.xlu0 %v156, 72
  %v557 = vpop.permute.xlu0 %556
  %558 = vrot.lane.b32.xlu0 %v159, 72
  %v559 = vpop.permute.xlu0 %558
  %560 = vrot.lane.b32.xlu0 %v162, 72
  %v561 = vpop.permute.xlu0 %560
  %v562 = vsel %vm176, %v551, 0
  %v564 = vsel %vm176, %v553, 0
  %v566 = vsel %vm176, %v555, 0
  %v568 = vsel %vm176, %v557, 0
  %v570 = vsel %vm176, %v559, 0
  %v572 = vsel %vm176, %v561, 0
  %574 = vmatpush.xpose.msra.mxu0 0.0
  %575 = vmatpush.xpose.msra.mxu0 0.0
  %576 = vmatpush.xpose.msra.mxu0 0.0
  %577 = vmatpush.xpose.msra.mxu0 0.0
  %578 = vmatpush.xpose.msra.mxu0 0.0
  %579 = vmatpush.xpose.msra.mxu0 0.0
  %580 = vmatpush.xpose.msra.mxu0 0.0
  %581 = vmatpush.xpose.msra.mxu0 0.0
  %582 = vmatpush.xpose.msra.mxu0 0.0
  %583 = vmatpush.xpose.msra.mxu0 0.0
  %584 = vmatpush.xpose.msra.mxu0 0.0
  %585 = vmatpush.xpose.msra.mxu0 0.0
  %586 = vmatpush.xpose.msra.mxu0 0.0
  %587 = vmatpush.xpose.msra.mxu0 %v572
  %588 = vmatpush.xpose.msra.mxu0 %v570
  %589 = vmatpush.xpose.msra.mxu0 %v568
  %590 = vmatmul.f32.gmra.mxu0 %v562
  %v591 = vpop.f32.mrf.mxu0
  %v592 = vadd.f32 %v38, %v591
  %593 = vmatmul.f32.gmra.mxu0 %v564
  %v594 = vpop.f32.mrf.mxu0
  %v595 = vadd.f32 %v39, %v594
  %596 = vmatmul.f32.gmra.mxu0 %v566
  %v597 = vpop.f32.mrf.mxu0
  %v598 = vadd.f32 %v40, %v597
  %599 = vdwg.mxu0
  %v600 = vsel %vm218, %v592, -inf
  %601 = vmax.xlane.f32.xlu0 %v600
  %v602 = vpop.xlane.xlu0 %601
  %v603 = vsel %vm218, %v595, -inf
  %604 = vmax.xlane.f32.xlu0 %v603
  %v605 = vpop.xlane.xlu0 %604
  %v606 = vsel %vm218, %v598, -inf
  %607 = vmax.xlane.f32.xlu0 %v606
  %v608 = vpop.xlane.xlu0 %607
  %v609 = vsub.f32 %v592, %v602
  %v610 = vsub.f32 %v595, %v605
  %v611 = vsub.f32 %v598, %v608
  %v612 = vmul.f32 %v609, 1.442695
  %v613 = vpow.pop %v612
  %v614 = vmul.f32 %v610, 1.442695
  %v615 = vpow.pop %v614
  %v616 = vmul.f32 %v611, 1.442695
  %v617 = vpow.pop %v616
  %v618 = vsel %vm218, %v613, 0.0
  %619 = vadd.xlane.f32.xlu0 %v618
  %v620 = vpop.xlane.xlu0 %619
  %v621 = vsel %vm218, %v615, 0.0
  %622 = vadd.xlane.f32.xlu0 %v621
  %v623 = vpop.xlane.xlu0 %622
  %v624 = vsel %vm218, %v617, 0.0
  %625 = vadd.xlane.f32.xlu0 %v624
  %v626 = vpop.xlane.xlu0 %625
  %v627 = vrcp.pop %v620
  %v628 = vrcp.pop %v623
  %v629 = vrcp.pop %v626
  %v630 = vmul.f32 %v613, %v627
  %v631 = vmul.f32 %v615, %v628
  %v632 = vmul.f32 %v617, %v629
  %633 = vrot.lane.b32.xlu0 %v156, 40
  %v634 = vpop.permute.xlu0 %633
  %635 = vrot.lane.b32.xlu0 %v159, 40
  %v636 = vpop.permute.xlu0 %635
  %637 = vrot.lane.b32.xlu0 %v162, 40
  %v638 = vpop.permute.xlu0 %637
  %v643 = vsel %vm218, %v630, 0
  %v646 = vsel %vm218, %v631, 0
  %v649 = vsel %vm218, %v632, 0
  %651 = vmatpush.msra.mxu0 0.0
  %652 = vmatpush.msra.mxu0 0.0
  %653 = vmatpush.msra.mxu0 0.0
  %654 = vmatpush.msra.mxu0 0.0
  %655 = vmatpush.msra.mxu0 0.0
  %656 = vmatpush.msra.mxu0 0.0
  %657 = vmatpush.msra.mxu0 0.0
  %658 = vmatpush.msra.mxu0 0.0
  %659 = vmatpush.msra.mxu0 0.0
  %660 = vmatpush.msra.mxu0 0.0
  %661 = vmatpush.msra.mxu0 0.0
  %662 = vmatpush.msra.mxu0 0.0
  %663 = vmatpush.msra.mxu0 0.0
  %664 = vmatpush.msra.mxu0 %v638
  %665 = vmatpush.msra.mxu0 %v636
  %666 = vmatpush.msra.mxu0 %v634
  %667 = vmatmul.f32.gmra.mxu0 %v643
  %v668 = vpop.f32.mrf.mxu0
  %v669 = vadd.f32 0.0, %v668
  %670 = vmatmul.f32.gmra.mxu0 %v646
  %v671 = vpop.f32.mrf.mxu0
  %v672 = vadd.f32 0.0, %v671
  %673 = vmatmul.f32.gmra.mxu0 %v649
  %v674 = vpop.f32.mrf.mxu0
  %v675 = vadd.f32 0.0, %v674
  %676 = vdwg.mxu0
  %680 = vrot.lane.b32.xlu0 %v415, 8
  %v681 = vpop.permute.xlu0 %680
  %682 = vrot.lane.b32.xlu0 %v418, 8
  %v683 = vpop.permute.xlu0 %682
  %684 = vrot.lane.b32.xlu0 %v421, 8
  %v685 = vpop.permute.xlu0 %684
  %692 = vrot.lane.b32.xlu0 %v542, 16
  %v693 = vpop.permute.xlu0 %692
  %694 = vrot.lane.b32.xlu0 %v545, 16
  %v695 = vpop.permute.xlu0 %694
  %696 = vrot.lane.b32.xlu0 %v548, 16
  %v697 = vpop.permute.xlu0 %696
  %704 = vrot.lane.b32.xlu0 %v669, 24
  %v705 = vpop.permute.xlu0 %704
  %706 = vrot.lane.b32.xlu0 %v672, 24
  %v707 = vpop.permute.xlu0 %706
  %708 = vrot.lane.b32.xlu0 %v675, 24
  %v709 = vpop.permute.xlu0 %708
  %v713 = vsel %vm176, %v288, %v681
  %v714 = vsel %vm176, %v291, %v683
  %v715 = vsel %vm176, %v294, %v685
  %vm716 = vcmask 130048
  %v717 = vsel %vm716, %v713, %v693
  %v718 = vsel %vm716, %v714, %v695
  %v719 = vsel %vm716, %v715, %v697
  %v720 = vsel %vm218, %v717, %v705
  %v721 = vsel %vm218, %v718, %v707
  %v722 = vsel %vm218, %v719, %v709
  %v723 = vld [vmem:[%s6] sm:$0xff]
  %v724 = vld [vmem:[%s6 + $0x8] sm:$0xff]
  %v725 = vld [vmem:[%s6 + $0x10] sm:$0xff]
  %v726 = vld [vmem:[%s6 + $0x18] sm:$0xff]
  %v728 = vsel %vm42, %v720, 0
  %v731 = vsel %vm42, %v721, 0
  %v734 = vsel %vm42, %v722, 0
  %736 = vmatpush.msra.mxu0 0.0
  %737 = vmatpush.msra.mxu0 0.0
  %738 = vmatpush.msra.mxu0 0.0
  %739 = vmatpush.msra.mxu0 0.0
  %740 = vmatpush.msra.mxu0 0.0
  %741 = vmatpush.msra.mxu0 0.0
  %742 = vmatpush.msra.mxu0 0.0
  %743 = vmatpush.msra.mxu0 0.0
  %744 = vmatpush.msra.mxu0 0.0
  %745 = vmatpush.msra.mxu0 0.0
  %746 = vmatpush.msra.mxu0 0.0
  %747 = vmatpush.msra.mxu0 0.0
  %748 = vmatpush.msra.mxu0 %v726
  %749 = vmatpush.msra.mxu0 %v725
  %750 = vmatpush.msra.mxu0 %v724
  %751 = vmatpush.msra.mxu0 %v723
  %752 = vmatmul.f32.gmra.mxu0 %v728
  %v753 = vpop.f32.mrf.mxu0
  %v754 = vadd.f32 0.0, %v753
  %755 = vmatmul.f32.gmra.mxu0 %v731
  %v756 = vpop.f32.mrf.mxu0
  %v757 = vadd.f32 0.0, %v756
  %758 = vmatmul.f32.gmra.mxu0 %v734
  %v759 = vpop.f32.mrf.mxu0
  %v760 = vadd.f32 0.0, %v759
  %761 = vdwg.mxu0
  %v762 = vadd.f32 %v32, %v754
  %v763 = vadd.f32 %v33, %v757
  %v764 = vadd.f32 %v34, %v760
  %v765 = vperm.slane %v41, 3
  %v766 = vadd.f32 %v762, %v765
  %v767 = vadd.f32 %v763, %v765
  %v768 = vadd.f32 %v764, %v765
  %v769 = vsel %vm42, %v766, 0.0
  %770 = vadd.xlane.f32.xlu0 %v769
  %v771 = vpop.xlane.xlu0 %770
  %v772 = vsel %vm42, %v767, 0.0
  %773 = vadd.xlane.f32.xlu0 %v772
  %v774 = vpop.xlane.xlu0 %773
  %v775 = vsel %vm42, %v768, 0.0
  %776 = vadd.xlane.f32.xlu0 %v775
  %v777 = vpop.xlane.xlu0 %776
  %v778 = vmul.f32 %v771, %v58
  %v779 = vmul.f32 %v774, %v58
  %v780 = vmul.f32 %v777, %v58
  %v781 = vsub.f32 %v766, %v778
  %v782 = vsub.f32 %v767, %v779
  %v783 = vsub.f32 %v768, %v780
  %v784 = vmul.f32 %v781, %v781
  %v785 = vmul.f32 %v782, %v782
  %v786 = vmul.f32 %v783, %v783
  %v787 = vsel %vm42, %v784, 0.0
  %788 = vadd.xlane.f32.xlu0 %v787
  %v789 = vpop.xlane.xlu0 %788
  %v790 = vsel %vm42, %v785, 0.0
  %791 = vadd.xlane.f32.xlu0 %v790
  %v792 = vpop.xlane.xlu0 %791
  %v793 = vsel %vm42, %v786, 0.0
  %794 = vadd.xlane.f32.xlu0 %v793
  %v795 = vpop.xlane.xlu0 %794
  %v796 = vmul.f32 %v789, %v58
  %v797 = vmul.f32 %v792, %v58
  %v798 = vmul.f32 %v795, %v58
  %v799 = vadd.f32 %v796, 1e-05
  %v800 = vadd.f32 %v797, 1e-05
  %v801 = vadd.f32 %v798, 1e-05
  %v802 = vrsqrt.pop %v799
  %v803 = vmul.f32 %v802, %v799
  %v804 = vmul.f32 %v803, %v802
  %v805 = vmul.f32 0.5, %v804
  %v806 = vsub.f32 1.5, %v805
  %v807 = vmul.f32 %v802, %v806
  %vm808 = vweird.f32 %v799
  %vm809 = vweird.f32 %v802
  %vm810 = vmor %vm808, %vm809
  %v811 = vsel %vm810, %v802, %v807
  %v812 = vrsqrt.pop %v800
  %v813 = vmul.f32 %v812, %v800
  %v814 = vmul.f32 %v813, %v812
  %v815 = vmul.f32 0.5, %v814
  %v816 = vsub.f32 1.5, %v815
  %v817 = vmul.f32 %v812, %v816
  %vm818 = vweird.f32 %v800
  %vm819 = vweird.f32 %v812
  %vm820 = vmor %vm818, %vm819
  %v821 = vsel %vm820, %v812, %v817
  %v822 = vrsqrt.pop %v801
  %v823 = vmul.f32 %v822, %v801
  %v824 = vmul.f32 %v823, %v822
  %v825 = vmul.f32 0.5, %v824
  %v826 = vsub.f32 1.5, %v825
  %v827 = vmul.f32 %v822, %v826
  %vm828 = vweird.f32 %v801
  %vm829 = vweird.f32 %v822
  %vm830 = vmor %vm828, %vm829
  %v831 = vsel %vm830, %v822, %v827
  %v832 = vmul.f32 %v781, %v811
  %v833 = vmul.f32 %v782, %v821
  %v834 = vmul.f32 %v783, %v831
  %v835 = vperm.slane %v41, 4
  %v836 = vmul.f32 %v832, %v835
  %v837 = vmul.f32 %v833, %v835
  %v838 = vmul.f32 %v834, %v835
  %v839 = vperm.slane %v41, 5
  %v840 = vadd.f32 %v836, %v839
  %v841 = vadd.f32 %v837, %v839
  %v842 = vadd.f32 %v838, %v839
  %v843 = vld [vmem:[%s7] sm:$0xff]
  %v844 = vld [vmem:[%s7 + $0x8] sm:$0xff]
  %v845 = vld [vmem:[%s7 + $0x10] sm:$0xff]
  %v846 = vld [vmem:[%s7 + $0x18] sm:$0xff]
  %v847 = vperm.slane %v41, 6
  %v849 = vsel %vm42, %v840, 0
  %v852 = vsel %vm42, %v841, 0
  %v855 = vsel %vm42, %v842, 0
  %857 = vmatpush.msra.mxu0 0.0
  %858 = vmatpush.msra.mxu0 0.0
  %859 = vmatpush.msra.mxu0 0.0
  %860 = vmatpush.msra.mxu0 0.0
  %861 = vmatpush.msra.mxu0 0.0
  %862 = vmatpush.msra.mxu0 0.0
  %863 = vmatpush.msra.mxu0 0.0
  %864 = vmatpush.msra.mxu0 0.0
  %865 = vmatpush.msra.mxu0 0.0
  %866 = vmatpush.msra.mxu0 0.0
  %867 = vmatpush.msra.mxu0 0.0
  %868 = vmatpush.msra.mxu0 0.0
  %869 = vmatpush.msra.mxu0 %v846
  %870 = vmatpush.msra.mxu0 %v845
  %871 = vmatpush.msra.mxu0 %v844
  %872 = vmatpush.msra.mxu0 %v843
  %873 = vmatmul.f32.gmra.mxu0 %v849
  %v874 = vpop.f32.mrf.mxu0
  %v875 = vadd.f32 %v847, %v874
  %876 = vmatmul.f32.gmra.mxu0 %v852
  %v877 = vpop.f32.mrf.mxu0
  %v878 = vadd.f32 %v847, %v877
  %879 = vmatmul.f32.gmra.mxu0 %v855
  %v880 = vpop.f32.mrf.mxu0
  %v881 = vadd.f32 %v847, %v880
  %882 = vdwg.mxu0
  %v883 = vmul.f32 %v875, -1.702
  %v884 = vmul.f32 %v878, -1.702
  %v885 = vmul.f32 %v881, -1.702
  %v886 = vmul.f32 %v883, 1.442695
  %v887 = vpow.pop %v886
  %v888 = vmul.f32 %v884, 1.442695
  %v889 = vpow.pop %v888
  %v890 = vmul.f32 %v885, 1.442695
  %v891 = vpow.pop %v890
  %v892 = vadd.f32 %v887, 1.0
  %v893 = vadd.f32 %v889, 1.0
  %v894 = vadd.f32 %v891, 1.0
  %v895 = vrcp.pop %v892
  %v896 = vrcp.pop %v893
  %v897 = vrcp.pop %v894
  %v898 = vmul.f32 %v875, %v895
  %v899 = vmul.f32 %v878, %v896
  %v900 = vmul.f32 %v881, %v897
  %v901 = vld [vmem:[%s8] sm:$0xff]
  %v902 = vld [vmem:[%s8 + $0x8] sm:$0xff]
  %v903 = vld [vmem:[%s8 + $0x10] sm:$0xff]
  %v904 = vld [vmem:[%s8 + $0x18] sm:$0xff]
  %v905 = vld [vmem:[%s8 + $0x20] sm:$0xff]
  %v906 = vld [vmem:[%s8 + $0x28] sm:$0xff]
  %v907 = vld [vmem:[%s8 + $0x30] sm:$0xff]
  %v908 = vld [vmem:[%s8 + $0x38] sm:$0xff]
  %v909 = vld [vmem:[%s8 + $0x40] sm:$0xff]
  %v910 = vld [vmem:[%s8 + $0x48] sm:$0xff]
  %v911 = vld [vmem:[%s8 + $0x50] sm:$0xff]
  %v912 = vld [vmem:[%s8 + $0x58] sm:$0xff]
  %v913 = vld [vmem:[%s8 + $0x60] sm:$0xff]
  %v914 = vld [vmem:[%s8 + $0x68] sm:$0xff]
  %v915 = vld [vmem:[%s8 + $0x70] sm:$0xff]
  %v916 = vld [vmem:[%s8 + $0x78] sm:$0xff]
  %v917 = vperm.slane %v41, 7
  %918 = vmatpush.msra.mxu0 %v916
  %919 = vmatpush.msra.mxu0 %v915
  %920 = vmatpush.msra.mxu0 %v914
  %921 = vmatpush.msra.mxu0 %v913
  %922 = vmatpush.msra.mxu0 %v912
  %923 = vmatpush.msra.mxu0 %v911
  %924 = vmatpush.msra.mxu0 %v910
  %925 = vmatpush.msra.mxu0 %v909
  %926 = vmatpush.msra.mxu0 %v908
  %927 = vmatpush.msra.mxu0 %v907
  %928 = vmatpush.msra.mxu0 %v906
  %929 = vmatpush.msra.mxu0 %v905
  %930 = vmatpush.msra.mxu0 %v904
  %931 = vmatpush.msra.mxu0 %v903
  %932 = vmatpush.msra.mxu0 %v902
  %933 = vmatpush.msra.mxu0 %v901
  %934 = vmatmul.f32.gmra.mxu0 %v898
  %v935 = vpop.f32.mrf.mxu0
  %v936 = vadd.f32 %v917, %v935
  %937 = vmatmul.f32.gmra.mxu0 %v899
  %v938 = vpop.f32.mrf.mxu0
  %v939 = vadd.f32 %v917, %v938
  %940 = vmatmul.f32.gmra.mxu0 %v900
  %v941 = vpop.f32.mrf.mxu0
  %v942 = vadd.f32 %v917, %v941
  %943 = vdwg.mxu0
  %v944 = vadd.f32 %v766, %v936
  %v945 = vadd.f32 %v767, %v939
  %v946 = vadd.f32 %v768, %v942
  %vm947 = vcmp.ne.f32.partialorder %v35, 0.0
  %vm948 = vcmp.ne.f32.partialorder %v36, 0.0
  %vm949 = vcmp.ne.f32.partialorder %v37, 0.0
  %v950 = vld [vmem:[%s1] sm:$0xff]
  %v951 = vld [vmem:[%s1 + $0x8] sm:$0xff]
  %v952 = vld [vmem:[%s1 + $0x10] sm:$0xff]
  %v953 = vsel %vm947, 1, 0
  %v954 = vsel %vm948, 1, 0
  %v955 = vsel %vm949, 1, 0
  %956 = vset.pattern.permute.xlu0 0
  %957 = vperm.xlu0 %956, %v953
  %v958 = vpop.permute.xlu0 %957
  %959 = vset.pattern.permute.xlu0 0
  %960 = vperm.xlu0 %959, %v954
  %v961 = vpop.permute.xlu0 %960
  %962 = vset.pattern.permute.xlu0 0
  %963 = vperm.xlu0 %962, %v955
  %v964 = vpop.permute.xlu0 %963
  %vm965 = vcmp.eq.s32.totalorder %v958, 1
  %vm966 = vcmp.eq.s32.totalorder %v961, 1
  %vm967 = vcmp.eq.s32.totalorder %v964, 1
  %v968 = vsel %vm965, %v950, %v944
  %v969 = vsel %vm966, %v951, %v945
  %v970 = vsel %vm967, %v952, %v946
  %s971 = scalar_lea.vmem %s4, 8
  %v972 = vld [vmem:[%s971] sm:$0xff]
  %v973 = vsel %vm42, %v968, 0.0
  %974 = vadd.xlane.f32.xlu0 %v973
  %v975 = vpop.xlane.xlu0 %974
  %v976 = vsel %vm42, %v969, 0.0
  %977 = vadd.xlane.f32.xlu0 %v976
  %v978 = vpop.xlane.xlu0 %977
  %v979 = vsel %vm42, %v970, 0.0
  %980 = vadd.xlane.f32.xlu0 %v979
  %v981 = vpop.xlane.xlu0 %980
  %v982 = vmul.f32 %v975, %v58
  %v983 = vmul.f32 %v978, %v58
  %v984 = vmul.f32 %v981, %v58
  %v985 = vsub.f32 %v968, %v982
  %v986 = vsub.f32 %v969, %v983
  %v987 = vsub.f32 %v970, %v984
  %v988 = vmul.f32 %v985, %v985
  %v989 = vmul.f32 %v986, %v986
  %v990 = vmul.f32 %v987, %v987
  %v991 = vsel %vm42, %v988, 0.0
  %992 = vadd.xlane.f32.xlu0 %v991
  %v993 = vpop.xlane.xlu0 %992
  %v994 = vsel %vm42, %v989, 0.0
  %995 = vadd.xlane.f32.xlu0 %v994
  %v996 = vpop.xlane.xlu0 %995
  %v997 = vsel %vm42, %v990, 0.0
  %998 = vadd.xlane.f32.xlu0 %v997
  %v999 = vpop.xlane.xlu0 %998
  %v1000 = vmul.f32 %v993, %v58
  %v1001 = vmul.f32 %v996, %v58
  %v1002 = vmul.f32 %v999, %v58
  %v1003 = vadd.f32 %v1000, 1e-05
  %v1004 = vadd.f32 %v1001, 1e-05
  %v1005 = vadd.f32 %v1002, 1e-05
  %v1006 = vrsqrt.pop %v1003
  %v1007 = vmul.f32 %v1006, %v1003
  %v1008 = vmul.f32 %v1007, %v1006
  %v1009 = vmul.f32 0.5, %v1008
  %v1010 = vsub.f32 1.5, %v1009
  %v1011 = vmul.f32 %v1006, %v1010
  %vm1012 = vweird.f32 %v1003
  %vm1013 = vweird.f32 %v1006
  %vm1014 = vmor %vm1012, %vm1013
  %v1015 = vsel %vm1014, %v1006, %v1011
  %v1016 = vrsqrt.pop %v1004
  %v1017 = vmul.f32 %v1016, %v1004
  %v1018 = vmul.f32 %v1017, %v1016
  %v1019 = vmul.f32 0.5, %v1018
  %v1020 = vsub.f32 1.5, %v1019
  %v1021 = vmul.f32 %v1016, %v1020
  %vm1022 = vweird.f32 %v1004
  %vm1023 = vweird.f32 %v1016
  %vm1024 = vmor %vm1022, %vm1023
  %v1025 = vsel %vm1024, %v1016, %v1021
  %v1026 = vrsqrt.pop %v1005
  %v1027 = vmul.f32 %v1026, %v1005
  %v1028 = vmul.f32 %v1027, %v1026
  %v1029 = vmul.f32 0.5, %v1028
  %v1030 = vsub.f32 1.5, %v1029
  %v1031 = vmul.f32 %v1026, %v1030
  %vm1032 = vweird.f32 %v1005
  %vm1033 = vweird.f32 %v1026
  %vm1034 = vmor %vm1032, %vm1033
  %v1035 = vsel %vm1034, %v1026, %v1031
  %v1036 = vmul.f32 %v985, %v1015
  %v1037 = vmul.f32 %v986, %v1025
  %v1038 = vmul.f32 %v987, %v1035
  %v1039 = vperm.slane %v972, 0
  %v1040 = vmul.f32 %v1036, %v1039
  %v1041 = vmul.f32 %v1037, %v1039
  %v1042 = vmul.f32 %v1038, %v1039
  %v1043 = vperm.slane %v972, 1
  %v1044 = vadd.f32 %v1040, %v1043
  %v1045 = vadd.f32 %v1041, %v1043
  %v1046 = vadd.f32 %v1042, %v1043
  %s1047 = scalar_lea.vmem %s5, 32
  %v1048 = vld [vmem:[%s1047] sm:$0xff]
  %v1049 = vld [vmem:[%s1047 + $0x8] sm:$0xff]
  %v1050 = vld [vmem:[%s1047 + $0x10] sm:$0xff]
  %v1051 = vld [vmem:[%s1047 + $0x18] sm:$0xff]
  %v1052 = vperm.slane %v972, 2
  %v1054 = vsel %vm42, %v1044, 0
  %v1057 = vsel %vm42, %v1045, 0
  %v1060 = vsel %vm42, %v1046, 0
  %1062 = vmatpush.msra.mxu0 0.0
  %1063 = vmatpush.msra.mxu0 0.0
  %1064 = vmatpush.msra.mxu0 0.0
  %1065 = vmatpush.msra.mxu0 0.0
  %1066 = vmatpush.msra.mxu0 0.0
  %1067 = vmatpush.msra.mxu0 0.0
  %1068 = vmatpush.msra.mxu0 0.0
  %1069 = vmatpush.msra.mxu0 0.0
  %1070 = vmatpush.msra.mxu0 0.0
  %1071 = vmatpush.msra.mxu0 0.0
  %1072 = vmatpush.msra.mxu0 0.0
  %1073 = vmatpush.msra.mxu0 0.0
  %1074 = vmatpush.msra.mxu0 %v1051
  %1075 = vmatpush.msra.mxu0 %v1050
  %1076 = vmatpush.msra.mxu0 %v1049
  %1077 = vmatpush.msra.mxu0 %v1048
  %1078 = vmatmul.f32.gmra.mxu0 %v1054
  %v1079 = vpop.f32.mrf.mxu0
  %v1080 = vadd.f32 %v1052, %v1079
  %1081 = vmatmul.f32.gmra.mxu0 %v1057
  %v1082 = vpop.f32.mrf.mxu0
  %v1083 = vadd.f32 %v1052, %v1082
  %1084 = vmatmul.f32.gmra.mxu0 %v1060
  %v1085 = vpop.f32.mrf.mxu0
  %v1086 = vadd.f32 %v1052, %v1085
  %1087 = vdwg.mxu0
  %v1088 = vmul.f32 %v1080, 0.35355338
  %v1089 = vmul.f32 %v1083, 0.35355338
  %v1090 = vmul.f32 %v1086, 0.35355338
  %1094 = vrot.lane.b32.xlu0 %v1080, 96
  %v1095 = vpop.permute.xlu0 %1094
  %1096 = vrot.lane.b32.xlu0 %v1083, 96
  %v1097 = vpop.permute.xlu0 %1096
  %1098 = vrot.lane.b32.xlu0 %v1086, 96
  %v1099 = vpop.permute.xlu0 %1098
  %v1101 = vsel %vm176, %v1088, 0
  %v1104 = vsel %vm176, %v1089, 0
  %v1107 = vsel %vm176, %v1090, 0
  %v1109 = vsel %vm176, %v1095, 0
  %v1111 = vsel %vm176, %v1097, 0
  %v1113 = vsel %vm176, %v1099, 0
  %1115 = vmatpush.xpose.msra.mxu0 0.0
  %1116 = vmatpush.xpose.msra.mxu0 0.0
  %1117 = vmatpush.xpose.msra.mxu0 0.0
  %1118 = vmatpush.xpose.msra.mxu0 0.0
  %1119 = vmatpush.xpose.msra.mxu0 0.0
  %1120 = vmatpush.xpose.msra.mxu0 0.0
  %1121 = vmatpush.xpose.msra.mxu0 0.0
  %1122 = vmatpush.xpose.msra.mxu0 0.0
  %1123 = vmatpush.xpose.msra.mxu0 0.0
  %1124 = vmatpush.xpose.msra.mxu0 0.0
  %1125 = vmatpush.xpose.msra.mxu0 0.0
  %1126 = vmatpush.xpose.msra.mxu0 0.0
  %1127 = vmatpush.xpose.msra.mxu0 0.0
  %1128 = vmatpush.xpose.msra.mxu0 %v1113
  %1129 = vmatpush.xpose.msra.mxu0 %v1111
  %1130 = vmatpush.xpose.msra.mxu0 %v1109
  %1131 = vmatmul.f32.gmra.mxu0 %v1101
  %v1132 = vpop.f32.mrf.mxu0
  %v1133 = vadd.f32 %v38, %v1132
  %1134 = vmatmul.f32.gmra.mxu0 %v1104
  %v1135 = vpop.f32.mrf.mxu0
  %v1136 = vadd.f32 %v39, %v1135
  %1137 = vmatmul.f32.gmra.mxu0 %v1107
  %v1138 = vpop.f32.mrf.mxu0
  %v1139 = vadd.f32 %v40, %v1138
  %1140 = vdwg.mxu0
  %v1141 = vsel %vm218, %v1133, -inf
  %1142 = vmax.xlane.f32.xlu0 %v1141
  %v1143 = vpop.xlane.xlu0 %1142
  %v1144 = vsel %vm218, %v1136, -inf
  %1145 = vmax.xlane.f32.xlu0 %v1144
  %v1146 = vpop.xlane.xlu0 %1145
  %v1147 = vsel %vm218, %v1139, -inf
  %1148 = vmax.xlane.f32.xlu0 %v1147
  %v1149 = vpop.xlane.xlu0 %1148
  %v1150 = vsub.f32 %v1133, %v1143
  %v1151 = vsub.f32 %v1136, %v1146
  %v1152 = vsub.f32 %v1139, %v1149
  %v1153 = vmul.f32 %v1150, 1.442695
  %v1154 = vpow.pop %v1153
  %v1155 = vmul.f32 %v1151, 1.442695
  %v1156 = vpow.pop %v1155
  %v1157 = vmul.f32 %v1152, 1.442695
  %v1158 = vpow.pop %v1157
  %v1159 = vsel %vm218, %v1154, 0.0
  %1160 = vadd.xlane.f32.xlu0 %v1159
  %v1161 = vpop.xlane.xlu0 %1160
  %v1162 = vsel %vm218, %v1156, 0.0
  %1163 = vadd.xlane.f32.xlu0 %v1162
  %v1164 = vpop.xlane.xlu0 %1163
  %v1165 = vsel %vm218, %v1158, 0.0
  %1166 = vadd.xlane.f32.xlu0 %v1165
  %v1167 = vpop.xlane.xlu0 %1166
  %v1168 = vrcp.pop %v1161
  %v1169 = vrcp.pop %v1164
  %v1170 = vrcp.pop %v1167
  %v1171 = vmul.f32 %v1154, %v1168
  %v1172 = vmul.f32 %v1156, %v1169
  %v1173 = vmul.f32 %v1158, %v1170
  %1174 = vrot.lane.b32.xlu0 %v1080, 64
  %v1175 = vpop.permute.xlu0 %1174
  %1176 = vrot.lane.b32.xlu0 %v1083, 64
  %v1177 = vpop.permute.xlu0 %1176
  %1178 = vrot.lane.b32.xlu0 %v1086, 64
  %v1179 = vpop.permute.xlu0 %1178
  %v1184 = vsel %vm218, %v1171, 0
  %v1187 = vsel %vm218, %v1172, 0
  %v1190 = vsel %vm218, %v1173, 0
  %1192 = vmatpush.msra.mxu0 0.0
  %1193 = vmatpush.msra.mxu0 0.0
  %1194 = vmatpush.msra.mxu0 0.0
  %1195 = vmatpush.msra.mxu0 0.0
  %1196 = vmatpush.msra.mxu0 0.0
  %1197 = vmatpush.msra.mxu0 0.0
  %1198 = vmatpush.msra.mxu0 0.0
  %1199 = vmatpush.msra.mxu0 0.0
  %1200 = vmatpush.msra.mxu0 0.0
  %1201 = vmatpush.msra.mxu0 0.0
  %1202 = vmatpush.msra.mxu0 0.0
  %1203 = vmatpush.msra.mxu0 0.0
  %1204 = vmatpush.msra.mxu0 0.0
  %1205 = vmatpush.msra.mxu0 %v1179
  %1206 = vmatpush.msra.mxu0 %v1177
  %1207 = vmatpush.msra.mxu0 %v1175
  %1208 = vmatmul.f32.gmra.mxu0 %v1184
  %v1209 = vpop.f32.mrf.mxu0
  %v1210 = vadd.f32 0.0, %v1209
  %1211 = vmatmul.f32.gmra.mxu0 %v1187
  %v1212 = vpop.f32.mrf.mxu0
  %v1213 = vadd.f32 0.0, %v1212
  %1214 = vmatmul.f32.gmra.mxu0 %v1190
  %v1215 = vpop.f32.mrf.mxu0
  %v1216 = vadd.f32 0.0, %v1215
  %1217 = vdwg.mxu0
  %1218 = vrot.lane.b32.xlu0 %v1088, 120
  %v1219 = vpop.permute.xlu0 %1218
  %1220 = vrot.lane.b32.xlu0 %v1089, 120
  %v1221 = vpop.permute.xlu0 %1220
  %1222 = vrot.lane.b32.xlu0 %v1090, 120
  %v1223 = vpop.permute.xlu0 %1222
  %1224 = vrot.lane.b32.xlu0 %v1080, 88
  %v1225 = vpop.permute.xlu0 %1224
  %1226 = vrot.lane.b32.xlu0 %v1083, 88
  %v1227 = vpop.permute.xlu0 %1226
  %1228 = vrot.lane.b32.xlu0 %v1086, 88
  %v1229 = vpop.permute.xlu0 %1228
  %v1230 = vsel %vm176, %v1219, 0
  %v1232 = vsel %vm176, %v1221, 0
  %v1234 = vsel %vm176, %v1223, 0
  %v1236 = vsel %vm176, %v1225, 0
  %v1238 = vsel %vm176, %v1227, 0
  %v1240 = vsel %vm176, %v1229, 0
  %1242 = vmatpush.xpose.msra.mxu0 0.0
  %1243 = vmatpush.xpose.msra.mxu0 0.0
  %1244 = vmatpush.xpose.msra.mxu0 0.0
  %1245 = vmatpush.xpose.msra.mxu0 0.0
  %1246 = vmatpush.xpose.msra.mxu0 0.0
  %1247 = vmatpush.xpose.msra.mxu0 0.0
  %1248 = vmatpush.xpose.msra.mxu0 0.0
  %1249 = vmatpush.xpose.msra.mxu0 0.0
  %1250 = vmatpush.xpose.msra.mxu0 0.0
  %1251 = vmatpush.xpose.msra.mxu0 0.0
  %1252 = vmatpush.xpose.msra.mxu0 0.0
  %1253 = vmatpush.xpose.msra.mxu0 0.0
  %1254 = vmatpush.xpose.msra.mxu0 0.0
  %1255 = vmatpush.xpose.msra.mxu0 %v1240
  %1256 = vmatpush.xpose.msra.mxu0 %v1238
  %1257 = vmatpush.xpose.msra.mxu0 %v1236
  %1258 = vmatmul.f32.gmra.mxu0 %v1230
  %v1259 = vpop.f32.mrf.mxu0
  %v1260 = vadd.f32 %v38, %v1259
  %1261 = vmatmul.f32.gmra.mxu0 %v1232
  %v1262 = vpop.f32.mrf.mxu0
  %v1263 = vadd.f32 %v39, %v1262
  %1264 = vmatmul.f32.gmra.mxu0 %v1234
  %v1265 = vpop.f32.mrf.mxu0
  %v1266 = vadd.f32 %v40, %v1265
  %1267 = vdwg.mxu0
  %v1268 = vsel %vm218, %v1260, -inf
  %1269 = vmax.xlane.f32.xlu0 %v1268
  %v1270 = vpop.xlane.xlu0 %1269
  %v1271 = vsel %vm218, %v1263, -inf
  %1272 = vmax.xlane.f32.xlu0 %v1271
  %v1273 = vpop.xlane.xlu0 %1272
  %v1274 = vsel %vm218, %v1266, -inf
  %1275 = vmax.xlane.f32.xlu0 %v1274
  %v1276 = vpop.xlane.xlu0 %1275
  %v1277 = vsub.f32 %v1260, %v1270
  %v1278 = vsub.f32 %v1263, %v1273
  %v1279 = vsub.f32 %v1266, %v1276
  %v1280 = vmul.f32 %v1277, 1.442695
  %v1281 = vpow.pop %v1280
  %v1282 = vmul.f32 %v1278, 1.442695
  %v1283 = vpow.pop %v1282
  %v1284 = vmul.f32 %v1279, 1.442695
  %v1285 = vpow.pop %v1284
  %v1286 = vsel %vm218, %v1281, 0.0
  %1287 = vadd.xlane.f32.xlu0 %v1286
  %v1288 = vpop.xlane.xlu0 %1287
  %v1289 = vsel %vm218, %v1283, 0.0
  %1290 = vadd.xlane.f32.xlu0 %v1289
  %v1291 = vpop.xlane.xlu0 %1290
  %v1292 = vsel %vm218, %v1285, 0.0
  %1293 = vadd.xlane.f32.xlu0 %v1292
  %v1294 = vpop.xlane.xlu0 %1293
  %v1295 = vrcp.pop %v1288
  %v1296 = vrcp.pop %v1291
  %v1297 = vrcp.pop %v1294
  %v1298 = vmul.f32 %v1281, %v1295
  %v1299 = vmul.f32 %v1283, %v1296
  %v1300 = vmul.f32 %v1285, %v1297
  %1301 = vrot.lane.b32.xlu0 %v1080, 56
  %v1302 = vpop.permute.xlu0 %1301
  %1303 = vrot.lane.b32.xlu0 %v1083, 56
  %v1304 = vpop.permute.xlu0 %1303
  %1305 = vrot.lane.b32.xlu0 %v1086, 56
  %v1306 = vpop.permute.xlu0 %1305
  %v1311 = vsel %vm218, %v1298, 0
  %v1314 = vsel %vm218, %v1299, 0
  %v1317 = vsel %vm218, %v1300, 0
  %1319 = vmatpush.msra.mxu0 0.0
  %1320 = vmatpush.msra.mxu0 0.0
  %1321 = vmatpush.msra.mxu0 0.0
  %1322 = vmatpush.msra.mxu0 0.0
  %1323 = vmatpush.msra.mxu0 0.0
  %1324 = vmatpush.msra.mxu0 0.0
  %1325 = vmatpush.msra.mxu0 0.0
  %1326 = vmatpush.msra.mxu0 0.0
  %1327 = vmatpush.msra.mxu0 0.0
  %1328 = vmatpush.msra.mxu0 0.0
  %1329 = vmatpush.msra.mxu0 0.0
  %1330 = vmatpush.msra.mxu0 0.0
  %1331 = vmatpush.msra.mxu0 0.0
  %1332 = vmatpush.msra.mxu0 %v1306
  %1333 = vmatpush.msra.mxu0 %v1304
  %1334 = vmatpush.msra.mxu0 %v1302
  %1335 = vmatmul.f32.gmra.mxu0 %v1311
  %v1336 = vpop.f32.mrf.mxu0
  %v1337 = vadd.f32 0.0, %v1336
  %1338 = vmatmul.f32.gmra.mxu0 %v1314
  %v1339 = vpop.f32.mrf.mxu0
  %v1340 = vadd.f32 0.0, %v1339
  %1341 = vmatmul.f32.gmra.mxu0 %v1317
  %v1342 = vpop.f32.mrf.mxu0
  %v1343 = vadd.f32 0.0, %v1342
  %1344 = vdwg.mxu0
  %1345 = vrot.lane.b32.xlu0 %v1088, 112
  %v1346 = vpop.permute.xlu0 %1345
  %1347 = vrot.lane.b32.xlu0 %v1089, 112
  %v1348 = vpop.permute.xlu0 %1347
  %1349 = vrot.lane.b32.xlu0 %v1090, 112
  %v1350 = vpop.permute.xlu0 %1349
  %1351 = vrot.lane.b32.xlu0 %v1080, 80
  %v1352 = vpop.permute.xlu0 %1351
  %1353 = vrot.lane.b32.xlu0 %v1083, 80
  %v1354 = vpop.permute.xlu0 %1353
  %1355 = vrot.lane.b32.xlu0 %v1086, 80
  %v1356 = vpop.permute.xlu0 %1355
  %v1357 = vsel %vm176, %v1346, 0
  %v1359 = vsel %vm176, %v1348, 0
  %v1361 = vsel %vm176, %v1350, 0
  %v1363 = vsel %vm176, %v1352, 0
  %v1365 = vsel %vm176, %v1354, 0
  %v1367 = vsel %vm176, %v1356, 0
  %1369 = vmatpush.xpose.msra.mxu0 0.0
  %1370 = vmatpush.xpose.msra.mxu0 0.0
  %1371 = vmatpush.xpose.msra.mxu0 0.0
  %1372 = vmatpush.xpose.msra.mxu0 0.0
  %1373 = vmatpush.xpose.msra.mxu0 0.0
  %1374 = vmatpush.xpose.msra.mxu0 0.0
  %1375 = vmatpush.xpose.msra.mxu0 0.0
  %1376 = vmatpush.xpose.msra.mxu0 0.0
  %1377 = vmatpush.xpose.msra.mxu0 0.0
  %1378 = vmatpush.xpose.msra.mxu0 0.0
  %1379 = vmatpush.xpose.msra.mxu0 0.0
  %1380 = vmatpush.xpose.msra.mxu0 0.0
  %1381 = vmatpush.xpose.msra.mxu0 0.0
  %1382 = vmatpush.xpose.msra.mxu0 %v1367
  %1383 = vmatpush.xpose.msra.mxu0 %v1365
  %1384 = vmatpush.xpose.msra.mxu0 %v1363
  %1385 = vmatmul.f32.gmra.mxu0 %v1357
  %v1386 = vpop.f32.mrf.mxu0
  %v1387 = vadd.f32 %v38, %v1386
  %1388 = vmatmul.f32.gmra.mxu0 %v1359
  %v1389 = vpop.f32.mrf.mxu0
  %v1390 = vadd.f32 %v39, %v1389
  %1391 = vmatmul.f32.gmra.mxu0 %v1361
  %v1392 = vpop.f32.mrf.mxu0
  %v1393 = vadd.f32 %v40, %v1392
  %1394 = vdwg.mxu0
  %v1395 = vsel %vm218, %v1387, -inf
  %1396 = vmax.xlane.f32.xlu0 %v1395
  %v1397 = vpop.xlane.xlu0 %1396
  %v1398 = vsel %vm218, %v1390, -inf
  %1399 = vmax.xlane.f32.xlu0 %v1398
  %v1400 = vpop.xlane.xlu0 %1399
  %v1401 = vsel %vm218, %v1393, -inf
  %1402 = vmax.xlane.f32.xlu0 %v1401
  %v1403 = vpop.xlane.xlu0 %1402
  %v1404 = vsub.f32 %v1387, %v1397
  %v1405 = vsub.f32 %v1390, %v1400
  %v1406 = vsub.f32 %v1393, %v1403
  %v1407 = vmul.f32 %v1404, 1.442695
  %v1408 = vpow.pop %v1407
  %v1409 = vmul.f32 %v1405, 1.442695
  %v1410 = vpow.pop %v1409
  %v1411 = vmul.f32 %v1406, 1.442695
  %v1412 = vpow.pop %v1411
  %v1413 = vsel %vm218, %v1408, 0.0
  %1414 = vadd.xlane.f32.xlu0 %v1413
  %v1415 = vpop.xlane.xlu0 %1414
  %v1416 = vsel %vm218, %v1410, 0.0
  %1417 = vadd.xlane.f32.xlu0 %v1416
  %v1418 = vpop.xlane.xlu0 %1417
  %v1419 = vsel %vm218, %v1412, 0.0
  %1420 = vadd.xlane.f32.xlu0 %v1419
  %v1421 = vpop.xlane.xlu0 %1420
  %v1422 = vrcp.pop %v1415
  %v1423 = vrcp.pop %v1418
  %v1424 = vrcp.pop %v1421
  %v1425 = vmul.f32 %v1408, %v1422
  %v1426 = vmul.f32 %v1410, %v1423
  %v1427 = vmul.f32 %v1412, %v1424
  %1428 = vrot.lane.b32.xlu0 %v1080, 48
  %v1429 = vpop.permute.xlu0 %1428
  %1430 = vrot.lane.b32.xlu0 %v1083, 48
  %v1431 = vpop.permute.xlu0 %1430
  %1432 = vrot.lane.b32.xlu0 %v1086, 48
  %v1433 = vpop.permute.xlu0 %1432
  %v1438 = vsel %vm218, %v1425, 0
  %v1441 = vsel %vm218, %v1426, 0
  %v1444 = vsel %vm218, %v1427, 0
  %1446 = vmatpush.msra.mxu0 0.0
  %1447 = vmatpush.msra.mxu0 0.0
  %1448 = vmatpush.msra.mxu0 0.0
  %1449 = vmatpush.msra.mxu0 0.0
  %1450 = vmatpush.msra.mxu0 0.0
  %1451 = vmatpush.msra.mxu0 0.0
  %1452 = vmatpush.msra.mxu0 0.0
  %1453 = vmatpush.msra.mxu0 0.0
  %1454 = vmatpush.msra.mxu0 0.0
  %1455 = vmatpush.msra.mxu0 0.0
  %1456 = vmatpush.msra.mxu0 0.0
  %1457 = vmatpush.msra.mxu0 0.0
  %1458 = vmatpush.msra.mxu0 0.0
  %1459 = vmatpush.msra.mxu0 %v1433
  %1460 = vmatpush.msra.mxu0 %v1431
  %1461 = vmatpush.msra.mxu0 %v1429
  %1462 = vmatmul.f32.gmra.mxu0 %v1438
  %v1463 = vpop.f32.mrf.mxu0
  %v1464 = vadd.f32 0.0, %v1463
  %1465 = vmatmul.f32.gmra.mxu0 %v1441
  %v1466 = vpop.f32.mrf.mxu0
  %v1467 = vadd.f32 0.0, %v1466
  %1468 = vmatmul.f32.gmra.mxu0 %v1444
  %v1469 = vpop.f32.mrf.mxu0
  %v1470 = vadd.f32 0.0, %v1469
  %1471 = vdwg.mxu0
  %1472 = vrot.lane.b32.xlu0 %v1088, 104
  %v1473 = vpop.permute.xlu0 %1472
  %1474 = vrot.lane.b32.xlu0 %v1089, 104
  %v1475 = vpop.permute.xlu0 %1474
  %1476 = vrot.lane.b32.xlu0 %v1090, 104
  %v1477 = vpop.permute.xlu0 %1476
  %1478 = vrot.lane.b32.xlu0 %v1080, 72
  %v1479 = vpop.permute.xlu0 %1478
  %1480 = vrot.lane.b32.xlu0 %v1083, 72
  %v1481 = vpop.permute.xlu0 %1480
  %1482 = vrot.lane.b32.xlu0 %v1086, 72
  %v1483 = vpop.permute.xlu0 %1482
  %v1484 = vsel %vm176, %v1473, 0
  %v1486 = vsel %vm176, %v1475, 0
  %v1488 = vsel %vm176, %v1477, 0
  %v1490 = vsel %vm176, %v1479, 0
  %v1492 = vsel %vm176, %v1481, 0
  %v1494 = vsel %vm176, %v1483, 0
  %1496 = vmatpush.xpose.msra.mxu0 0.0
  %1497 = vmatpush.xpose.msra.mxu0 0.0
  %1498 = vmatpush.xpose.msra.mxu0 0.0
  %1499 = vmatpush.xpose.msra.mxu0 0.0
  %1500 = vmatpush.xpose.msra.mxu0 0.0
  %1501 = vmatpush.xpose.msra.mxu0 0.0
  %1502 = vmatpush.xpose.msra.mxu0 0.0
  %1503 = vmatpush.xpose.msra.mxu0 0.0
  %1504 = vmatpush.xpose.msra.mxu0 0.0
  %1505 = vmatpush.xpose.msra.mxu0 0.0
  %1506 = vmatpush.xpose.msra.mxu0 0.0
  %1507 = vmatpush.xpose.msra.mxu0 0.0
  %1508 = vmatpush.xpose.msra.mxu0 0.0
  %1509 = vmatpush.xpose.msra.mxu0 %v1494
  %1510 = vmatpush.xpose.msra.mxu0 %v1492
  %1511 = vmatpush.xpose.msra.mxu0 %v1490
  %1512 = vmatmul.f32.gmra.mxu0 %v1484
  %v1513 = vpop.f32.mrf.mxu0
  %v1514 = vadd.f32 %v38, %v1513
  %1515 = vmatmul.f32.gmra.mxu0 %v1486
  %v1516 = vpop.f32.mrf.mxu0
  %v1517 = vadd.f32 %v39, %v1516
  %1518 = vmatmul.f32.gmra.mxu0 %v1488
  %v1519 = vpop.f32.mrf.mxu0
  %v1520 = vadd.f32 %v40, %v1519
  %1521 = vdwg.mxu0
  %v1522 = vsel %vm218, %v1514, -inf
  %1523 = vmax.xlane.f32.xlu0 %v1522
  %v1524 = vpop.xlane.xlu0 %1523
  %v1525 = vsel %vm218, %v1517, -inf
  %1526 = vmax.xlane.f32.xlu0 %v1525
  %v1527 = vpop.xlane.xlu0 %1526
  %v1528 = vsel %vm218, %v1520, -inf
  %1529 = vmax.xlane.f32.xlu0 %v1528
  %v1530 = vpop.xlane.xlu0 %1529
  %v1531 = vsub.f32 %v1514, %v1524
  %v1532 = vsub.f32 %v1517, %v1527
  %v1533 = vsub.f32 %v1520, %v1530
  %v1534 = vmul.f32 %v1531, 1.442695
  %v1535 = vpow.pop %v1534
  %v1536 = vmul.f32 %v1532, 1.442695
  %v1537 = vpow.pop %v1536
  %v1538 = vmul.f32 %v1533, 1.442695
  %v1539 = vpow.pop %v1538
  %v1540 = vsel %vm218, %v1535, 0.0
  %1541 = vadd.xlane.f32.xlu0 %v1540
  %v1542 = vpop.xlane.xlu0 %1541
  %v1543 = vsel %vm218, %v1537, 0.0
  %1544 = vadd.xlane.f32.xlu0 %v1543
  %v1545 = vpop.xlane.xlu0 %1544
  %v1546 = vsel %vm218, %v1539, 0.0
  %1547 = vadd.xlane.f32.xlu0 %v1546
  %v1548 = vpop.xlane.xlu0 %1547
  %v1549 = vrcp.pop %v1542
  %v1550 = vrcp.pop %v1545
  %v1551 = vrcp.pop %v1548
  %v1552 = vmul.f32 %v1535, %v1549
  %v1553 = vmul.f32 %v1537, %v1550
  %v1554 = vmul.f32 %v1539, %v1551
  %1555 = vrot.lane.b32.xlu0 %v1080, 40
  %v1556 = vpop.permute.xlu0 %1555
  %1557 = vrot.lane.b32.xlu0 %v1083, 40
  %v1558 = vpop.permute.xlu0 %1557
  %1559 = vrot.lane.b32.xlu0 %v1086, 40
  %v1560 = vpop.permute.xlu0 %1559
  %v1565 = vsel %vm218, %v1552, 0
  %v1568 = vsel %vm218, %v1553, 0
  %v1571 = vsel %vm218, %v1554, 0
  %1573 = vmatpush.msra.mxu0 0.0
  %1574 = vmatpush.msra.mxu0 0.0
  %1575 = vmatpush.msra.mxu0 0.0
  %1576 = vmatpush.msra.mxu0 0.0
  %1577 = vmatpush.msra.mxu0 0.0
  %1578 = vmatpush.msra.mxu0 0.0
  %1579 = vmatpush.msra.mxu0 0.0
  %1580 = vmatpush.msra.mxu0 0.0
  %1581 = vmatpush.msra.mxu0 0.0
  %1582 = vmatpush.msra.mxu0 0.0
  %1583 = vmatpush.msra.mxu0 0.0
  %1584 = vmatpush.msra.mxu0 0.0
  %1585 = vmatpush.msra.mxu0 0.0
  %1586 = vmatpush.msra.mxu0 %v1560
  %1587 = vmatpush.msra.mxu0 %v1558
  %1588 = vmatpush.msra.mxu0 %v1556
  %1589 = vmatmul.f32.gmra.mxu0 %v1565
  %v1590 = vpop.f32.mrf.mxu0
  %v1591 = vadd.f32 0.0, %v1590
  %1592 = vmatmul.f32.gmra.mxu0 %v1568
  %v1593 = vpop.f32.mrf.mxu0
  %v1594 = vadd.f32 0.0, %v1593
  %1595 = vmatmul.f32.gmra.mxu0 %v1571
  %v1596 = vpop.f32.mrf.mxu0
  %v1597 = vadd.f32 0.0, %v1596
  %1598 = vdwg.mxu0
  %1602 = vrot.lane.b32.xlu0 %v1337, 8
  %v1603 = vpop.permute.xlu0 %1602
  %1604 = vrot.lane.b32.xlu0 %v1340, 8
  %v1605 = vpop.permute.xlu0 %1604
  %1606 = vrot.lane.b32.xlu0 %v1343, 8
  %v1607 = vpop.permute.xlu0 %1606
  %1614 = vrot.lane.b32.xlu0 %v1464, 16
  %v1615 = vpop.permute.xlu0 %1614
  %1616 = vrot.lane.b32.xlu0 %v1467, 16
  %v1617 = vpop.permute.xlu0 %1616
  %1618 = vrot.lane.b32.xlu0 %v1470, 16
  %v1619 = vpop.permute.xlu0 %1618
  %1626 = vrot.lane.b32.xlu0 %v1591, 24
  %v1627 = vpop.permute.xlu0 %1626
  %1628 = vrot.lane.b32.xlu0 %v1594, 24
  %v1629 = vpop.permute.xlu0 %1628
  %1630 = vrot.lane.b32.xlu0 %v1597, 24
  %v1631 = vpop.permute.xlu0 %1630
  %v1635 = vsel %vm176, %v1210, %v1603
  %v1636 = vsel %vm176, %v1213, %v1605
  %v1637 = vsel %vm176, %v1216, %v1607
  %v1638 = vsel %vm716, %v1635, %v1615
  %v1639 = vsel %vm716, %v1636, %v1617
  %v1640 = vsel %vm716, %v1637, %v1619
  %v1641 = vsel %vm218, %v1638, %v1627
  %v1642 = vsel %vm218, %v1639, %v1629
  %v1643 = vsel %vm218, %v1640, %v1631
  %s1644 = scalar_lea.vmem %s6, 32
  %v1645 = vld [vmem:[%s1644] sm:$0xff]
  %v1646 = vld [vmem:[%s1644 + $0x8] sm:$0xff]
  %v1647 = vld [vmem:[%s1644 + $0x10] sm:$0xff]
  %v1648 = vld [vmem:[%s1644 + $0x18] sm:$0xff]
  %v1650 = vsel %vm42, %v1641, 0
  %v1653 = vsel %vm42, %v1642, 0
  %v1656 = vsel %vm42, %v1643, 0
  %1658 = vmatpush.msra.mxu0 0.0
  %1659 = vmatpush.msra.mxu0 0.0
  %1660 = vmatpush.msra.mxu0 0.0
  %1661 = vmatpush.msra.mxu0 0.0
  %1662 = vmatpush.msra.mxu0 0.0
  %1663 = vmatpush.msra.mxu0 0.0
  %1664 = vmatpush.msra.mxu0 0.0
  %1665 = vmatpush.msra.mxu0 0.0
  %1666 = vmatpush.msra.mxu0 0.0
  %1667 = vmatpush.msra.mxu0 0.0
  %1668 = vmatpush.msra.mxu0 0.0
  %1669 = vmatpush.msra.mxu0 0.0
  %1670 = vmatpush.msra.mxu0 %v1648
  %1671 = vmatpush.msra.mxu0 %v1647
  %1672 = vmatpush.msra.mxu0 %v1646
  %1673 = vmatpush.msra.mxu0 %v1645
  %1674 = vmatmul.f32.gmra.mxu0 %v1650
  %v1675 = vpop.f32.mrf.mxu0
  %v1676 = vadd.f32 0.0, %v1675
  %1677 = vmatmul.f32.gmra.mxu0 %v1653
  %v1678 = vpop.f32.mrf.mxu0
  %v1679 = vadd.f32 0.0, %v1678
  %1680 = vmatmul.f32.gmra.mxu0 %v1656
  %v1681 = vpop.f32.mrf.mxu0
  %v1682 = vadd.f32 0.0, %v1681
  %1683 = vdwg.mxu0
  %v1684 = vadd.f32 %v968, %v1676
  %v1685 = vadd.f32 %v969, %v1679
  %v1686 = vadd.f32 %v970, %v1682
  %v1687 = vperm.slane %v972, 3
  %v1688 = vadd.f32 %v1684, %v1687
  %v1689 = vadd.f32 %v1685, %v1687
  %v1690 = vadd.f32 %v1686, %v1687
  %v1691 = vsel %vm42, %v1688, 0.0
  %1692 = vadd.xlane.f32.xlu0 %v1691
  %v1693 = vpop.xlane.xlu0 %1692
  %v1694 = vsel %vm42, %v1689, 0.0
  %1695 = vadd.xlane.f32.xlu0 %v1694
  %v1696 = vpop.xlane.xlu0 %1695
  %v1697 = vsel %vm42, %v1690, 0.0
  %1698 = vadd.xlane.f32.xlu0 %v1697
  %v1699 = vpop.xlane.xlu0 %1698
  %v1700 = vmul.f32 %v1693, %v58
  %v1701 = vmul.f32 %v1696, %v58
  %v1702 = vmul.f32 %v1699, %v58
  %v1703 = vsub.f32 %v1688, %v1700
  %v1704 = vsub.f32 %v1689, %v1701
  %v1705 = vsub.f32 %v1690, %v1702
  %v1706 = vmul.f32 %v1703, %v1703
  %v1707 = vmul.f32 %v1704, %v1704
  %v1708 = vmul.f32 %v1705, %v1705
  %v1709 = vsel %vm42, %v1706, 0.0
  %1710 = vadd.xlane.f32.xlu0 %v1709
  %v1711 = vpop.xlane.xlu0 %1710
  %v1712 = vsel %vm42, %v1707, 0.0
  %1713 = vadd.xlane.f32.xlu0 %v1712
  %v1714 = vpop.xlane.xlu0 %1713
  %v1715 = vsel %vm42, %v1708, 0.0
  %1716 = vadd.xlane.f32.xlu0 %v1715
  %v1717 = vpop.xlane.xlu0 %1716
  %v1718 = vmul.f32 %v1711, %v58
  %v1719 = vmul.f32 %v1714, %v58
  %v1720 = vmul.f32 %v1717, %v58
  %v1721 = vadd.f32 %v1718, 1e-05
  %v1722 = vadd.f32 %v1719, 1e-05
  %v1723 = vadd.f32 %v1720, 1e-05
  %v1724 = vrsqrt.pop %v1721
  %v1725 = vmul.f32 %v1724, %v1721
  %v1726 = vmul.f32 %v1725, %v1724
  %v1727 = vmul.f32 0.5, %v1726
  %v1728 = vsub.f32 1.5, %v1727
  %v1729 = vmul.f32 %v1724, %v1728
  %vm1730 = vweird.f32 %v1721
  %vm1731 = vweird.f32 %v1724
  %vm1732 = vmor %vm1730, %vm1731
  %v1733 = vsel %vm1732, %v1724, %v1729
  %v1734 = vrsqrt.pop %v1722
  %v1735 = vmul.f32 %v1734, %v1722
  %v1736 = vmul.f32 %v1735, %v1734
  %v1737 = vmul.f32 0.5, %v1736
  %v1738 = vsub.f32 1.5, %v1737
  %v1739 = vmul.f32 %v1734, %v1738
  %vm1740 = vweird.f32 %v1722
  %vm1741 = vweird.f32 %v1734
  %vm1742 = vmor %vm1740, %vm1741
  %v1743 = vsel %vm1742, %v1734, %v1739
  %v1744 = vrsqrt.pop %v1723
  %v1745 = vmul.f32 %v1744, %v1723
  %v1746 = vmul.f32 %v1745, %v1744
  %v1747 = vmul.f32 0.5, %v1746
  %v1748 = vsub.f32 1.5, %v1747
  %v1749 = vmul.f32 %v1744, %v1748
  %vm1750 = vweird.f32 %v1723
  %vm1751 = vweird.f32 %v1744
  %vm1752 = vmor %vm1750, %vm1751
  %v1753 = vsel %vm1752, %v1744, %v1749
  %v1754 = vmul.f32 %v1703, %v1733
  %v1755 = vmul.f32 %v1704, %v1743
  %v1756 = vmul.f32 %v1705, %v1753
  %v1757 = vperm.slane %v972, 4
  %v1758 = vmul.f32 %v1754, %v1757
  %v1759 = vmul.f32 %v1755, %v1757
  %v1760 = vmul.f32 %v1756, %v1757
  %v1761 = vperm.slane %v972, 5
  %v1762 = vadd.f32 %v1758, %v1761
  %v1763 = vadd.f32 %v1759, %v1761
  %v1764 = vadd.f32 %v1760, %v1761
  %s1765 = scalar_lea.vmem %s7, 32
  %v1766 = vld [vmem:[%s1765] sm:$0xff]
  %v1767 = vld [vmem:[%s1765 + $0x8] sm:$0xff]
  %v1768 = vld [vmem:[%s1765 + $0x10] sm:$0xff]
  %v1769 = vld [vmem:[%s1765 + $0x18] sm:$0xff]
  %v1770 = vperm.slane %v972, 6
  %v1772 = vsel %vm42, %v1762, 0
  %v1775 = vsel %vm42, %v1763, 0
  %v1778 = vsel %vm42, %v1764, 0
  %1780 = vmatpush.msra.mxu0 0.0
  %1781 = vmatpush.msra.mxu0 0.0
  %1782 = vmatpush.msra.mxu0 0.0
  %1783 = vmatpush.msra.mxu0 0.0
  %1784 = vmatpush.msra.mxu0 0.0
  %1785 = vmatpush.msra.mxu0 0.0
  %1786 = vmatpush.msra.mxu0 0.0
  %1787 = vmatpush.msra.mxu0 0.0
  %1788 = vmatpush.msra.mxu0 0.0
  %1789 = vmatpush.msra.mxu0 0.0
  %1790 = vmatpush.msra.mxu0 0.0
  %1791 = vmatpush.msra.mxu0 0.0
  %1792 = vmatpush.msra.mxu0 %v1769
  %1793 = vmatpush.msra.mxu0 %v1768
  %1794 = vmatpush.msra.mxu0 %v1767
  %1795 = vmatpush.msra.mxu0 %v1766
  %1796 = vmatmul.f32.gmra.mxu0 %v1772
  %v1797 = vpop.f32.mrf.mxu0
  %v1798 = vadd.f32 %v1770, %v1797
  %1799 = vmatmul.f32.gmra.mxu0 %v1775
  %v1800 = vpop.f32.mrf.mxu0
  %v1801 = vadd.f32 %v1770, %v1800
  %1802 = vmatmul.f32.gmra.mxu0 %v1778
  %v1803 = vpop.f32.mrf.mxu0
  %v1804 = vadd.f32 %v1770, %v1803
  %1805 = vdwg.mxu0
  %v1806 = vmul.f32 %v1798, -1.702
  %v1807 = vmul.f32 %v1801, -1.702
  %v1808 = vmul.f32 %v1804, -1.702
  %v1809 = vmul.f32 %v1806, 1.442695
  %v1810 = vpow.pop %v1809
  %v1811 = vmul.f32 %v1807, 1.442695
  %v1812 = vpow.pop %v1811
  %v1813 = vmul.f32 %v1808, 1.442695
  %v1814 = vpow.pop %v1813
  %v1815 = vadd.f32 %v1810, 1.0
  %v1816 = vadd.f32 %v1812, 1.0
  %v1817 = vadd.f32 %v1814, 1.0
  %v1818 = vrcp.pop %v1815
  %v1819 = vrcp.pop %v1816
  %v1820 = vrcp.pop %v1817
  %v1821 = vmul.f32 %v1798, %v1818
  %v1822 = vmul.f32 %v1801, %v1819
  %v1823 = vmul.f32 %v1804, %v1820
  %s1824 = scalar_lea.vmem %s8, 128
  %v1825 = vld [vmem:[%s1824] sm:$0xff]
  %v1826 = vld [vmem:[%s1824 + $0x8] sm:$0xff]
  %v1827 = vld [vmem:[%s1824 + $0x10] sm:$0xff]
  %v1828 = vld [vmem:[%s1824 + $0x18] sm:$0xff]
  %v1829 = vld [vmem:[%s1824 + $0x20] sm:$0xff]
  %v1830 = vld [vmem:[%s1824 + $0x28] sm:$0xff]
  %v1831 = vld [vmem:[%s1824 + $0x30] sm:$0xff]
  %v1832 = vld [vmem:[%s1824 + $0x38] sm:$0xff]
  %v1833 = vld [vmem:[%s1824 + $0x40] sm:$0xff]
  %v1834 = vld [vmem:[%s1824 + $0x48] sm:$0xff]
  %v1835 = vld [vmem:[%s1824 + $0x50] sm:$0xff]
  %v1836 = vld [vmem:[%s1824 + $0x58] sm:$0xff]
  %v1837 = vld [vmem:[%s1824 + $0x60] sm:$0xff]
  %v1838 = vld [vmem:[%s1824 + $0x68] sm:$0xff]
  %v1839 = vld [vmem:[%s1824 + $0x70] sm:$0xff]
  %v1840 = vld [vmem:[%s1824 + $0x78] sm:$0xff]
  %v1841 = vperm.slane %v972, 7
  %1842 = vmatpush.msra.mxu0 %v1840
  %1843 = vmatpush.msra.mxu0 %v1839
  %1844 = vmatpush.msra.mxu0 %v1838
  %1845 = vmatpush.msra.mxu0 %v1837
  %1846 = vmatpush.msra.mxu0 %v1836
  %1847 = vmatpush.msra.mxu0 %v1835
  %1848 = vmatpush.msra.mxu0 %v1834
  %1849 = vmatpush.msra.mxu0 %v1833
  %1850 = vmatpush.msra.mxu0 %v1832
  %1851 = vmatpush.msra.mxu0 %v1831
  %1852 = vmatpush.msra.mxu0 %v1830
  %1853 = vmatpush.msra.mxu0 %v1829
  %1854 = vmatpush.msra.mxu0 %v1828
  %1855 = vmatpush.msra.mxu0 %v1827
  %1856 = vmatpush.msra.mxu0 %v1826
  %1857 = vmatpush.msra.mxu0 %v1825
  %1858 = vmatmul.f32.gmra.mxu0 %v1821
  %v1859 = vpop.f32.mrf.mxu0
  %v1860 = vadd.f32 %v1841, %v1859
  %1861 = vmatmul.f32.gmra.mxu0 %v1822
  %v1862 = vpop.f32.mrf.mxu0
  %v1863 = vadd.f32 %v1841, %v1862
  %1864 = vmatmul.f32.gmra.mxu0 %v1823
  %v1865 = vpop.f32.mrf.mxu0
  %v1866 = vadd.f32 %v1841, %v1865
  %1867 = vdwg.mxu0
  %v1868 = vadd.f32 %v1688, %v1860
  %v1869 = vadd.f32 %v1689, %v1863
  %v1870 = vadd.f32 %v1690, %v1866
  %s1871 = scalar_lea.vmem %s1, 24
  %v1872 = vld [vmem:[%s1871] sm:$0xff]
  %v1873 = vld [vmem:[%s1871 + $0x8] sm:$0xff]
  %v1874 = vld [vmem:[%s1871 + $0x10] sm:$0xff]
  %v1875 = vsel %vm965, %v1872, %v1868
  %v1876 = vsel %vm966, %v1873, %v1869
  %v1877 = vsel %vm967, %v1874, %v1870
  %s1878 = scalar_lea.vmem %s4, 16
  %v1879 = vld [vmem:[%s1878] sm:$0xff]
  %v1880 = vsel %vm42, %v1875, 0.0
  %1881 = vadd.xlane.f32.xlu0 %v1880
  %v1882 = vpop.xlane.xlu0 %1881
  %v1883 = vsel %vm42, %v1876, 0.0
  %1884 = vadd.xlane.f32.xlu0 %v1883
  %v1885 = vpop.xlane.xlu0 %1884
  %v1886 = vsel %vm42, %v1877, 0.0
  %1887 = vadd.xlane.f32.xlu0 %v1886
  %v1888 = vpop.xlane.xlu0 %1887
  %v1889 = vmul.f32 %v1882, %v58
  %v1890 = vmul.f32 %v1885, %v58
  %v1891 = vmul.f32 %v1888, %v58
  %v1892 = vsub.f32 %v1875, %v1889
  %v1893 = vsub.f32 %v1876, %v1890
  %v1894 = vsub.f32 %v1877, %v1891
  %v1895 = vmul.f32 %v1892, %v1892
  %v1896 = vmul.f32 %v1893, %v1893
  %v1897 = vmul.f32 %v1894, %v1894
  %v1898 = vsel %vm42, %v1895, 0.0
  %1899 = vadd.xlane.f32.xlu0 %v1898
  %v1900 = vpop.xlane.xlu0 %1899
  %v1901 = vsel %vm42, %v1896, 0.0
  %1902 = vadd.xlane.f32.xlu0 %v1901
  %v1903 = vpop.xlane.xlu0 %1902
  %v1904 = vsel %vm42, %v1897, 0.0
  %1905 = vadd.xlane.f32.xlu0 %v1904
  %v1906 = vpop.xlane.xlu0 %1905
  %v1907 = vmul.f32 %v1900, %v58
  %v1908 = vmul.f32 %v1903, %v58
  %v1909 = vmul.f32 %v1906, %v58
  %v1910 = vadd.f32 %v1907, 1e-05
  %v1911 = vadd.f32 %v1908, 1e-05
  %v1912 = vadd.f32 %v1909, 1e-05
  %v1913 = vrsqrt.pop %v1910
  %v1914 = vmul.f32 %v1913, %v1910
  %v1915 = vmul.f32 %v1914, %v1913
  %v1916 = vmul.f32 0.5, %v1915
  %v1917 = vsub.f32 1.5, %v1916
  %v1918 = vmul.f32 %v1913, %v1917
  %vm1919 = vweird.f32 %v1910
  %vm1920 = vweird.f32 %v1913
  %vm1921 = vmor %vm1919, %vm1920
  %v1922 = vsel %vm1921, %v1913, %v1918
  %v1923 = vrsqrt.pop %v1911
  %v1924 = vmul.f32 %v1923, %v1911
  %v1925 = vmul.f32 %v1924, %v1923
  %v1926 = vmul.f32 0.5, %v1925
  %v1927 = vsub.f32 1.5, %v1926
  %v1928 = vmul.f32 %v1923, %v1927
  %vm1929 = vweird.f32 %v1911
  %vm1930 = vweird.f32 %v1923
  %vm1931 = vmor %vm1929, %vm1930
  %v1932 = vsel %vm1931, %v1923, %v1928
  %v1933 = vrsqrt.pop %v1912
  %v1934 = vmul.f32 %v1933, %v1912
  %v1935 = vmul.f32 %v1934, %v1933
  %v1936 = vmul.f32 0.5, %v1935
  %v1937 = vsub.f32 1.5, %v1936
  %v1938 = vmul.f32 %v1933, %v1937
  %vm1939 = vweird.f32 %v1912
  %vm1940 = vweird.f32 %v1933
  %vm1941 = vmor %vm1939, %vm1940
  %v1942 = vsel %vm1941, %v1933, %v1938
  %v1943 = vmul.f32 %v1892, %v1922
  %v1944 = vmul.f32 %v1893, %v1932
  %v1945 = vmul.f32 %v1894, %v1942
  %v1946 = vperm.slane %v1879, 0
  %v1947 = vmul.f32 %v1943, %v1946
  %v1948 = vmul.f32 %v1944, %v1946
  %v1949 = vmul.f32 %v1945, %v1946
  %v1950 = vperm.slane %v1879, 1
  %v1951 = vadd.f32 %v1947, %v1950
  %v1952 = vadd.f32 %v1948, %v1950
  %v1953 = vadd.f32 %v1949, %v1950
  %s1954 = scalar_lea.vmem %s5, 64
  %v1955 = vld [vmem:[%s1954] sm:$0xff]
  %v1956 = vld [vmem:[%s1954 + $0x8] sm:$0xff]
  %v1957 = vld [vmem:[%s1954 + $0x10] sm:$0xff]
  %v1958 = vld [vmem:[%s1954 + $0x18] sm:$0xff]
  %v1959 = vperm.slane %v1879, 2
  %v1961 = vsel %vm42, %v1951, 0
  %v1964 = vsel %vm42, %v1952, 0
  %v1967 = vsel %vm42, %v1953, 0
  %1969 = vmatpush.msra.mxu0 0.0
  %1970 = vmatpush.msra.mxu0 0.0
  %1971 = vmatpush.msra.mxu0 0.0
  %1972 = vmatpush.msra.mxu0 0.0
  %1973 = vmatpush.msra.mxu0 0.0
  %1974 = vmatpush.msra.mxu0 0.0
  %1975 = vmatpush.msra.mxu0 0.0
  %1976 = vmatpush.msra.mxu0 0.0
  %1977 = vmatpush.msra.mxu0 0.0
  %1978 = vmatpush.msra.mxu0 0.0
  %1979 = vmatpush.msra.mxu0 0.0
  %1980 = vmatpush.msra.mxu0 0.0
  %1981 = vmatpush.msra.mxu0 %v1958
  %1982 = vmatpush.msra.mxu0 %v1957
  %1983 = vmatpush.msra.mxu0 %v1956
  %1984 = vmatpush.msra.mxu0 %v1955
  %1985 = vmatmul.f32.gmra.mxu0 %v1961
  %v1986 = vpop.f32.mrf.mxu0
  %v1987 = vadd.f32 %v1959, %v1986
  %1988 = vmatmul.f32.gmra.mxu0 %v1964
  %v1989 = vpop.f32.mrf.mxu0
  %v1990 = vadd.f32 %v1959, %v1989
  %1991 = vmatmul.f32.gmra.mxu0 %v1967
  %v1992 = vpop.f32.mrf.mxu0
  %v1993 = vadd.f32 %v1959, %v1992
  %1994 = vdwg.mxu0
  %v1995 = vmul.f32 %v1987, 0.35355338
  %v1996 = vmul.f32 %v1990, 0.35355338
  %v1997 = vmul.f32 %v1993, 0.35355338
  %2001 = vrot.lane.b32.xlu0 %v1987, 96
  %v2002 = vpop.permute.xlu0 %2001
  %2003 = vrot.lane.b32.xlu0 %v1990, 96
  %v2004 = vpop.permute.xlu0 %2003
  %2005 = vrot.lane.b32.xlu0 %v1993, 96
  %v2006 = vpop.permute.xlu0 %2005
  %v2008 = vsel %vm176, %v1995, 0
  %v2011 = vsel %vm176, %v1996, 0
  %v2014 = vsel %vm176, %v1997, 0
  %v2016 = vsel %vm176, %v2002, 0
  %v2018 = vsel %vm176, %v2004, 0
  %v2020 = vsel %vm176, %v2006, 0
  %2022 = vmatpush.xpose.msra.mxu0 0.0
  %2023 = vmatpush.xpose.msra.mxu0 0.0
  %2024 = vmatpush.xpose.msra.mxu0 0.0
  %2025 = vmatpush.xpose.msra.mxu0 0.0
  %2026 = vmatpush.xpose.msra.mxu0 0.0
  %2027 = vmatpush.xpose.msra.mxu0 0.0
  %2028 = vmatpush.xpose.msra.mxu0 0.0
  %2029 = vmatpush.xpose.msra.mxu0 0.0
  %2030 = vmatpush.xpose.msra.mxu0 0.0
  %2031 = vmatpush.xpose.msra.mxu0 0.0
  %2032 = vmatpush.xpose.msra.mxu0 0.0
  %2033 = vmatpush.xpose.msra.mxu0 0.0
  %2034 = vmatpush.xpose.msra.mxu0 0.0
  %2035 = vmatpush.xpose.msra.mxu0 %v2020
  %2036 = vmatpush.xpose.msra.mxu0 %v2018
  %2037 = vmatpush.xpose.msra.mxu0 %v2016
  %2038 = vmatmul.f32.gmra.mxu0 %v2008
  %v2039 = vpop.f32.mrf.mxu0
  %v2040 = vadd.f32 %v38, %v2039
  %2041 = vmatmul.f32.gmra.mxu0 %v2011
  %v2042 = vpop.f32.mrf.mxu0
  %v2043 = vadd.f32 %v39, %v2042
  %2044 = vmatmul.f32.gmra.mxu0 %v2014
  %v2045 = vpop.f32.mrf.mxu0
  %v2046 = vadd.f32 %v40, %v2045
  %2047 = vdwg.mxu0
  %v2048 = vsel %vm218, %v2040, -inf
  %2049 = vmax.xlane.f32.xlu0 %v2048
  %v2050 = vpop.xlane.xlu0 %2049
  %v2051 = vsel %vm218, %v2043, -inf
  %2052 = vmax.xlane.f32.xlu0 %v2051
  %v2053 = vpop.xlane.xlu0 %2052
  %v2054 = vsel %vm218, %v2046, -inf
  %2055 = vmax.xlane.f32.xlu0 %v2054
  %v2056 = vpop.xlane.xlu0 %2055
  %v2057 = vsub.f32 %v2040, %v2050
  %v2058 = vsub.f32 %v2043, %v2053
  %v2059 = vsub.f32 %v2046, %v2056
  %v2060 = vmul.f32 %v2057, 1.442695
  %v2061 = vpow.pop %v2060
  %v2062 = vmul.f32 %v2058, 1.442695
  %v2063 = vpow.pop %v2062
  %v2064 = vmul.f32 %v2059, 1.442695
  %v2065 = vpow.pop %v2064
  %v2066 = vsel %vm218, %v2061, 0.0
  %2067 = vadd.xlane.f32.xlu0 %v2066
  %v2068 = vpop.xlane.xlu0 %2067
  %v2069 = vsel %vm218, %v2063, 0.0
  %2070 = vadd.xlane.f32.xlu0 %v2069
  %v2071 = vpop.xlane.xlu0 %2070
  %v2072 = vsel %vm218, %v2065, 0.0
  %2073 = vadd.xlane.f32.xlu0 %v2072
  %v2074 = vpop.xlane.xlu0 %2073
  %v2075 = vrcp.pop %v2068
  %v2076 = vrcp.pop %v2071
  %v2077 = vrcp.pop %v2074
  %v2078 = vmul.f32 %v2061, %v2075
  %v2079 = vmul.f32 %v2063, %v2076
  %v2080 = vmul.f32 %v2065, %v2077
  %2081 = vrot.lane.b32.xlu0 %v1987, 64
  %v2082 = vpop.permute.xlu0 %2081
  %2083 = vrot.lane.b32.xlu0 %v1990, 64
  %v2084 = vpop.permute.xlu0 %2083
  %2085 = vrot.lane.b32.xlu0 %v1993, 64
  %v2086 = vpop.permute.xlu0 %2085
  %v2091 = vsel %vm218, %v2078, 0
  %v2094 = vsel %vm218, %v2079, 0
  %v2097 = vsel %vm218, %v2080, 0
  %2099 = vmatpush.msra.mxu0 0.0
  %2100 = vmatpush.msra.mxu0 0.0
  %2101 = vmatpush.msra.mxu0 0.0
  %2102 = vmatpush.msra.mxu0 0.0
  %2103 = vmatpush.msra.mxu0 0.0
  %2104 = vmatpush.msra.mxu0 0.0
  %2105 = vmatpush.msra.mxu0 0.0
  %2106 = vmatpush.msra.mxu0 0.0
  %2107 = vmatpush.msra.mxu0 0.0
  %2108 = vmatpush.msra.mxu0 0.0
  %2109 = vmatpush.msra.mxu0 0.0
  %2110 = vmatpush.msra.mxu0 0.0
  %2111 = vmatpush.msra.mxu0 0.0
  %2112 = vmatpush.msra.mxu0 %v2086
  %2113 = vmatpush.msra.mxu0 %v2084
  %2114 = vmatpush.msra.mxu0 %v2082
  %2115 = vmatmul.f32.gmra.mxu0 %v2091
  %v2116 = vpop.f32.mrf.mxu0
  %v2117 = vadd.f32 0.0, %v2116
  %2118 = vmatmul.f32.gmra.mxu0 %v2094
  %v2119 = vpop.f32.mrf.mxu0
  %v2120 = vadd.f32 0.0, %v2119
  %2121 = vmatmul.f32.gmra.mxu0 %v2097
  %v2122 = vpop.f32.mrf.mxu0
  %v2123 = vadd.f32 0.0, %v2122
  %2124 = vdwg.mxu0
  %2125 = vrot.lane.b32.xlu0 %v1995, 120
  %v2126 = vpop.permute.xlu0 %2125
  %2127 = vrot.lane.b32.xlu0 %v1996, 120
  %v2128 = vpop.permute.xlu0 %2127
  %2129 = vrot.lane.b32.xlu0 %v1997, 120
  %v2130 = vpop.permute.xlu0 %2129
  %2131 = vrot.lane.b32.xlu0 %v1987, 88
  %v2132 = vpop.permute.xlu0 %2131
  %2133 = vrot.lane.b32.xlu0 %v1990, 88
  %v2134 = vpop.permute.xlu0 %2133
  %2135 = vrot.lane.b32.xlu0 %v1993, 88
  %v2136 = vpop.permute.xlu0 %2135
  %v2137 = vsel %vm176, %v2126, 0
  %v2139 = vsel %vm176, %v2128, 0
  %v2141 = vsel %vm176, %v2130, 0
  %v2143 = vsel %vm176, %v2132, 0
  %v2145 = vsel %vm176, %v2134, 0
  %v2147 = vsel %vm176, %v2136, 0
  %2149 = vmatpush.xpose.msra.mxu0 0.0
  %2150 = vmatpush.xpose.msra.mxu0 0.0
  %2151 = vmatpush.xpose.msra.mxu0 0.0
  %2152 = vmatpush.xpose.msra.mxu0 0.0
  %2153 = vmatpush.xpose.msra.mxu0 0.0
  %2154 = vmatpush.xpose.msra.mxu0 0.0
  %2155 = vmatpush.xpose.msra.mxu0 0.0
  %2156 = vmatpush.xpose.msra.mxu0 0.0
  %2157 = vmatpush.xpose.msra.mxu0 0.0
  %2158 = vmatpush.xpose.msra.mxu0 0.0
  %2159 = vmatpush.xpose.msra.mxu0 0.0
  %2160 = vmatpush.xpose.msra.mxu0 0.0
  %2161 = vmatpush.xpose.msra.mxu0 0.0
  %2162 = vmatpush.xpose.msra.mxu0 %v2147
  %2163 = vmatpush.xpose.msra.mxu0 %v2145
  %2164 = vmatpush.xpose.msra.mxu0 %v2143
  %2165 = vmatmul.f32.gmra.mxu0 %v2137
  %v2166 = vpop.f32.mrf.mxu0
  %v2167 = vadd.f32 %v38, %v2166
  %2168 = vmatmul.f32.gmra.mxu0 %v2139
  %v2169 = vpop.f32.mrf.mxu0
  %v2170 = vadd.f32 %v39, %v2169
  %2171 = vmatmul.f32.gmra.mxu0 %v2141
  %v2172 = vpop.f32.mrf.mxu0
  %v2173 = vadd.f32 %v40, %v2172
  %2174 = vdwg.mxu0
  %v2175 = vsel %vm218, %v2167, -inf
  %2176 = vmax.xlane.f32.xlu0 %v2175
  %v2177 = vpop.xlane.xlu0 %2176
  %v2178 = vsel %vm218, %v2170, -inf
  %2179 = vmax.xlane.f32.xlu0 %v2178
  %v2180 = vpop.xlane.xlu0 %2179
  %v2181 = vsel %vm218, %v2173, -inf
  %2182 = vmax.xlane.f32.xlu0 %v2181
  %v2183 = vpop.xlane.xlu0 %2182
  %v2184 = vsub.f32 %v2167, %v2177
  %v2185 = vsub.f32 %v2170, %v2180
  %v2186 = vsub.f32 %v2173, %v2183
  %v2187 = vmul.f32 %v2184, 1.442695
  %v2188 = vpow.pop %v2187
  %v2189 = vmul.f32 %v2185, 1.442695
  %v2190 = vpow.pop %v2189
  %v2191 = vmul.f32 %v2186, 1.442695
  %v2192 = vpow.pop %v2191
  %v2193 = vsel %vm218, %v2188, 0.0
  %2194 = vadd.xlane.f32.xlu0 %v2193
  %v2195 = vpop.xlane.xlu0 %2194
  %v2196 = vsel %vm218, %v2190, 0.0
  %2197 = vadd.xlane.f32.xlu0 %v2196
  %v2198 = vpop.xlane.xlu0 %2197
  %v2199 = vsel %vm218, %v2192, 0.0
  %2200 = vadd.xlane.f32.xlu0 %v2199
  %v2201 = vpop.xlane.xlu0 %2200
  %v2202 = vrcp.pop %v2195
  %v2203 = vrcp.pop %v2198
  %v2204 = vrcp.pop %v2201
  %v2205 = vmul.f32 %v2188, %v2202
  %v2206 = vmul.f32 %v2190, %v2203
  %v2207 = vmul.f32 %v2192, %v2204
  %2208 = vrot.lane.b32.xlu0 %v1987, 56
  %v2209 = vpop.permute.xlu0 %2208
  %2210 = vrot.lane.b32.xlu0 %v1990, 56
  %v2211 = vpop.permute.xlu0 %2210
  %2212 = vrot.lane.b32.xlu0 %v1993, 56
  %v2213 = vpop.permute.xlu0 %2212
  %v2218 = vsel %vm218, %v2205, 0
  %v2221 = vsel %vm218, %v2206, 0
  %v2224 = vsel %vm218, %v2207, 0
  %2226 = vmatpush.msra.mxu0 0.0
  %2227 = vmatpush.msra.mxu0 0.0
  %2228 = vmatpush.msra.mxu0 0.0
  %2229 = vmatpush.msra.mxu0 0.0
  %2230 = vmatpush.msra.mxu0 0.0
  %2231 = vmatpush.msra.mxu0 0.0
  %2232 = vmatpush.msra.mxu0 0.0
  %2233 = vmatpush.msra.mxu0 0.0
  %2234 = vmatpush.msra.mxu0 0.0
  %2235 = vmatpush.msra.mxu0 0.0
  %2236 = vmatpush.msra.mxu0 0.0
  %2237 = vmatpush.msra.mxu0 0.0
  %2238 = vmatpush.msra.mxu0 0.0
  %2239 = vmatpush.msra.mxu0 %v2213
  %2240 = vmatpush.msra.mxu0 %v2211
  %2241 = vmatpush.msra.mxu0 %v2209
  %2242 = vmatmul.f32.gmra.mxu0 %v2218
  %v2243 = vpop.f32.mrf.mxu0
  %v2244 = vadd.f32 0.0, %v2243
  %2245 = vmatmul.f32.gmra.mxu0 %v2221
  %v2246 = vpop.f32.mrf.mxu0
  %v2247 = vadd.f32 0.0, %v2246
  %2248 = vmatmul.f32.gmra.mxu0 %v2224
  %v2249 = vpop.f32.mrf.mxu0
  %v2250 = vadd.f32 0.0, %v2249
  %2251 = vdwg.mxu0
  %2252 = vrot.lane.b32.xlu0 %v1995, 112
  %v2253 = vpop.permute.xlu0 %2252
  %2254 = vrot.lane.b32.xlu0 %v1996, 112
  %v2255 = vpop.permute.xlu0 %2254
  %2256 = vrot.lane.b32.xlu0 %v1997, 112
  %v2257 = vpop.permute.xlu0 %2256
  %2258 = vrot.lane.b32.xlu0 %v1987, 80
  %v2259 = vpop.permute.xlu0 %2258
  %2260 = vrot.lane.b32.xlu0 %v1990, 80
  %v2261 = vpop.permute.xlu0 %2260
  %2262 = vrot.lane.b32.xlu0 %v1993, 80
  %v2263 = vpop.permute.xlu0 %2262
  %v2264 = vsel %vm176, %v2253, 0
  %v2266 = vsel %vm176, %v2255, 0
  %v2268 = vsel %vm176, %v2257, 0
  %v2270 = vsel %vm176, %v2259, 0
  %v2272 = vsel %vm176, %v2261, 0
  %v2274 = vsel %vm176, %v2263, 0
  %2276 = vmatpush.xpose.msra.mxu0 0.0
  %2277 = vmatpush.xpose.msra.mxu0 0.0
  %2278 = vmatpush.xpose.msra.mxu0 0.0
  %2279 = vmatpush.xpose.msra.mxu0 0.0
  %2280 = vmatpush.xpose.msra.mxu0 0.0
  %2281 = vmatpush.xpose.msra.mxu0 0.0
  %2282 = vmatpush.xpose.msra.mxu0 0.0
  %2283 = vmatpush.xpose.msra.mxu0 0.0
  %2284 = vmatpush.xpose.msra.mxu0 0.0
  %2285 = vmatpush.xpose.msra.mxu0 0.0
  %2286 = vmatpush.xpose.msra.mxu0 0.0
  %2287 = vmatpush.xpose.msra.mxu0 0.0
  %2288 = vmatpush.xpose.msra.mxu0 0.0
  %2289 = vmatpush.xpose.msra.mxu0 %v2274
  %2290 = vmatpush.xpose.msra.mxu0 %v2272
  %2291 = vmatpush.xpose.msra.mxu0 %v2270
  %2292 = vmatmul.f32.gmra.mxu0 %v2264
  %v2293 = vpop.f32.mrf.mxu0
  %v2294 = vadd.f32 %v38, %v2293
  %2295 = vmatmul.f32.gmra.mxu0 %v2266
  %v2296 = vpop.f32.mrf.mxu0
  %v2297 = vadd.f32 %v39, %v2296
  %2298 = vmatmul.f32.gmra.mxu0 %v2268
  %v2299 = vpop.f32.mrf.mxu0
  %v2300 = vadd.f32 %v40, %v2299
  %2301 = vdwg.mxu0
  %v2302 = vsel %vm218, %v2294, -inf
  %2303 = vmax.xlane.f32.xlu0 %v2302
  %v2304 = vpop.xlane.xlu0 %2303
  %v2305 = vsel %vm218, %v2297, -inf
  %2306 = vmax.xlane.f32.xlu0 %v2305
  %v2307 = vpop.xlane.xlu0 %2306
  %v2308 = vsel %vm218, %v2300, -inf
  %2309 = vmax.xlane.f32.xlu0 %v2308
  %v2310 = vpop.xlane.xlu0 %2309
  %v2311 = vsub.f32 %v2294, %v2304
  %v2312 = vsub.f32 %v2297, %v2307
  %v2313 = vsub.f32 %v2300, %v2310
  %v2314 = vmul.f32 %v2311, 1.442695
  %v2315 = vpow.pop %v2314
  %v2316 = vmul.f32 %v2312, 1.442695
  %v2317 = vpow.pop %v2316
  %v2318 = vmul.f32 %v2313, 1.442695
  %v2319 = vpow.pop %v2318
  %v2320 = vsel %vm218, %v2315, 0.0
  %2321 = vadd.xlane.f32.xlu0 %v2320
  %v2322 = vpop.xlane.xlu0 %2321
  %v2323 = vsel %vm218, %v2317, 0.0
  %2324 = vadd.xlane.f32.xlu0 %v2323
  %v2325 = vpop.xlane.xlu0 %2324
  %v2326 = vsel %vm218, %v2319, 0.0
  %2327 = vadd.xlane.f32.xlu0 %v2326
  %v2328 = vpop.xlane.xlu0 %2327
  %v2329 = vrcp.pop %v2322
  %v2330 = vrcp.pop %v2325
  %v2331 = vrcp.pop %v2328
  %v2332 = vmul.f32 %v2315, %v2329
  %v2333 = vmul.f32 %v2317, %v2330
  %v2334 = vmul.f32 %v2319, %v2331
  %2335 = vrot.lane.b32.xlu0 %v1987, 48
  %v2336 = vpop.permute.xlu0 %2335
  %2337 = vrot.lane.b32.xlu0 %v1990, 48
  %v2338 = vpop.permute.xlu0 %2337
  %2339 = vrot.lane.b32.xlu0 %v1993, 48
  %v2340 = vpop.permute.xlu0 %2339
  %v2345 = vsel %vm218, %v2332, 0
  %v2348 = vsel %vm218, %v2333, 0
  %v2351 = vsel %vm218, %v2334, 0
  %2353 = vmatpush.msra.mxu0 0.0
  %2354 = vmatpush.msra.mxu0 0.0
  %2355 = vmatpush.msra.mxu0 0.0
  %2356 = vmatpush.msra.mxu0 0.0
  %2357 = vmatpush.msra.mxu0 0.0
  %2358 = vmatpush.msra.mxu0 0.0
  %2359 = vmatpush.msra.mxu0 0.0
  %2360 = vmatpush.msra.mxu0 0.0
  %2361 = vmatpush.msra.mxu0 0.0
  %2362 = vmatpush.msra.mxu0 0.0
  %2363 = vmatpush.msra.mxu0 0.0
  %2364 = vmatpush.msra.mxu0 0.0
  %2365 = vmatpush.msra.mxu0 0.0
  %2366 = vmatpush.msra.mxu0 %v2340
  %2367 = vmatpush.msra.mxu0 %v2338
  %2368 = vmatpush.msra.mxu0 %v2336
  %2369 = vmatmul.f32.gmra.mxu0 %v2345
  %v2370 = vpop.f32.mrf.mxu0
  %v2371 = vadd.f32 0.0, %v2370
  %2372 = vmatmul.f32.gmra.mxu0 %v2348
  %v2373 = vpop.f32.mrf.mxu0
  %v2374 = vadd.f32 0.0, %v2373
  %2375 = vmatmul.f32.gmra.mxu0 %v2351
  %v2376 = vpop.f32.mrf.mxu0
  %v2377 = vadd.f32 0.0, %v2376
  %2378 = vdwg.mxu0
  %2379 = vrot.lane.b32.xlu0 %v1995, 104
  %v2380 = vpop.permute.xlu0 %2379
  %2381 = vrot.lane.b32.xlu0 %v1996, 104
  %v2382 = vpop.permute.xlu0 %2381
  %2383 = vrot.lane.b32.xlu0 %v1997, 104
  %v2384 = vpop.permute.xlu0 %2383
  %2385 = vrot.lane.b32.xlu0 %v1987, 72
  %v2386 = vpop.permute.xlu0 %2385
  %2387 = vrot.lane.b32.xlu0 %v1990, 72
  %v2388 = vpop.permute.xlu0 %2387
  %2389 = vrot.lane.b32.xlu0 %v1993, 72
  %v2390 = vpop.permute.xlu0 %2389
  %v2391 = vsel %vm176, %v2380, 0
  %v2393 = vsel %vm176, %v2382, 0
  %v2395 = vsel %vm176, %v2384, 0
  %v2397 = vsel %vm176, %v2386, 0
  %v2399 = vsel %vm176, %v2388, 0
  %v2401 = vsel %vm176, %v2390, 0
  %2403 = vmatpush.xpose.msra.mxu0 0.0
  %2404 = vmatpush.xpose.msra.mxu0 0.0
  %2405 = vmatpush.xpose.msra.mxu0 0.0
  %2406 = vmatpush.xpose.msra.mxu0 0.0
  %2407 = vmatpush.xpose.msra.mxu0 0.0
  %2408 = vmatpush.xpose.msra.mxu0 0.0
  %2409 = vmatpush.xpose.msra.mxu0 0.0
  %2410 = vmatpush.xpose.msra.mxu0 0.0
  %2411 = vmatpush.xpose.msra.mxu0 0.0
  %2412 = vmatpush.xpose.msra.mxu0 0.0
  %2413 = vmatpush.xpose.msra.mxu0 0.0
  %2414 = vmatpush.xpose.msra.mxu0 0.0
  %2415 = vmatpush.xpose.msra.mxu0 0.0
  %2416 = vmatpush.xpose.msra.mxu0 %v2401
  %2417 = vmatpush.xpose.msra.mxu0 %v2399
  %2418 = vmatpush.xpose.msra.mxu0 %v2397
  %2419 = vmatmul.f32.gmra.mxu0 %v2391
  %v2420 = vpop.f32.mrf.mxu0
  %v2421 = vadd.f32 %v38, %v2420
  %2422 = vmatmul.f32.gmra.mxu0 %v2393
  %v2423 = vpop.f32.mrf.mxu0
  %v2424 = vadd.f32 %v39, %v2423
  %2425 = vmatmul.f32.gmra.mxu0 %v2395
  %v2426 = vpop.f32.mrf.mxu0
  %v2427 = vadd.f32 %v40, %v2426
  %2428 = vdwg.mxu0
  %v2429 = vsel %vm218, %v2421, -inf
  %2430 = vmax.xlane.f32.xlu0 %v2429
  %v2431 = vpop.xlane.xlu0 %2430
  %v2432 = vsel %vm218, %v2424, -inf
  %2433 = vmax.xlane.f32.xlu0 %v2432
  %v2434 = vpop.xlane.xlu0 %2433
  %v2435 = vsel %vm218, %v2427, -inf
  %2436 = vmax.xlane.f32.xlu0 %v2435
  %v2437 = vpop.xlane.xlu0 %2436
  %v2438 = vsub.f32 %v2421, %v2431
  %v2439 = vsub.f32 %v2424, %v2434
  %v2440 = vsub.f32 %v2427, %v2437
  %v2441 = vmul.f32 %v2438, 1.442695
  %v2442 = vpow.pop %v2441
  %v2443 = vmul.f32 %v2439, 1.442695
  %v2444 = vpow.pop %v2443
  %v2445 = vmul.f32 %v2440, 1.442695
  %v2446 = vpow.pop %v2445
  %v2447 = vsel %vm218, %v2442, 0.0
  %2448 = vadd.xlane.f32.xlu0 %v2447
  %v2449 = vpop.xlane.xlu0 %2448
  %v2450 = vsel %vm218, %v2444, 0.0
  %2451 = vadd.xlane.f32.xlu0 %v2450
  %v2452 = vpop.xlane.xlu0 %2451
  %v2453 = vsel %vm218, %v2446, 0.0
  %2454 = vadd.xlane.f32.xlu0 %v2453
  %v2455 = vpop.xlane.xlu0 %2454
  %v2456 = vrcp.pop %v2449
  %v2457 = vrcp.pop %v2452
  %v2458 = vrcp.pop %v2455
  %v2459 = vmul.f32 %v2442, %v2456
  %v2460 = vmul.f32 %v2444, %v2457
  %v2461 = vmul.f32 %v2446, %v2458
  %2462 = vrot.lane.b32.xlu0 %v1987, 40
  %v2463 = vpop.permute.xlu0 %2462
  %2464 = vrot.lane.b32.xlu0 %v1990, 40
  %v2465 = vpop.permute.xlu0 %2464
  %2466 = vrot.lane.b32.xlu0 %v1993, 40
  %v2467 = vpop.permute.xlu0 %2466
  %v2472 = vsel %vm218, %v2459, 0
  %v2475 = vsel %vm218, %v2460, 0
  %v2478 = vsel %vm218, %v2461, 0
  %2480 = vmatpush.msra.mxu0 0.0
  %2481 = vmatpush.msra.mxu0 0.0
  %2482 = vmatpush.msra.mxu0 0.0
  %2483 = vmatpush.msra.mxu0 0.0
  %2484 = vmatpush.msra.mxu0 0.0
  %2485 = vmatpush.msra.mxu0 0.0
  %2486 = vmatpush.msra.mxu0 0.0
  %2487 = vmatpush.msra.mxu0 0.0
  %2488 = vmatpush.msra.mxu0 0.0
  %2489 = vmatpush.msra.mxu0 0.0
  %2490 = vmatpush.msra.mxu0 0.0
  %2491 = vmatpush.msra.mxu0 0.0
  %2492 = vmatpush.msra.mxu0 0.0
  %2493 = vmatpush.msra.mxu0 %v2467
  %2494 = vmatpush.msra.mxu0 %v2465
  %2495 = vmatpush.msra.mxu0 %v2463
  %2496 = vmatmul.f32.gmra.mxu0 %v2472
  %v2497 = vpop.f32.mrf.mxu0
  %v2498 = vadd.f32 0.0, %v2497
  %2499 = vmatmul.f32.gmra.mxu0 %v2475
  %v2500 = vpop.f32.mrf.mxu0
  %v2501 = vadd.f32 0.0, %v2500
  %2502 = vmatmul.f32.gmra.mxu0 %v2478
  %v2503 = vpop.f32.mrf.mxu0
  %v2504 = vadd.f32 0.0, %v2503
  %2505 = vdwg.mxu0
  %2509 = vrot.lane.b32.xlu0 %v2244, 8
  %v2510 = vpop.permute.xlu0 %2509
  %2511 = vrot.lane.b32.xlu0 %v2247, 8
  %v2512 = vpop.permute.xlu0 %2511
  %2513 = vrot.lane.b32.xlu0 %v2250, 8
  %v2514 = vpop.permute.xlu0 %2513
  %2521 = vrot.lane.b32.xlu0 %v2371, 16
  %v2522 = vpop.permute.xlu0 %2521
  %2523 = vrot.lane.b32.xlu0 %v2374, 16
  %v2524 = vpop.permute.xlu0 %2523
  %2525 = vrot.lane.b32.xlu0 %v2377, 16
  %v2526 = vpop.permute.xlu0 %2525
  %2533 = vrot.lane.b32.xlu0 %v2498, 24
  %v2534 = vpop.permute.xlu0 %2533
  %2535 = vrot.lane.b32.xlu0 %v2501, 24
  %v2536 = vpop.permute.xlu0 %2535
  %2537 = vrot.lane.b32.xlu0 %v2504, 24
  %v2538 = vpop.permute.xlu0 %2537
  %v2542 = vsel %vm176, %v2117, %v2510
  %v2543 = vsel %vm176, %v2120, %v2512
  %v2544 = vsel %vm176, %v2123, %v2514
  %v2545 = vsel %vm716, %v2542, %v2522
  %v2546 = vsel %vm716, %v2543, %v2524
  %v2547 = vsel %vm716, %v2544, %v2526
  %v2548 = vsel %vm218, %v2545, %v2534
  %v2549 = vsel %vm218, %v2546, %v2536
  %v2550 = vsel %vm218, %v2547, %v2538
  %s2551 = scalar_lea.vmem %s6, 64
  %v2552 = vld [vmem:[%s2551] sm:$0xff]
  %v2553 = vld [vmem:[%s2551 + $0x8] sm:$0xff]
  %v2554 = vld [vmem:[%s2551 + $0x10] sm:$0xff]
  %v2555 = vld [vmem:[%s2551 + $0x18] sm:$0xff]
  %v2557 = vsel %vm42, %v2548, 0
  %v2560 = vsel %vm42, %v2549, 0
  %v2563 = vsel %vm42, %v2550, 0
  %2565 = vmatpush.msra.mxu0 0.0
  %2566 = vmatpush.msra.mxu0 0.0
  %2567 = vmatpush.msra.mxu0 0.0
  %2568 = vmatpush.msra.mxu0 0.0
  %2569 = vmatpush.msra.mxu0 0.0
  %2570 = vmatpush.msra.mxu0 0.0
  %2571 = vmatpush.msra.mxu0 0.0
  %2572 = vmatpush.msra.mxu0 0.0
  %2573 = vmatpush.msra.mxu0 0.0
  %2574 = vmatpush.msra.mxu0 0.0
  %2575 = vmatpush.msra.mxu0 0.0
  %2576 = vmatpush.msra.mxu0 0.0
  %2577 = vmatpush.msra.mxu0 %v2555
  %2578 = vmatpush.msra.mxu0 %v2554
  %2579 = vmatpush.msra.mxu0 %v2553
  %2580 = vmatpush.msra.mxu0 %v2552
  %2581 = vmatmul.f32.gmra.mxu0 %v2557
  %v2582 = vpop.f32.mrf.mxu0
  %v2583 = vadd.f32 0.0, %v2582
  %2584 = vmatmul.f32.gmra.mxu0 %v2560
  %v2585 = vpop.f32.mrf.mxu0
  %v2586 = vadd.f32 0.0, %v2585
  %2587 = vmatmul.f32.gmra.mxu0 %v2563
  %v2588 = vpop.f32.mrf.mxu0
  %v2589 = vadd.f32 0.0, %v2588
  %2590 = vdwg.mxu0
  %v2591 = vadd.f32 %v1875, %v2583
  %v2592 = vadd.f32 %v1876, %v2586
  %v2593 = vadd.f32 %v1877, %v2589
  %v2594 = vperm.slane %v1879, 3
  %v2595 = vadd.f32 %v2591, %v2594
  %v2596 = vadd.f32 %v2592, %v2594
  %v2597 = vadd.f32 %v2593, %v2594
  %v2598 = vsel %vm42, %v2595, 0.0
  %2599 = vadd.xlane.f32.xlu0 %v2598
  %v2600 = vpop.xlane.xlu0 %2599
  %v2601 = vsel %vm42, %v2596, 0.0
  %2602 = vadd.xlane.f32.xlu0 %v2601
  %v2603 = vpop.xlane.xlu0 %2602
  %v2604 = vsel %vm42, %v2597, 0.0
  %2605 = vadd.xlane.f32.xlu0 %v2604
  %v2606 = vpop.xlane.xlu0 %2605
  %v2607 = vmul.f32 %v2600, %v58
  %v2608 = vmul.f32 %v2603, %v58
  %v2609 = vmul.f32 %v2606, %v58
  %v2610 = vsub.f32 %v2595, %v2607
  %v2611 = vsub.f32 %v2596, %v2608
  %v2612 = vsub.f32 %v2597, %v2609
  %v2613 = vmul.f32 %v2610, %v2610
  %v2614 = vmul.f32 %v2611, %v2611
  %v2615 = vmul.f32 %v2612, %v2612
  %v2616 = vsel %vm42, %v2613, 0.0
  %2617 = vadd.xlane.f32.xlu0 %v2616
  %v2618 = vpop.xlane.xlu0 %2617
  %v2619 = vsel %vm42, %v2614, 0.0
  %2620 = vadd.xlane.f32.xlu0 %v2619
  %v2621 = vpop.xlane.xlu0 %2620
  %v2622 = vsel %vm42, %v2615, 0.0
  %2623 = vadd.xlane.f32.xlu0 %v2622
  %v2624 = vpop.xlane.xlu0 %2623
  %v2625 = vmul.f32 %v2618, %v58
  %v2626 = vmul.f32 %v2621, %v58
  %v2627 = vmul.f32 %v2624, %v58
  %v2628 = vadd.f32 %v2625, 1e-05
  %v2629 = vadd.f32 %v2626, 1e-05
  %v2630 = vadd.f32 %v2627, 1e-05
  %v2631 = vrsqrt.pop %v2628
  %v2632 = vmul.f32 %v2631, %v2628
  %v2633 = vmul.f32 %v2632, %v2631
  %v2634 = vmul.f32 0.5, %v2633
  %v2635 = vsub.f32 1.5, %v2634
  %v2636 = vmul.f32 %v2631, %v2635
  %vm2637 = vweird.f32 %v2628
  %vm2638 = vweird.f32 %v2631
  %vm2639 = vmor %vm2637, %vm2638
  %v2640 = vsel %vm2639, %v2631, %v2636
  %v2641 = vrsqrt.pop %v2629
  %v2642 = vmul.f32 %v2641, %v2629
  %v2643 = vmul.f32 %v2642, %v2641
  %v2644 = vmul.f32 0.5, %v2643
  %v2645 = vsub.f32 1.5, %v2644
  %v2646 = vmul.f32 %v2641, %v2645
  %vm2647 = vweird.f32 %v2629
  %vm2648 = vweird.f32 %v2641
  %vm2649 = vmor %vm2647, %vm2648
  %v2650 = vsel %vm2649, %v2641, %v2646
  %v2651 = vrsqrt.pop %v2630
  %v2652 = vmul.f32 %v2651, %v2630
  %v2653 = vmul.f32 %v2652, %v2651
  %v2654 = vmul.f32 0.5, %v2653
  %v2655 = vsub.f32 1.5, %v2654
  %v2656 = vmul.f32 %v2651, %v2655
  %vm2657 = vweird.f32 %v2630
  %vm2658 = vweird.f32 %v2651
  %vm2659 = vmor %vm2657, %vm2658
  %v2660 = vsel %vm2659, %v2651, %v2656
  %v2661 = vmul.f32 %v2610, %v2640
  %v2662 = vmul.f32 %v2611, %v2650
  %v2663 = vmul.f32 %v2612, %v2660
  %v2664 = vperm.slane %v1879, 4
  %v2665 = vmul.f32 %v2661, %v2664
  %v2666 = vmul.f32 %v2662, %v2664
  %v2667 = vmul.f32 %v2663, %v2664
  %v2668 = vperm.slane %v1879, 5
  %v2669 = vadd.f32 %v2665, %v2668
  %v2670 = vadd.f32 %v2666, %v2668
  %v2671 = vadd.f32 %v2667, %v2668
  %s2672 = scalar_lea.vmem %s7, 64
  %v2673 = vld [vmem:[%s2672] sm:$0xff]
  %v2674 = vld [vmem:[%s2672 + $0x8] sm:$0xff]
  %v2675 = vld [vmem:[%s2672 + $0x10] sm:$0xff]
  %v2676 = vld [vmem:[%s2672 + $0x18] sm:$0xff]
  %v2677 = vperm.slane %v1879, 6
  %v2679 = vsel %vm42, %v2669, 0
  %v2682 = vsel %vm42, %v2670, 0
  %v2685 = vsel %vm42, %v2671, 0
  %2687 = vmatpush.msra.mxu0 0.0
  %2688 = vmatpush.msra.mxu0 0.0
  %2689 = vmatpush.msra.mxu0 0.0
  %2690 = vmatpush.msra.mxu0 0.0
  %2691 = vmatpush.msra.mxu0 0.0
  %2692 = vmatpush.msra.mxu0 0.0
  %2693 = vmatpush.msra.mxu0 0.0
  %2694 = vmatpush.msra.mxu0 0.0
  %2695 = vmatpush.msra.mxu0 0.0
  %2696 = vmatpush.msra.mxu0 0.0
  %2697 = vmatpush.msra.mxu0 0.0
  %2698 = vmatpush.msra.mxu0 0.0
  %2699 = vmatpush.msra.mxu0 %v2676
  %2700 = vmatpush.msra.mxu0 %v2675
  %2701 = vmatpush.msra.mxu0 %v2674
  %2702 = vmatpush.msra.mxu0 %v2673
  %2703 = vmatmul.f32.gmra.mxu0 %v2679
  %v2704 = vpop.f32.mrf.mxu0
  %v2705 = vadd.f32 %v2677, %v2704
  %2706 = vmatmul.f32.gmra.mxu0 %v2682
  %v2707 = vpop.f32.mrf.mxu0
  %v2708 = vadd.f32 %v2677, %v2707
  %2709 = vmatmul.f32.gmra.mxu0 %v2685
  %v2710 = vpop.f32.mrf.mxu0
  %v2711 = vadd.f32 %v2677, %v2710
  %2712 = vdwg.mxu0
  %v2713 = vmul.f32 %v2705, -1.702
  %v2714 = vmul.f32 %v2708, -1.702
  %v2715 = vmul.f32 %v2711, -1.702
  %v2716 = vmul.f32 %v2713, 1.442695
  %v2717 = vpow.pop %v2716
  %v2718 = vmul.f32 %v2714, 1.442695
  %v2719 = vpow.pop %v2718
  %v2720 = vmul.f32 %v2715, 1.442695
  %v2721 = vpow.pop %v2720
  %v2722 = vadd.f32 %v2717, 1.0
  %v2723 = vadd.f32 %v2719, 1.0
  %v2724 = vadd.f32 %v2721, 1.0
  %v2725 = vrcp.pop %v2722
  %v2726 = vrcp.pop %v2723
  %v2727 = vrcp.pop %v2724
  %v2728 = vmul.f32 %v2705, %v2725
  %v2729 = vmul.f32 %v2708, %v2726
  %v2730 = vmul.f32 %v2711, %v2727
  %s2731 = scalar_lea.vmem %s8, 256
  %v2732 = vld [vmem:[%s2731] sm:$0xff]
  %v2733 = vld [vmem:[%s2731 + $0x8] sm:$0xff]
  %v2734 = vld [vmem:[%s2731 + $0x10] sm:$0xff]
  %v2735 = vld [vmem:[%s2731 + $0x18] sm:$0xff]
  %v2736 = vld [vmem:[%s2731 + $0x20] sm:$0xff]
  %v2737 = vld [vmem:[%s2731 + $0x28] sm:$0xff]
  %v2738 = vld [vmem:[%s2731 + $0x30] sm:$0xff]
  %v2739 = vld [vmem:[%s2731 + $0x38] sm:$0xff]
  %v2740 = vld [vmem:[%s2731 + $0x40] sm:$0xff]
  %v2741 = vld [vmem:[%s2731 + $0x48] sm:$0xff]
  %v2742 = vld [vmem:[%s2731 + $0x50] sm:$0xff]
  %v2743 = vld [vmem:[%s2731 + $0x58] sm:$0xff]
  %v2744 = vld [vmem:[%s2731 + $0x60] sm:$0xff]
  %v2745 = vld [vmem:[%s2731 + $0x68] sm:$0xff]
  %v2746 = vld [vmem:[%s2731 + $0x70] sm:$0xff]
  %v2747 = vld [vmem:[%s2731 + $0x78] sm:$0xff]
  %v2748 = vperm.slane %v1879, 7
  %2749 = vmatpush.msra.mxu0 %v2747
  %2750 = vmatpush.msra.mxu0 %v2746
  %2751 = vmatpush.msra.mxu0 %v2745
  %2752 = vmatpush.msra.mxu0 %v2744
  %2753 = vmatpush.msra.mxu0 %v2743
  %2754 = vmatpush.msra.mxu0 %v2742
  %2755 = vmatpush.msra.mxu0 %v2741
  %2756 = vmatpush.msra.mxu0 %v2740
  %2757 = vmatpush.msra.mxu0 %v2739
  %2758 = vmatpush.msra.mxu0 %v2738
  %2759 = vmatpush.msra.mxu0 %v2737
  %2760 = vmatpush.msra.mxu0 %v2736
  %2761 = vmatpush.msra.mxu0 %v2735
  %2762 = vmatpush.msra.mxu0 %v2734
  %2763 = vmatpush.msra.mxu0 %v2733
  %2764 = vmatpush.msra.mxu0 %v2732
  %2765 = vmatmul.f32.gmra.mxu0 %v2728
  %v2766 = vpop.f32.mrf.mxu0
  %v2767 = vadd.f32 %v2748, %v2766
  %2768 = vmatmul.f32.gmra.mxu0 %v2729
  %v2769 = vpop.f32.mrf.mxu0
  %v2770 = vadd.f32 %v2748, %v2769
  %2771 = vmatmul.f32.gmra.mxu0 %v2730
  %v2772 = vpop.f32.mrf.mxu0
  %v2773 = vadd.f32 %v2748, %v2772
  %2774 = vdwg.mxu0
  %v2775 = vadd.f32 %v2595, %v2767
  %v2776 = vadd.f32 %v2596, %v2770
  %v2777 = vadd.f32 %v2597, %v2773
  %2778 = vst.msk [vmem:[%s9] sm:$0xff] %vm42, %v2775
  %2779 = vst.msk [vmem:[%s9 + $0x8] sm:$0xff] %vm42, %v2776
  %2780 = vst.msk [vmem:[%s9 + $0x10] sm:$0xff] %vm42, %v2777
  // Predicated region
  $region38: #{prompt_encoder_forward.1} parent=0 // pred_check
    _
  $region39: #{prompt_encoder_forward.1} parent=0 // pred_check_branch
    %2782 = sbr.rel (0) target = $region41
  $region40: #{prompt_encoder_forward.1} parent=0 // pred_region
    _
  $region41: #{prompt_encoder_forward.1} parent=0 // pred_fallthru
    _
  // Predicated region
  $region42: #{prompt_encoder_forward.1} parent=0 // pred_check
    _
  $region43: #{prompt_encoder_forward.1} parent=0 // pred_check_branch
    %2784 = sbr.rel (0) target = $region45
  $region44: #{prompt_encoder_forward.1} parent=0 // pred_region
    _
  $region45: #{prompt_encoder_forward.1} parent=0 // pred_fallthru
    _

</llo_original>
